<compile_context>
chip_gen: v7x
topology: tpu7x:2x2x1
jax: 0.10.0
libtpu: 0.0.40
codegen_flags: <defaults>
</compile_context>

<pallas_src>
import functools

import jax
import jax.numpy as jnp
from jax.experimental import pallas as pl
from jax.experimental.pallas import tpu as pltpu

LN_EPS = 1e-5  # nn.LayerNorm default eps


# ---------------------------------------------------------------------------
# Small helpers
# ---------------------------------------------------------------------------
def _round_up(n, m):
    return (n + m - 1) // m * m


def _vmem_budget():
    """Generation-aware VMEM budget (80% of physical capacity)."""
    cap = 64 << 20  # conservative fallback (v7x per-core VMEM)
    try:
        info = pltpu.get_tpu_info()
        cap = int(getattr(info, "vmem_capacity_bytes", cap)) or cap
    except Exception:
        pass
    return max(32 << 20, int(cap * 0.8))


def _compiler_params(semantics):
    return pltpu.CompilerParams(dimension_semantics=semantics,
                                vmem_limit_bytes=_vmem_budget())


def _pick_batch_tile(B, compute_dtype):
    """>=128-row tiles when B allows (256 for big B); >=16 rows for bf16."""
    min_tile = 16 if jnp.dtype(compute_dtype).itemsize < 4 else 8
    if B >= 512:
        return 256
    if B >= 128:
        return 128          # B in [256, 511] -> 2+ tiles (v7x megacore)
    return max(min_tile, _round_up(B, min_tile))


def _pick_ff_chunk(h4, tb, max_inter_bytes=4 << 20, max_chunks=8):
    """Chunk the 4H dim only if the (tb, 4H) f32 intermediate is large.

    Keeps the static chunk unroll small (<= max_chunks).
    """
    if h4 % 128 != 0 or tb * h4 * 4 <= max_inter_bytes:
        return h4
    divs = [c for c in range(128, h4, 128) if h4 % c == 0]
    ok = [c for c in divs if tb * c * 4 <= max_inter_bytes and h4 // c <= max_chunks]
    if ok:
        return ok[-1]
    ok = [c for c in divs if h4 // c <= max_chunks]
    return ok[0] if ok else h4


def _pick_stream_chunk(h4, h_in, h_out, isz, budget):
    """4H-dim chunk for the streamed MLP variant (per-chunk weights in VMEM)."""
    if h4 % 128 != 0:
        return h4
    divs = [c for c in range(128, h4 + 1, 128) if h4 % c == 0]
    ok = [c for c in divs if 2 * (h_in * c + c * h_out) * isz <= int(0.4 * budget)]
    return ok[-1] if ok else divs[0]


def _layer_norm_f32(x, gamma, beta):
    """Two-pass biased-variance LayerNorm (matches nn.LayerNorm).

    Reductions go to the XLU, rsqrt to the EUP -> off the VALU slot.
    """
    n = x.shape[-1]
    mu = jnp.sum(x, axis=-1, keepdims=True) * (1.0 / n)
    d = x - mu
    var = jnp.sum(d * d, axis=-1, keepdims=True) * (1.0 / n)
    return d * jax.lax.rsqrt(var + LN_EPS) * gamma + beta


# ---------------------------------------------------------------------------
# Kernels — MLP encoder (MLPBlock)
# ---------------------------------------------------------------------------
def mlp_resident_kernel(x_ref, w1_ref, b1_ref, w2_ref, b2_ref, out_ref,
                        *, ff_chunk, compute_dtype):
    """relu(relu(x @ W1 + b1) @ W2 + b2); weights fully VMEM-resident."""
    x = x_ref[...].astype(compute_dtype)
    h4 = w1_ref.shape[1]
    acc = jnp.zeros(out_ref.shape, jnp.float32)
    for c in range(h4 // ff_chunk):              # static, small unroll
        lo = c * ff_chunk
        w1c = w1_ref[:, lo:lo + ff_chunk].astype(compute_dtype)
        b1c = b1_ref[:, lo:lo + ff_chunk]
        w2c = w2_ref[lo:lo + ff_chunk, :].astype(compute_dtype)
        t = jnp.dot(x, w1c, preferred_element_type=jnp.float32) + b1c
        t = jnp.maximum(t, 0.0)
        acc = acc + jnp.dot(t.astype(compute_dtype), w2c,
                            preferred_element_type=jnp.float32)
    out = jnp.maximum(acc + b2_ref[...], 0.0)
    out_ref[...] = out.astype(out_ref.dtype)


def mlp_streamed_kernel(x_ref, w1_ref, b1_ref, w2_ref, b2_ref, out_ref, acc_ref,
                        *, compute_dtype):
    """Same MLP, but the 4H dim is streamed on grid axis 1 (split-K accum)."""
    k = pl.program_id(1)

    @pl.when(k == 0)
    def _():
        acc_ref[...] = jnp.zeros_like(acc_ref)

    x = x_ref[...].astype(compute_dtype)
    t = jnp.dot(x, w1_ref[...].astype(compute_dtype),
                preferred_element_type=jnp.float32)
    t = jnp.maximum(t + b1_ref[...], 0.0)
    acc_ref[...] += jnp.dot(t.astype(compute_dtype),
                            w2_ref[...].astype(compute_dtype),
                            preferred_element_type=jnp.float32)

    @pl.when(k == pl.num_programs(1) - 1)
    def _():
        out = jnp.maximum(acc_ref[...] + b2_ref[...], 0.0)
        out_ref[...] = out.astype(out_ref.dtype)


# ---------------------------------------------------------------------------
# Kernels — Residual encoder (fc -> num_blocks * ResidualBlock -> LayerNorm)
# ---------------------------------------------------------------------------
def residual_resident_kernel(x_ref, fcw_ref, fcb_ref, lng_ref, lnb_ref,
                             w1_ref, b1_ref, w2_ref, b2_ref, fng_ref, fnb_ref,
                             out_ref, *, ff_chunk, compute_dtype):
    """All block weights VMEM-resident; one pass per batch tile."""
    num_blocks = w1_ref.shape[0]
    h4 = w1_ref.shape[-1]

    x = x_ref[...].astype(compute_dtype)
    h = (jnp.dot(x, fcw_ref[...].astype(compute_dtype),
                 preferred_element_type=jnp.float32) + fcb_ref[...])

    for j in range(num_blocks):                  # static; blocks are sequential
        y = _layer_norm_f32(h, lng_ref[j], lnb_ref[j]).astype(compute_dtype)
        acc = jnp.zeros_like(h)
        for c in range(h4 // ff_chunk):          # static, small unroll
            lo = c * ff_chunk
            w1c = w1_ref[j, :, lo:lo + ff_chunk].astype(compute_dtype)
            b1c = b1_ref[j, :, lo:lo + ff_chunk]
            w2c = w2_ref[j, lo:lo + ff_chunk, :].astype(compute_dtype)
            t = jnp.dot(y, w1c, preferred_element_type=jnp.float32) + b1c
            t = jnp.maximum(t, 0.0)
            acc = acc + jnp.dot(t.astype(compute_dtype), w2c,
                                preferred_element_type=jnp.float32)
        h = h + acc + b2_ref[j]

    out = _layer_norm_f32(h, fng_ref[...], fnb_ref[...])
    out_ref[...] = out.astype(out_ref.dtype)


def residual_streamed_kernel(x_ref, fcw_ref, fcb_ref, lng_ref, lnb_ref,
                             w1_ref, b1_ref, w2_ref, b2_ref, fng_ref, fnb_ref,
                             out_ref, h_ref, *, ff_chunk, compute_dtype):
    """Large-H fallback: per-block matmul weights streamed on grid axis 1.

    The running hidden state is carried in an f32 VMEM scratch; LN/bias params
    are fully resident (indexed with the block id) to avoid per-step KB DMAs.
    """
    j = pl.program_id(1)

    @pl.when(j == 0)
    def _():
        x = x_ref[...].astype(compute_dtype)
        h_ref[...] = (jnp.dot(x, fcw_ref[...].astype(compute_dtype),
                              preferred_element_type=jnp.float32)
                      + fcb_ref[...])

    h = h_ref[...]
    lng = lng_ref[j]       # (1, H) — dynamic leading index into resident ref
    lnb = lnb_ref[j]
    b1 = b1_ref[j]         # (1, 4H)
    b2 = b2_ref[j]         # (1, H)

    y = _layer_norm_f32(h, lng, lnb).astype(compute_dtype)

    h4 = w1_ref.shape[-1]
    acc = jnp.zeros_like(h)
    for c in range(h4 // ff_chunk):              # static, small unroll
        lo = c * ff_chunk
        w1c = w1_ref[:, lo:lo + ff_chunk].astype(compute_dtype)
        w2c = w2_ref[lo:lo + ff_chunk, :].astype(compute_dtype)
        t = jnp.dot(y, w1c, preferred_element_type=jnp.float32) + b1[:, lo:lo + ff_chunk]
        t = jnp.maximum(t, 0.0)
        acc = acc + jnp.dot(t.astype(compute_dtype), w2c,
                            preferred_element_type=jnp.float32)

    h = h + acc + b2
    h_ref[...] = h

    @pl.when(j == pl.num_programs(1) - 1)
    def _():
        out = _layer_norm_f32(h, fng_ref[...], fnb_ref[...])
        out_ref[...] = out.astype(out_ref.dtype)   # out index_map is constant in j


# ---------------------------------------------------------------------------
# Wrappers
# ---------------------------------------------------------------------------
def sac_encoder_mlp(x, params, *, batch_tile=None, ff_chunk=None,
                    stream_chunk=None, variant=None,
                    compute_dtype=jnp.bfloat16, out_dtype=None):
    B, H_in = x.shape
    H4 = params["fc1_w"].shape[1]
    H = params["fc2_w"].shape[1]
    assert params["fc1_w"].shape[0] == H_in
    out_dtype = out_dtype or x.dtype
    isz = jnp.dtype(compute_dtype).itemsize

    tb = int(batch_tile or _pick_batch_tile(B, compute_dtype))
    tb = max(8, tb)
    Bp = _round_up(B, tb)
    xp = x if Bp == B else jnp.pad(x, ((0, Bp - B), (0, 0)))

    w1 = params["fc1_w"].astype(compute_dtype)
    w2 = params["fc2_w"].astype(compute_dtype)
    b1 = params["fc1_b"].astype(jnp.float32)
    b2 = params["fc2_b"].astype(jnp.float32)

    budget = _vmem_budget()
    ff_chunk = ff_chunk or _pick_ff_chunk(H4, tb)
    assert H4 % ff_chunk == 0

    resident_bytes = ((H_in * H4 + H4 * H) * isz + (H4 + H) * 4
                      + 2 * tb * (H_in + H) * 4
                      + tb * ff_chunk * 4 + tb * H * 4)
    if variant is None:
        variant = "resident" if resident_bytes <= int(0.85 * budget) else "streamed"

    if variant == "resident":
        kernel = functools.partial(mlp_resident_kernel, ff_chunk=ff_chunk,
                                   compute_dtype=compute_dtype)
        out = pl.pallas_call(
            kernel,
            out_shape=jax.ShapeDtypeStruct((Bp, H), out_dtype),
            grid_spec=pltpu.PrefetchScalarGridSpec(
                num_scalar_prefetch=0,
                grid=(Bp // tb,),
                in_specs=[
                    pl.BlockSpec((tb, H_in), lambda i: (i, 0)),   # x (pipelined)
                    pl.BlockSpec((H_in, H4), lambda i: (0, 0)),   # fc1_w (resident)
                    pl.BlockSpec((1, H4), lambda i: (0, 0)),      # fc1_b
                    pl.BlockSpec((H4, H), lambda i: (0, 0)),      # fc2_w
                    pl.BlockSpec((1, H), lambda i: (0, 0)),       # fc2_b
                ],
                out_specs=pl.BlockSpec((tb, H), lambda i: (i, 0)),
            ),
            compiler_params=_compiler_params(("parallel",)),
        )(xp, w1, b1, w2, b2)
    else:
        ck = stream_chunk or _pick_stream_chunk(H4, H_in, H, isz, budget)
        assert H4 % ck == 0
        kernel = functools.partial(mlp_streamed_kernel, compute_dtype=compute_dtype)
        out = pl.pallas_call(
            kernel,
            out_shape=jax.ShapeDtypeStruct((Bp, H), out_dtype),
            grid_spec=pltpu.PrefetchScalarGridSpec(
                num_scalar_prefetch=0,
                grid=(Bp // tb, H4 // ck),
                in_specs=[
                    pl.BlockSpec((tb, H_in), lambda i, k: (i, 0)),   # x
                    pl.BlockSpec((H_in, ck), lambda i, k: (0, k)),   # fc1_w cols
                    pl.BlockSpec((1, ck), lambda i, k: (0, k)),      # fc1_b
                    pl.BlockSpec((ck, H), lambda i, k: (k, 0)),      # fc2_w rows
                    pl.BlockSpec((1, H), lambda i, k: (0, 0)),       # fc2_b
                ],
                out_specs=pl.BlockSpec((tb, H), lambda i, k: (i, 0)),
                scratch_shapes=[pltpu.VMEM((tb, H), jnp.float32)],   # split-K acc
            ),
            compiler_params=_compiler_params(("parallel", "arbitrary")),
        )(xp, w1, b1, w2, b2)

    return out[:B] if Bp != B else out


def sac_encoder_residual(x, params, num_blocks, *, batch_tile=None, ff_chunk=None,
                         variant=None, compute_dtype=jnp.bfloat16, out_dtype=None):
    B, D_in = x.shape
    H = params["fc_w"].shape[1]
    H4 = params["w1"].shape[2]
    out_dtype = out_dtype or x.dtype
    isz = jnp.dtype(compute_dtype).itemsize

    tb = int(batch_tile or _pick_batch_tile(B, compute_dtype))
    tb = max(8, tb)
    Bp = _round_up(B, tb)
    xp = x if Bp == B else jnp.pad(x, ((0, Bp - B), (0, 0)))

    ff_chunk = ff_chunk or _pick_ff_chunk(H4, tb)
    assert H4 % ff_chunk == 0

    fcw = params["fc_w"].astype(compute_dtype)
    w1 = params["w1"].astype(compute_dtype)
    w2 = params["w2"].astype(compute_dtype)
    fcb = params["fc_b"].astype(jnp.float32)
    b1 = params["b1"].astype(jnp.float32)
    b2 = params["b2"].astype(jnp.float32)
    lng = params["ln_g"].astype(jnp.float32)
    lnb = params["ln_b"].astype(jnp.float32)
    fng = params["fn_g"].astype(jnp.float32)
    fnb = params["fn_b"].astype(jnp.float32)

    budget = _vmem_budget()
    resident_bytes = ((D_in * H + num_blocks * 2 * H * H4) * isz     # matmul weights
                      + (num_blocks * (3 * H + H4) + 3 * H) * 4      # LN / bias params
                      + 2 * tb * (D_in + H) * 4                       # act tiles (dbl-buf)
                      + tb * ff_chunk * 4 + 2 * tb * H * 4)           # intermediates
    if variant is None:
        variant = "resident" if resident_bytes <= int(0.85 * budget) else "streamed"

    args = (xp, fcw, fcb, lng, lnb, w1, b1, w2, b2, fng, fnb)

    if variant == "resident":
        kernel = functools.partial(residual_resident_kernel, ff_chunk=ff_chunk,
                                   compute_dtype=compute_dtype)
        out = pl.pallas_call(
            kernel,
            out_shape=jax.ShapeDtypeStruct((Bp, H), out_dtype),
            grid_spec=pltpu.PrefetchScalarGridSpec(
                num_scalar_prefetch=0,
                grid=(Bp // tb,),
                in_specs=[
                    pl.BlockSpec((tb, D_in), lambda i: (i, 0)),            # x
                    pl.BlockSpec((D_in, H), lambda i: (0, 0)),             # fc_w
                    pl.BlockSpec((1, H), lambda i: (0, 0)),                # fc_b
                    pl.BlockSpec((num_blocks, 1, H), lambda i: (0, 0, 0)),   # ln_g
                    pl.BlockSpec((num_blocks, 1, H), lambda i: (0, 0, 0)),   # ln_b
                    pl.BlockSpec((num_blocks, H, H4), lambda i: (0, 0, 0)),  # w1 (resident)
                    pl.BlockSpec((num_blocks, 1, H4), lambda i: (0, 0, 0)),  # b1
                    pl.BlockSpec((num_blocks, H4, H), lambda i: (0, 0, 0)),  # w2 (resident)
                    pl.BlockSpec((num_blocks, 1, H), lambda i: (0, 0, 0)),   # b2
                    pl.BlockSpec((1, H), lambda i: (0, 0)),                # fn_g
                    pl.BlockSpec((1, H), lambda i: (0, 0)),                # fn_b
                ],
                out_specs=pl.BlockSpec((tb, H), lambda i: (i, 0)),
            ),
            compiler_params=_compiler_params(("parallel",)),
        )(*args)
    else:
        kernel = functools.partial(residual_streamed_kernel, ff_chunk=ff_chunk,
                                   compute_dtype=compute_dtype)
        out = pl.pallas_call(
            kernel,
            out_shape=jax.ShapeDtypeStruct((Bp, H), out_dtype),
            grid_spec=pltpu.PrefetchScalarGridSpec(
                num_scalar_prefetch=0,
                grid=(Bp // tb, num_blocks),
                in_specs=[
                    pl.BlockSpec((tb, D_in), lambda i, j: (i, 0)),            # x
                    pl.BlockSpec((D_in, H), lambda i, j: (0, 0)),             # fc_w
                    pl.BlockSpec((1, H), lambda i, j: (0, 0)),                # fc_b
                    pl.BlockSpec((num_blocks, 1, H), lambda i, j: (0, 0, 0)),   # ln_g (resident)
                    pl.BlockSpec((num_blocks, 1, H), lambda i, j: (0, 0, 0)),   # ln_b (resident)
                    pl.BlockSpec((None, H, H4), lambda i, j: (j, 0, 0)),      # w1 (streamed)
                    pl.BlockSpec((num_blocks, 1, H4), lambda i, j: (0, 0, 0)),  # b1 (resident)
                    pl.BlockSpec((None, H4, H), lambda i, j: (j, 0, 0)),      # w2 (streamed)
                    pl.BlockSpec((num_blocks, 1, H), lambda i, j: (0, 0, 0)),   # b2 (resident)
                    pl.BlockSpec((1, H), lambda i, j: (0, 0)),                # fn_g
                    pl.BlockSpec((1, H), lambda i, j: (0, 0)),                # fn_b
                ],
                out_specs=pl.BlockSpec((tb, H), lambda i, j: (i, 0)),
                scratch_shapes=[pltpu.VMEM((tb, H), jnp.float32)],  # hidden carry
            ),
            compiler_params=_compiler_params(("parallel", "arbitrary")),
        )(*args)

    return out[:B] if Bp != B else out


# ---------------------------------------------------------------------------
# Pure-JAX references (for correctness checking)
# ---------------------------------------------------------------------------
def _ref_layer_norm(x, g, b):
    mu = jnp.mean(x, axis=-1, keepdims=True)
    var = jnp.mean((x - mu) ** 2, axis=-1, keepdims=True)
    return (x - mu) / jnp.sqrt(var + LN_EPS) * g + b


def ref_mlp(x, p):
    h = jnp.maximum(x @ p["fc1_w"] + p["fc1_b"], 0.0)
    return jnp.maximum(h @ p["fc2_w"] + p["fc2_b"], 0.0)


def ref_residual(x, p, num_blocks):
    h = x @ p["fc_w"] + p["fc_b"]
    for i in range(num_blocks):
        y = _ref_layer_norm(h, p["ln_g"][i], p["ln_b"][i])
        y = jnp.maximum(y @ p["w1"][i] + p["b1"][i], 0.0)
        y = y @ p["w2"][i] + p["b2"][i]
        h = h + y
    return _ref_layer_norm(h, p["fn_g"], p["fn_b"])


# ---------------------------------------------------------------------------
# Deterministic parameter construction
# ---------------------------------------------------------------------------
def make_residual_params(key, input_dim, hidden_dim, num_blocks):
    ks = jax.random.split(key, 8)
    H, H4 = hidden_dim, 4 * hidden_dim
    return {
        "fc_w": 0.1 * jax.random.normal(ks[0], (input_dim, H), jnp.float32),
        "fc_b": jnp.zeros((1, H), jnp.float32),
        "ln_g": jnp.ones((num_blocks, 1, H), jnp.float32),
        "ln_b": jnp.zeros((num_blocks, 1, H), jnp.float32),
        "w1": 0.1 * jax.random.normal(ks[1], (num_blocks, H, H4), jnp.float32),
        "b1": 0.01 * jax.random.normal(ks[2], (num_blocks, 1, H4), jnp.float32),
        "w2": 0.1 * jax.random.normal(ks[3], (num_blocks, H4, H), jnp.float32),
        "b2": 0.01 * jax.random.normal(ks[4], (num_blocks, 1, H), jnp.float32),
        "fn_g": jnp.ones((1, H), jnp.float32),
        "fn_b": jnp.zeros((1, H), jnp.float32),
    }


def make_mlp_params(key, hidden_dim):
    ks = jax.random.split(key, 4)
    H, H4 = hidden_dim, 4 * hidden_dim
    return {
        "fc1_w": 0.1 * jax.random.normal(ks[0], (H, H4), jnp.float32),
        "fc1_b": 0.01 * jax.random.normal(ks[1], (1, H4), jnp.float32),
        "fc2_w": 0.1 * jax.random.normal(ks[2], (H4, H), jnp.float32),
        "fc2_b": 0.01 * jax.random.normal(ks[3], (1, H), jnp.float32),
    }


def _rel_err(a, b):
    a = jnp.asarray(a, jnp.float32)
    b = jnp.asarray(b, jnp.float32)
    return float(jnp.linalg.norm(a - b) / (jnp.linalg.norm(b) + 1e-12))


# ---------------------------------------------------------------------------
if __name__ == "__main__":
    key = jax.random.PRNGKey(0)
    kx, kp1, kp2 = jax.random.split(key, 3)

    # residual branch: SACEncoder('residual', input_dim=16, num_blocks=2, hidden_dim=128)
    # B=256 -> two 128-row batch tiles (MXU-friendly, v7x megacore on the parallel axis).
    B, D_IN, H, NUM_BLOCKS = 256, 16, 128, 2
    x_res = jax.random.normal(kx, (B, D_IN), jnp.float32)
    p_res = make_residual_params(kp1, D_IN, H, NUM_BLOCKS)
    ref_res = ref_residual(x_res, p_res, NUM_BLOCKS)

    # Default path: bf16 MXU operands, block weights VMEM-resident.
    out_res = jax.block_until_ready(sac_encoder_residual(x_res, p_res, NUM_BLOCKS))
    assert out_res.shape == (B, H)
    assert _rel_err(out_res, ref_res) < 5e-2, "residual bf16 mismatch"

    # f32 path (exact PyTorch semantics), also exercising the inner ff-chunk loop.
    out_res_f32 = jax.block_until_ready(
        sac_encoder_residual(x_res, p_res, NUM_BLOCKS,
                             compute_dtype=jnp.float32, ff_chunk=256))
    assert jnp.allclose(out_res_f32, ref_res, atol=1e-3, rtol=1e-3), "residual f32 mismatch"

    # Forced streamed fallback (large-H path) must agree too.
    out_res_st = jax.block_until_ready(
        sac_encoder_residual(x_res, p_res, NUM_BLOCKS,
                             compute_dtype=jnp.float32, variant="streamed"))
    assert jnp.allclose(out_res_st, ref_res, atol=1e-3, rtol=1e-3), "residual streamed mismatch"

    # mlp branch: SACEncoder('mlp', ..., hidden_dim=128) (input must be hidden_dim)
    x_mlp = jax.random.normal(kx, (B, H), jnp.float32)
    p_mlp = make_mlp_params(kp2, H)
    ref_m = ref_mlp(x_mlp, p_mlp)

    out_mlp = jax.block_until_ready(sac_encoder_mlp(x_mlp, p_mlp))
    assert out_mlp.shape == (B, H)
    assert _rel_err(out_mlp, ref_m) < 5e-2, "mlp bf16 mismatch"

    out_mlp_f32 = jax.block_until_ready(
        sac_encoder_mlp(x_mlp, p_mlp, compute_dtype=jnp.float32))
    assert jnp.allclose(out_mlp_f32, ref_m, atol=1e-3, rtol=1e-3), "mlp f32 mismatch"

    # Forced streamed 4H fallback (big-H / v7x path), with 2 chunks to exercise split-K.
    out_mlp_st = jax.block_until_ready(
        sac_encoder_mlp(x_mlp, p_mlp, compute_dtype=jnp.float32,
                        variant="streamed", stream_chunk=256))
    assert jnp.allclose(out_mlp_st, ref_m, atol=1e-3, rtol=1e-3), "mlp streamed mismatch"

    print("KERNEL_OK")
</pallas_src>

<mosaic_0001>
module attributes {stable_mosaic.version = 11 : i64} {
  func.func @residual_resident_kernel(%arg0: i32, %arg1: memref<128x16xf32, #tpu.memory_space<vmem>>, %arg2: memref<16x128xbf16, #tpu.memory_space<vmem>>, %arg3: memref<1x128xf32, #tpu.memory_space<vmem>>, %arg4: memref<2x1x128xf32, #tpu.memory_space<vmem>>, %arg5: memref<2x1x128xf32, #tpu.memory_space<vmem>>, %arg6: memref<2x128x512xbf16, #tpu.memory_space<vmem>>, %arg7: memref<2x1x512xf32, #tpu.memory_space<vmem>>, %arg8: memref<2x512x128xbf16, #tpu.memory_space<vmem>>, %arg9: memref<2x1x128xf32, #tpu.memory_space<vmem>>, %arg10: memref<1x128xf32, #tpu.memory_space<vmem>>, %arg11: memref<1x128xf32, #tpu.memory_space<vmem>>, %arg12: memref<128x128xf32, #tpu.memory_space<vmem>>) attributes {dimension_semantics = [#tpu.dimension_semantics<parallel>], iteration_bounds = array<i64: 2>, scalar_prefetch = 0 : i64, scratch_operands = 0 : i64, tpu.core_type = #tpu.core_type<tc>, window_params = [{transform_indices = @transform_0, window_bounds = array<i64: 128, 16>}, {pipeline_mode = #tpu.pipeline_mode<synchronous>, transform_indices = @transform_1, window_bounds = array<i64: 16, 128>}, {pipeline_mode = #tpu.pipeline_mode<synchronous>, transform_indices = @transform_2, window_bounds = array<i64: 1, 128>}, {pipeline_mode = #tpu.pipeline_mode<synchronous>, transform_indices = @transform_3, window_bounds = array<i64: 2, 1, 128>}, {pipeline_mode = #tpu.pipeline_mode<synchronous>, transform_indices = @transform_4, window_bounds = array<i64: 2, 1, 128>}, {pipeline_mode = #tpu.pipeline_mode<synchronous>, transform_indices = @transform_5, window_bounds = array<i64: 2, 128, 512>}, {pipeline_mode = #tpu.pipeline_mode<synchronous>, transform_indices = @transform_6, window_bounds = array<i64: 2, 1, 512>}, {pipeline_mode = #tpu.pipeline_mode<synchronous>, transform_indices = @transform_7, window_bounds = array<i64: 2, 512, 128>}, {pipeline_mode = #tpu.pipeline_mode<synchronous>, transform_indices = @transform_8, window_bounds = array<i64: 2, 1, 128>}, {pipeline_mode = #tpu.pipeline_mode<synchronous>, transform_indices = @transform_9, window_bounds = array<i64: 1, 128>}, {pipeline_mode = #tpu.pipeline_mode<synchronous>, transform_indices = @transform_10, window_bounds = array<i64: 1, 128>}, {transform_indices = @transform_11, window_bounds = array<i64: 128, 128>}]} {
    %c0 = arith.constant 0 : index
    %c0_0 = arith.constant 0 : index
    %0 = vector.load %arg1[%c0, %c0_0] : memref<128x16xf32, #tpu.memory_space<vmem>>, vector<128x16xf32>
    %1 = arith.truncf %0 : vector<128x16xf32> to vector<128x16xbf16>
    %c0_1 = arith.constant 0 : index
    %c0_2 = arith.constant 0 : index
    %2 = vector.load %arg2[%c0_1, %c0_2] : memref<16x128xbf16, #tpu.memory_space<vmem>>, vector<16x128xbf16>
    %cst = arith.constant dense<0.000000e+00> : vector<128x128xf32>
    %3 = tpu.matmul %1, %2, %cst {dimension_numbers = #tpu.dot_dimension_numbers<[1], [0], [0], [1], [0, 0, 1, 1], [], []>} : vector<128x16xbf16>, vector<16x128xbf16>, vector<128x128xf32> -> vector<128x128xf32>
    %c0_3 = arith.constant 0 : index
    %c0_4 = arith.constant 0 : index
    %4 = vector.load %arg3[%c0_3, %c0_4] : memref<1x128xf32, #tpu.memory_space<vmem>>, vector<1x128xf32>
    %5 = vector.broadcast %4 : vector<1x128xf32> to vector<128x128xf32>
    %6 = arith.addf %3, %5 : vector<128x128xf32>
    %c0_5 = arith.constant 0 : index
    %c0_6 = arith.constant 0 : index
    %c0_7 = arith.constant 0 : index
    %7 = vector.load %arg4[%c0_5, %c0_6, %c0_7] : memref<2x1x128xf32, #tpu.memory_space<vmem>>, vector<1x1x128xf32>
    %8 = vector.shape_cast %7 : vector<1x1x128xf32> to vector<1x128xf32>
    %c0_8 = arith.constant 0 : index
    %c0_9 = arith.constant 0 : index
    %c0_10 = arith.constant 0 : index
    %9 = vector.load %arg5[%c0_8, %c0_9, %c0_10] : memref<2x1x128xf32, #tpu.memory_space<vmem>>, vector<1x1x128xf32>
    %10 = vector.shape_cast %9 : vector<1x1x128xf32> to vector<1x128xf32>
    %cst_11 = arith.constant dense<0.000000e+00> : vector<128xf32>
    %11 = vector.multi_reduction <add>, %6, %cst_11 [1] : vector<128x128xf32> to vector<128xf32>
    %12 = vector.shape_cast %11 : vector<128xf32> to vector<128x1xf32>
    %cst_12 = arith.constant 7.812500e-03 : f32
    %13 = vector.broadcast %cst_12 : f32 to vector<128x1xf32>
    %14 = arith.mulf %12, %13 : vector<128x1xf32>
    %15 = vector.broadcast %14 : vector<128x1xf32> to vector<128x128xf32>
    %16 = arith.subf %6, %15 : vector<128x128xf32>
    %17 = arith.mulf %16, %16 : vector<128x128xf32>
    %cst_13 = arith.constant dense<0.000000e+00> : vector<128xf32>
    %18 = vector.multi_reduction <add>, %17, %cst_13 [1] : vector<128x128xf32> to vector<128xf32>
    %19 = vector.shape_cast %18 : vector<128xf32> to vector<128x1xf32>
    %cst_14 = arith.constant 7.812500e-03 : f32
    %20 = vector.broadcast %cst_14 : f32 to vector<128x1xf32>
    %21 = arith.mulf %19, %20 : vector<128x1xf32>
    %cst_15 = arith.constant 9.99999974E-6 : f32
    %22 = vector.broadcast %cst_15 : f32 to vector<128x1xf32>
    %23 = arith.addf %21, %22 : vector<128x1xf32>
    %24 = math.rsqrt %23 : vector<128x1xf32>
    %25 = vector.broadcast %24 : vector<128x1xf32> to vector<128x128xf32>
    %26 = arith.mulf %16, %25 : vector<128x128xf32>
    %27 = vector.broadcast %8 : vector<1x128xf32> to vector<128x128xf32>
    %28 = arith.mulf %26, %27 : vector<128x128xf32>
    %29 = vector.broadcast %10 : vector<1x128xf32> to vector<128x128xf32>
    %30 = arith.addf %28, %29 : vector<128x128xf32>
    %31 = arith.truncf %30 : vector<128x128xf32> to vector<128x128xbf16>
    %cst_16 = arith.constant 0.000000e+00 : f32
    %32 = vector.broadcast %cst_16 : f32 to vector<128x128xf32>
    %c0_17 = arith.constant 0 : index
    %c0_18 = arith.constant 0 : index
    %c0_19 = arith.constant 0 : index
    %33 = vector.load %arg6[%c0_17, %c0_18, %c0_19] : memref<2x128x512xbf16, #tpu.memory_space<vmem>>, vector<1x128x512xbf16>
    %34 = vector.shape_cast %33 : vector<1x128x512xbf16> to vector<128x512xbf16>
    %c0_20 = arith.constant 0 : index
    %c0_21 = arith.constant 0 : index
    %c0_22 = arith.constant 0 : index
    %35 = vector.load %arg7[%c0_20, %c0_21, %c0_22] : memref<2x1x512xf32, #tpu.memory_space<vmem>>, vector<1x1x512xf32>
    %36 = vector.shape_cast %35 : vector<1x1x512xf32> to vector<1x512xf32>
    %c0_23 = arith.constant 0 : index
    %c0_24 = arith.constant 0 : index
    %c0_25 = arith.constant 0 : index
    %37 = vector.load %arg8[%c0_23, %c0_24, %c0_25] : memref<2x512x128xbf16, #tpu.memory_space<vmem>>, vector<1x512x128xbf16>
    %38 = vector.shape_cast %37 : vector<1x512x128xbf16> to vector<512x128xbf16>
    %cst_26 = arith.constant dense<0.000000e+00> : vector<128x512xf32>
    %39 = tpu.matmul %31, %34, %cst_26 {dimension_numbers = #tpu.dot_dimension_numbers<[1], [0], [0], [1], [0, 0, 1, 1], [], []>} : vector<128x128xbf16>, vector<128x512xbf16>, vector<128x512xf32> -> vector<128x512xf32>
    %40 = vector.broadcast %36 : vector<1x512xf32> to vector<128x512xf32>
    %41 = arith.addf %39, %40 : vector<128x512xf32>
    %cst_27 = arith.constant 0.000000e+00 : f32
    %42 = vector.broadcast %cst_27 : f32 to vector<128x512xf32>
    %43 = arith.maximumf %41, %42 : vector<128x512xf32>
    %44 = arith.truncf %43 : vector<128x512xf32> to vector<128x512xbf16>
    %cst_28 = arith.constant dense<0.000000e+00> : vector<128x128xf32>
    %45 = tpu.matmul %44, %38, %cst_28 {dimension_numbers = #tpu.dot_dimension_numbers<[1], [0], [0], [1], [0, 0, 1, 1], [], []>} : vector<128x512xbf16>, vector<512x128xbf16>, vector<128x128xf32> -> vector<128x128xf32>
    %46 = arith.addf %32, %45 : vector<128x128xf32>
    %47 = arith.addf %6, %46 : vector<128x128xf32>
    %c0_29 = arith.constant 0 : index
    %c0_30 = arith.constant 0 : index
    %c0_31 = arith.constant 0 : index
    %48 = vector.load %arg9[%c0_29, %c0_30, %c0_31] : memref<2x1x128xf32, #tpu.memory_space<vmem>>, vector<1x1x128xf32>
    %49 = vector.shape_cast %48 : vector<1x1x128xf32> to vector<1x128xf32>
    %50 = vector.broadcast %49 : vector<1x128xf32> to vector<128x128xf32>
    %51 = arith.addf %47, %50 : vector<128x128xf32>
    %c1 = arith.constant 1 : index
    %c0_32 = arith.constant 0 : index
    %c0_33 = arith.constant 0 : index
    %52 = vector.load %arg4[%c1, %c0_32, %c0_33] : memref<2x1x128xf32, #tpu.memory_space<vmem>>, vector<1x1x128xf32>
    %53 = vector.shape_cast %52 : vector<1x1x128xf32> to vector<1x128xf32>
    %c1_34 = arith.constant 1 : index
    %c0_35 = arith.constant 0 : index
    %c0_36 = arith.constant 0 : index
    %54 = vector.load %arg5[%c1_34, %c0_35, %c0_36] : memref<2x1x128xf32, #tpu.memory_space<vmem>>, vector<1x1x128xf32>
    %55 = vector.shape_cast %54 : vector<1x1x128xf32> to vector<1x128xf32>
    %cst_37 = arith.constant dense<0.000000e+00> : vector<128xf32>
    %56 = vector.multi_reduction <add>, %51, %cst_37 [1] : vector<128x128xf32> to vector<128xf32>
    %57 = vector.shape_cast %56 : vector<128xf32> to vector<128x1xf32>
    %cst_38 = arith.constant 7.812500e-03 : f32
    %58 = vector.broadcast %cst_38 : f32 to vector<128x1xf32>
    %59 = arith.mulf %57, %58 : vector<128x1xf32>
    %60 = vector.broadcast %59 : vector<128x1xf32> to vector<128x128xf32>
    %61 = arith.subf %51, %60 : vector<128x128xf32>
    %62 = arith.mulf %61, %61 : vector<128x128xf32>
    %cst_39 = arith.constant dense<0.000000e+00> : vector<128xf32>
    %63 = vector.multi_reduction <add>, %62, %cst_39 [1] : vector<128x128xf32> to vector<128xf32>
    %64 = vector.shape_cast %63 : vector<128xf32> to vector<128x1xf32>
    %cst_40 = arith.constant 7.812500e-03 : f32
    %65 = vector.broadcast %cst_40 : f32 to vector<128x1xf32>
    %66 = arith.mulf %64, %65 : vector<128x1xf32>
    %cst_41 = arith.constant 9.99999974E-6 : f32
    %67 = vector.broadcast %cst_41 : f32 to vector<128x1xf32>
    %68 = arith.addf %66, %67 : vector<128x1xf32>
    %69 = math.rsqrt %68 : vector<128x1xf32>
    %70 = vector.broadcast %69 : vector<128x1xf32> to vector<128x128xf32>
    %71 = arith.mulf %61, %70 : vector<128x128xf32>
    %72 = vector.broadcast %53 : vector<1x128xf32> to vector<128x128xf32>
    %73 = arith.mulf %71, %72 : vector<128x128xf32>
    %74 = vector.broadcast %55 : vector<1x128xf32> to vector<128x128xf32>
    %75 = arith.addf %73, %74 : vector<128x128xf32>
    %76 = arith.truncf %75 : vector<128x128xf32> to vector<128x128xbf16>
    %cst_42 = arith.constant 0.000000e+00 : f32
    %77 = vector.broadcast %cst_42 : f32 to vector<128x128xf32>
    %c1_43 = arith.constant 1 : index
    %c0_44 = arith.constant 0 : index
    %c0_45 = arith.constant 0 : index
    %78 = vector.load %arg6[%c1_43, %c0_44, %c0_45] : memref<2x128x512xbf16, #tpu.memory_space<vmem>>, vector<1x128x512xbf16>
    %79 = vector.shape_cast %78 : vector<1x128x512xbf16> to vector<128x512xbf16>
    %c1_46 = arith.constant 1 : index
    %c0_47 = arith.constant 0 : index
    %c0_48 = arith.constant 0 : index
    %80 = vector.load %arg7[%c1_46, %c0_47, %c0_48] : memref<2x1x512xf32, #tpu.memory_space<vmem>>, vector<1x1x512xf32>
    %81 = vector.shape_cast %80 : vector<1x1x512xf32> to vector<1x512xf32>
    %c1_49 = arith.constant 1 : index
    %c0_50 = arith.constant 0 : index
    %c0_51 = arith.constant 0 : index
    %82 = vector.load %arg8[%c1_49, %c0_50, %c0_51] : memref<2x512x128xbf16, #tpu.memory_space<vmem>>, vector<1x512x128xbf16>
    %83 = vector.shape_cast %82 : vector<1x512x128xbf16> to vector<512x128xbf16>
    %cst_52 = arith.constant dense<0.000000e+00> : vector<128x512xf32>
    %84 = tpu.matmul %76, %79, %cst_52 {dimension_numbers = #tpu.dot_dimension_numbers<[1], [0], [0], [1], [0, 0, 1, 1], [], []>} : vector<128x128xbf16>, vector<128x512xbf16>, vector<128x512xf32> -> vector<128x512xf32>
    %85 = vector.broadcast %81 : vector<1x512xf32> to vector<128x512xf32>
    %86 = arith.addf %84, %85 : vector<128x512xf32>
    %cst_53 = arith.constant 0.000000e+00 : f32
    %87 = vector.broadcast %cst_53 : f32 to vector<128x512xf32>
    %88 = arith.maximumf %86, %87 : vector<128x512xf32>
    %89 = arith.truncf %88 : vector<128x512xf32> to vector<128x512xbf16>
    %cst_54 = arith.constant dense<0.000000e+00> : vector<128x128xf32>
    %90 = tpu.matmul %89, %83, %cst_54 {dimension_numbers = #tpu.dot_dimension_numbers<[1], [0], [0], [1], [0, 0, 1, 1], [], []>} : vector<128x512xbf16>, vector<512x128xbf16>, vector<128x128xf32> -> vector<128x128xf32>
    %91 = arith.addf %77, %90 : vector<128x128xf32>
    %92 = arith.addf %51, %91 : vector<128x128xf32>
    %c1_55 = arith.constant 1 : index
    %c0_56 = arith.constant 0 : index
    %c0_57 = arith.constant 0 : index
    %93 = vector.load %arg9[%c1_55, %c0_56, %c0_57] : memref<2x1x128xf32, #tpu.memory_space<vmem>>, vector<1x1x128xf32>
    %94 = vector.shape_cast %93 : vector<1x1x128xf32> to vector<1x128xf32>
    %95 = vector.broadcast %94 : vector<1x128xf32> to vector<128x128xf32>
    %96 = arith.addf %92, %95 : vector<128x128xf32>
    %c0_58 = arith.constant 0 : index
    %c0_59 = arith.constant 0 : index
    %97 = vector.load %arg10[%c0_58, %c0_59] : memref<1x128xf32, #tpu.memory_space<vmem>>, vector<1x128xf32>
    %c0_60 = arith.constant 0 : index
    %c0_61 = arith.constant 0 : index
    %98 = vector.load %arg11[%c0_60, %c0_61] : memref<1x128xf32, #tpu.memory_space<vmem>>, vector<1x128xf32>
    %cst_62 = arith.constant dense<0.000000e+00> : vector<128xf32>
    %99 = vector.multi_reduction <add>, %96, %cst_62 [1] : vector<128x128xf32> to vector<128xf32>
    %100 = vector.shape_cast %99 : vector<128xf32> to vector<128x1xf32>
    %cst_63 = arith.constant 7.812500e-03 : f32
    %101 = vector.broadcast %cst_63 : f32 to vector<128x1xf32>
    %102 = arith.mulf %100, %101 : vector<128x1xf32>
    %103 = vector.broadcast %102 : vector<128x1xf32> to vector<128x128xf32>
    %104 = arith.subf %96, %103 : vector<128x128xf32>
    %105 = arith.mulf %104, %104 : vector<128x128xf32>
    %cst_64 = arith.constant dense<0.000000e+00> : vector<128xf32>
    %106 = vector.multi_reduction <add>, %105, %cst_64 [1] : vector<128x128xf32> to vector<128xf32>
    %107 = vector.shape_cast %106 : vector<128xf32> to vector<128x1xf32>
    %cst_65 = arith.constant 7.812500e-03 : f32
    %108 = vector.broadcast %cst_65 : f32 to vector<128x1xf32>
    %109 = arith.mulf %107, %108 : vector<128x1xf32>
    %cst_66 = arith.constant 9.99999974E-6 : f32
    %110 = vector.broadcast %cst_66 : f32 to vector<128x1xf32>
    %111 = arith.addf %109, %110 : vector<128x1xf32>
    %112 = math.rsqrt %111 : vector<128x1xf32>
    %113 = vector.broadcast %112 : vector<128x1xf32> to vector<128x128xf32>
    %114 = arith.mulf %104, %113 : vector<128x128xf32>
    %115 = vector.broadcast %97 : vector<1x128xf32> to vector<128x128xf32>
    %116 = arith.mulf %114, %115 : vector<128x128xf32>
    %117 = vector.broadcast %98 : vector<1x128xf32> to vector<128x128xf32>
    %118 = arith.addf %116, %117 : vector<128x128xf32>
    %c0_67 = arith.constant 0 : index
    %c0_68 = arith.constant 0 : index
    %119 = vector.load %arg12[%c0_67, %c0_68] : memref<128x128xf32, #tpu.memory_space<vmem>>, vector<128x128xf32>
    tpu.vector_store %arg12[%c0_67, %c0_68], %118 {strides = array<i32>} : memref<128x128xf32, #tpu.memory_space<vmem>>, vector<128x128xf32>,
    return
  }
  func.func @transform_0(%arg0: i32) -> (i32, i32) {
    %c0_i32 = arith.constant 0 : i32
    %c0_i32_0 = arith.constant 0 : i32
    return %arg0, %c0_i32 : i32, i32
  }
  func.func @transform_1(%arg0: i32) -> (i32, i32) {
    %c0_i32 = arith.constant 0 : i32
    %c0_i32_0 = arith.constant 0 : i32
    %c0_i32_1 = arith.constant 0 : i32
    return %c0_i32, %c0_i32_0 : i32, i32
  }
  func.func @transform_2(%arg0: i32) -> (i32, i32) {
    %c0_i32 = arith.constant 0 : i32
    %c0_i32_0 = arith.constant 0 : i32
    %c0_i32_1 = arith.constant 0 : i32
    return %c0_i32, %c0_i32_0 : i32, i32
  }
  func.func @transform_3(%arg0: i32) -> (i32, i32, i32) {
    %c0_i32 = arith.constant 0 : i32
    %c0_i32_0 = arith.constant 0 : i32
    %c0_i32_1 = arith.constant 0 : i32
    %c0_i32_2 = arith.constant 0 : i32
    return %c0_i32, %c0_i32_0, %c0_i32_1 : i32, i32, i32
  }
  func.func @transform_4(%arg0: i32) -> (i32, i32, i32) {
    %c0_i32 = arith.constant 0 : i32
    %c0_i32_0 = arith.constant 0 : i32
    %c0_i32_1 = arith.constant 0 : i32
    %c0_i32_2 = arith.constant 0 : i32
    return %c0_i32, %c0_i32_0, %c0_i32_1 : i32, i32, i32
  }
  func.func @transform_5(%arg0: i32) -> (i32, i32, i32) {
    %c0_i32 = arith.constant 0 : i32
    %c0_i32_0 = arith.constant 0 : i32
    %c0_i32_1 = arith.constant 0 : i32
    %c0_i32_2 = arith.constant 0 : i32
    return %c0_i32, %c0_i32_0, %c0_i32_1 : i32, i32, i32
  }
  func.func @transform_6(%arg0: i32) -> (i32, i32, i32) {
    %c0_i32 = arith.constant 0 : i32
    %c0_i32_0 = arith.constant 0 : i32
    %c0_i32_1 = arith.constant 0 : i32
    %c0_i32_2 = arith.constant 0 : i32
    return %c0_i32, %c0_i32_0, %c0_i32_1 : i32, i32, i32
  }
  func.func @transform_7(%arg0: i32) -> (i32, i32, i32) {
    %c0_i32 = arith.constant 0 : i32
    %c0_i32_0 = arith.constant 0 : i32
    %c0_i32_1 = arith.constant 0 : i32
    %c0_i32_2 = arith.constant 0 : i32
    return %c0_i32, %c0_i32_0, %c0_i32_1 : i32, i32, i32
  }
  func.func @transform_8(%arg0: i32) -> (i32, i32, i32) {
    %c0_i32 = arith.constant 0 : i32
    %c0_i32_0 = arith.constant 0 : i32
    %c0_i32_1 = arith.constant 0 : i32
    %c0_i32_2 = arith.constant 0 : i32
    return %c0_i32, %c0_i32_0, %c0_i32_1 : i32, i32, i32
  }
  func.func @transform_9(%arg0: i32) -> (i32, i32) {
    %c0_i32 = arith.constant 0 : i32
    %c0_i32_0 = arith.constant 0 : i32
    %c0_i32_1 = arith.constant 0 : i32
    return %c0_i32, %c0_i32_0 : i32, i32
  }
  func.func @transform_10(%arg0: i32) -> (i32, i32) {
    %c0_i32 = arith.constant 0 : i32
    %c0_i32_0 = arith.constant 0 : i32
    %c0_i32_1 = arith.constant 0 : i32
    return %c0_i32, %c0_i32_0 : i32, i32
  }
  func.func @transform_11(%arg0: i32) -> (i32, i32) {
    %c0_i32 = arith.constant 0 : i32
    %c0_i32_0 = arith.constant 0 : i32
    return %arg0, %c0_i32 : i32, i32
  }
}

</mosaic_0001>

<llo_original>
// kernel: tpu_custom_call.1
$region0: #{tpu_custom_call.1}
  #allocation0 [shape = 'u32[]', space=smem, size = 0x4, offset = 0x4, fixed_abs, tag = 'smem constant byte address 0x4 - core index']
  #allocation1 [shape = 'u32[144,128]{1,0:T(1,128)}', space=vmem, size = 0x12000, scoped, tag = 'internal scratch']
  %s0 = inlined_call_operand.vmem [shape: f32[256,16], index: 0, kind: input, shape index: {}]
  %s1 = inlined_call_operand.vmem [shape: bf16[16,128], index: 1, kind: input, shape index: {}]
  %s2 = inlined_call_operand.vmem [shape: f32[1,128], index: 2, kind: input, shape index: {}]
  %s3 = inlined_call_operand.vmem [shape: f32[2,1,128], index: 3, kind: input, shape index: {}]
  %s4 = inlined_call_operand.vmem [shape: f32[2,1,128], index: 4, kind: input, shape index: {}]
  %s5 = inlined_call_operand.hbm [shape: bf16[2,128,512], index: 5, kind: input, shape index: {}]
  %s6 = inlined_call_operand.vmem [shape: f32[2,1,512], index: 6, kind: input, shape index: {}]
  %s7 = inlined_call_operand.hbm [shape: bf16[2,512,128], index: 7, kind: input, shape index: {}]
  %s8 = inlined_call_operand.vmem [shape: f32[2,1,128], index: 8, kind: input, shape index: {}]
  %s9 = inlined_call_operand.vmem [shape: f32[1,128], index: 9, kind: input, shape index: {}]
  %s10 = inlined_call_operand.vmem [shape: f32[1,128], index: 10, kind: input, shape index: {}]
  %s11 = inlined_call_operand.hbm [shape: f32[256,128], index: 11, kind: output, shape index: {}]
  %s12 = sld [smem:[#allocation0]]
  $region85: #{tpu_custom_call.1} parent=0
    _
  %s14 = ssub.s32 1, %s12
  %s15 = scalar_select 0, %s14, %s12
  $region1: #{tpu_custom_call.1} parent=0
    #allocation2 [shape = 'u8[262144]{0}', space=vmem, size = 0x40000, scoped, tag = 'input window, operand 5, single buffered']
    #allocation3 [shape = 's32[2]{0}', space=sflag, size = 0x8, scoped, tag = 'scoped memory for tpu_custom_call.1']
    #allocation4 [shape = 's32[2]{0}', space=sflag, size = 0x8, scoped, tag = 'scoped memory for tpu_custom_call.1']
    #allocation5 [shape = 'u8[262144]{0}', space=vmem, size = 0x40000, scoped, tag = 'input window, operand 7, single buffered']
    #allocation6 [shape = 's32[1]{0}', space=sflag, size = 0x4, scoped, tag = 'scoped memory for tpu_custom_call.1']
    #allocation7 [shape = 'u8[131072]{0}', space=vmem, size = 0x20000, scoped, tag = 'output window, operand 0']
    %16 = vsyncpa [#allocation3], 0
    %17 = vsyncpa [#allocation6], 0
    %18 = vsyncpa [#allocation4], 0
    %s19 = scalar_lea.sflag [#allocation4], 1
    %20 = vsyncpa %s19, 0
    loop: start=0, step=1, limit=4
    $region2: #{tpu_custom_call.1} parent=1 // loop_pre_header
      _
    $region3: #{tpu_custom_call.1} parent=1 // loop_header
      %s22 = sphi 0, %s26
      %p23 = scmp.ge.s32.totalorder %s22, 4
      %s32 = sphi 0, %s34
      %s35 = sphi 0, %s32
      %s36 = sphi 0, %s35
      %s52 = sphi 0, %s36
      %s56 = sphi 0, %s56
      %s58 = sphi 0, %s56
      %s59 = sphi 0, %s58
      %s73 = sphi 0, %s59
      %s77 = sphi 0, %s77
      %s79 = sphi 0, %s77
      %s80 = sphi 0, %s79
      %s94 = sphi 0, %s80
      %s98 = sphi 0, %s98
      %s100 = sphi 0, %s98
      %s101 = sphi 0, %s100
      %s115 = sphi 0, %s101
      %s119 = sphi 0, %s119
      %s121 = sphi 0, %s119
      %s122 = sphi 0, %s121
      %s136 = sphi 0, %s122
      %s140 = sphi 0, %s140
      %s142 = sphi 0, %s140
      %s143 = sphi 0, %s142
      %s157 = sphi 0, %s143
      %s161 = sphi 0, %s161
      %s163 = sphi 0, %s161
      %s164 = sphi 0, %s163
      %s178 = sphi 0, %s164
      %s182 = sphi 0, %s182
      %s184 = sphi 0, %s182
      %s185 = sphi 0, %s184
      %s199 = sphi 0, %s185
      %s203 = sphi 0, %s203
      %s205 = sphi 0, %s203
      %s206 = sphi 0, %s205
      %s220 = sphi 0, %s206
      %s224 = sphi 0, %s224
      %s226 = sphi 0, %s224
      %s227 = sphi 0, %s226
      %s241 = sphi 0, %s227
      %s245 = sphi 0, %s245
      %s247 = sphi 0, %s245
      %s248 = sphi 0, %s247
      %s262 = sphi 0, %s248
      %s268 = sphi 0, %s270
      %s271 = sphi 0, %s268
      %s272 = sphi 0, %s271
      %s288 = sphi 0, %s272
    $region4: #{tpu_custom_call.1} parent=1 // loop_header_branch
      %25 = sbr.rel (%p23) target = $region8
    $region5: #{tpu_custom_call.1} parent=1 // loop_body
      %s27 = ssub.s32 %s22, 1
      %s28 = ssub.s32 %s22, 2
      %s29 = sadd.s32 %s22, 1
      %s30 = ssub.s32 %s22, %s29
      %p31 = scmp.eq.s32.totalorder %s30, 0
      %s33 = sadd.s32 %s32, 1
      %s34 = scalar_select %p31, %s32, %s33
      %p37 = pneg %p31
      %p38 = scmp.eq.s32.totalorder %s22, 1
      %p39 = por %p37, %p38
      %p40 = scmp.ne.s32.totalorder %s32, %s35
      %p41 = scmp.eq.s32.totalorder %s22, 0
      %p42 = por %p40, %p41
      %p43 = scmp.ne.s32.totalorder %s32, %s35
      %p44 = scmp.eq.s32.totalorder %s27, 1
      %p45 = por %p43, %p44
      %p46 = scmp.ne.s32.totalorder %s35, %s36
      %p47 = scmp.eq.s32.totalorder %s27, 0
      %p48 = por %p46, %p47
      %p49 = scmp.ne.s32.totalorder %s35, %s36
      %p50 = scmp.eq.s32.totalorder %s28, 1
      %p51 = por %p49, %p50
      %p53 = scmp.ne.s32.totalorder %s36, %s52
      %p54 = scmp.eq.s32.totalorder %s28, 0
      %p55 = por %p53, %p54
      %s57 = sadd.s32 %s56, 1
      %p60 = scmp.eq.s32.totalorder %s22, 1
      %p61 = scmp.ne.s32.totalorder %s56, %s58
      %p62 = scmp.eq.s32.totalorder %s22, 0
      %p63 = por %p61, %p62
      %p64 = scmp.ne.s32.totalorder %s56, %s58
      %p65 = scmp.eq.s32.totalorder %s27, 1
      %p66 = por %p64, %p65
      %p67 = scmp.ne.s32.totalorder %s58, %s59
      %p68 = scmp.eq.s32.totalorder %s27, 0
      %p69 = por %p67, %p68
      %p70 = scmp.ne.s32.totalorder %s58, %s59
      %p71 = scmp.eq.s32.totalorder %s28, 1
      %p72 = por %p70, %p71
      %p74 = scmp.ne.s32.totalorder %s59, %s73
      %p75 = scmp.eq.s32.totalorder %s28, 0
      %p76 = por %p74, %p75
      %s78 = sadd.s32 %s77, 1
      %p81 = scmp.eq.s32.totalorder %s22, 1
      %p82 = scmp.ne.s32.totalorder %s77, %s79
      %p83 = scmp.eq.s32.totalorder %s22, 0
      %p84 = por %p82, %p83
      %p85 = scmp.ne.s32.totalorder %s77, %s79
      %p86 = scmp.eq.s32.totalorder %s27, 1
      %p87 = por %p85, %p86
      %p88 = scmp.ne.s32.totalorder %s79, %s80
      %p89 = scmp.eq.s32.totalorder %s27, 0
      %p90 = por %p88, %p89
      %p91 = scmp.ne.s32.totalorder %s79, %s80
      %p92 = scmp.eq.s32.totalorder %s28, 1
      %p93 = por %p91, %p92
      %p95 = scmp.ne.s32.totalorder %s80, %s94
      %p96 = scmp.eq.s32.totalorder %s28, 0
      %p97 = por %p95, %p96
      %s99 = sadd.s32 %s98, 1
      %p102 = scmp.eq.s32.totalorder %s22, 1
      %p103 = scmp.ne.s32.totalorder %s98, %s100
      %p104 = scmp.eq.s32.totalorder %s22, 0
      %p105 = por %p103, %p104
      %p106 = scmp.ne.s32.totalorder %s98, %s100
      %p107 = scmp.eq.s32.totalorder %s27, 1
      %p108 = por %p106, %p107
      %p109 = scmp.ne.s32.totalorder %s100, %s101
      %p110 = scmp.eq.s32.totalorder %s27, 0
      %p111 = por %p109, %p110
      %p112 = scmp.ne.s32.totalorder %s100, %s101
      %p113 = scmp.eq.s32.totalorder %s28, 1
      %p114 = por %p112, %p113
      %p116 = scmp.ne.s32.totalorder %s101, %s115
      %p117 = scmp.eq.s32.totalorder %s28, 0
      %p118 = por %p116, %p117
      %s120 = sadd.s32 %s119, 1
      %p123 = scmp.eq.s32.totalorder %s22, 1
      %p124 = scmp.ne.s32.totalorder %s119, %s121
      %p125 = scmp.eq.s32.totalorder %s22, 0
      %p126 = por %p124, %p125
      %p127 = scmp.ne.s32.totalorder %s119, %s121
      %p128 = scmp.eq.s32.totalorder %s27, 1
      %p129 = por %p127, %p128
      %p130 = scmp.ne.s32.totalorder %s121, %s122
      %p131 = scmp.eq.s32.totalorder %s27, 0
      %p132 = por %p130, %p131
      %p133 = scmp.ne.s32.totalorder %s121, %s122
      %p134 = scmp.eq.s32.totalorder %s28, 1
      %p135 = por %p133, %p134
      %p137 = scmp.ne.s32.totalorder %s122, %s136
      %p138 = scmp.eq.s32.totalorder %s28, 0
      %p139 = por %p137, %p138
      %s141 = sadd.s32 %s140, 1
      %p144 = scmp.eq.s32.totalorder %s22, 1
      %p145 = scmp.ne.s32.totalorder %s140, %s142
      %p146 = scmp.eq.s32.totalorder %s22, 0
      %p147 = por %p145, %p146
      %p148 = scmp.ne.s32.totalorder %s140, %s142
      %p149 = scmp.eq.s32.totalorder %s27, 1
      %p150 = por %p148, %p149
      %p151 = scmp.ne.s32.totalorder %s142, %s143
      %p152 = scmp.eq.s32.totalorder %s27, 0
      %p153 = por %p151, %p152
      %p154 = scmp.ne.s32.totalorder %s142, %s143
      %p155 = scmp.eq.s32.totalorder %s28, 1
      %p156 = por %p154, %p155
      %p158 = scmp.ne.s32.totalorder %s143, %s157
      %p159 = scmp.eq.s32.totalorder %s28, 0
      %p160 = por %p158, %p159
      %s162 = sadd.s32 %s161, 1
      %p165 = scmp.eq.s32.totalorder %s22, 1
      %p166 = scmp.ne.s32.totalorder %s161, %s163
      %p167 = scmp.eq.s32.totalorder %s22, 0
      %p168 = por %p166, %p167
      %p169 = scmp.ne.s32.totalorder %s161, %s163
      %p170 = scmp.eq.s32.totalorder %s27, 1
      %p171 = por %p169, %p170
      %p172 = scmp.ne.s32.totalorder %s163, %s164
      %p173 = scmp.eq.s32.totalorder %s27, 0
      %p174 = por %p172, %p173
      %p175 = scmp.ne.s32.totalorder %s163, %s164
      %p176 = scmp.eq.s32.totalorder %s28, 1
      %p177 = por %p175, %p176
      %p179 = scmp.ne.s32.totalorder %s164, %s178
      %p180 = scmp.eq.s32.totalorder %s28, 0
      %p181 = por %p179, %p180
      %s183 = sadd.s32 %s182, 1
      %p186 = scmp.eq.s32.totalorder %s22, 1
      %p187 = scmp.ne.s32.totalorder %s182, %s184
      %p188 = scmp.eq.s32.totalorder %s22, 0
      %p189 = por %p187, %p188
      %p190 = scmp.ne.s32.totalorder %s182, %s184
      %p191 = scmp.eq.s32.totalorder %s27, 1
      %p192 = por %p190, %p191
      %p193 = scmp.ne.s32.totalorder %s184, %s185
      %p194 = scmp.eq.s32.totalorder %s27, 0
      %p195 = por %p193, %p194
      %p196 = scmp.ne.s32.totalorder %s184, %s185
      %p197 = scmp.eq.s32.totalorder %s28, 1
      %p198 = por %p196, %p197
      %p200 = scmp.ne.s32.totalorder %s185, %s199
      %p201 = scmp.eq.s32.totalorder %s28, 0
      %p202 = por %p200, %p201
      %s204 = sadd.s32 %s203, 1
      %p207 = scmp.eq.s32.totalorder %s22, 1
      %p208 = scmp.ne.s32.totalorder %s203, %s205
      %p209 = scmp.eq.s32.totalorder %s22, 0
      %p210 = por %p208, %p209
      %p211 = scmp.ne.s32.totalorder %s203, %s205
      %p212 = scmp.eq.s32.totalorder %s27, 1
      %p213 = por %p211, %p212
      %p214 = scmp.ne.s32.totalorder %s205, %s206
      %p215 = scmp.eq.s32.totalorder %s27, 0
      %p216 = por %p214, %p215
      %p217 = scmp.ne.s32.totalorder %s205, %s206
      %p218 = scmp.eq.s32.totalorder %s28, 1
      %p219 = por %p217, %p218
      %p221 = scmp.ne.s32.totalorder %s206, %s220
      %p222 = scmp.eq.s32.totalorder %s28, 0
      %p223 = por %p221, %p222
      %s225 = sadd.s32 %s224, 1
      %p228 = scmp.eq.s32.totalorder %s22, 1
      %p229 = scmp.ne.s32.totalorder %s224, %s226
      %p230 = scmp.eq.s32.totalorder %s22, 0
      %p231 = por %p229, %p230
      %p232 = scmp.ne.s32.totalorder %s224, %s226
      %p233 = scmp.eq.s32.totalorder %s27, 1
      %p234 = por %p232, %p233
      %p235 = scmp.ne.s32.totalorder %s226, %s227
      %p236 = scmp.eq.s32.totalorder %s27, 0
      %p237 = por %p235, %p236
      %p238 = scmp.ne.s32.totalorder %s226, %s227
      %p239 = scmp.eq.s32.totalorder %s28, 1
      %p240 = por %p238, %p239
      %p242 = scmp.ne.s32.totalorder %s227, %s241
      %p243 = scmp.eq.s32.totalorder %s28, 0
      %p244 = por %p242, %p243
      %s246 = sadd.s32 %s245, 1
      %p249 = scmp.eq.s32.totalorder %s22, 1
      %p250 = scmp.ne.s32.totalorder %s245, %s247
      %p251 = scmp.eq.s32.totalorder %s22, 0
      %p252 = por %p250, %p251
      %p253 = scmp.ne.s32.totalorder %s245, %s247
      %p254 = scmp.eq.s32.totalorder %s27, 1
      %p255 = por %p253, %p254
      %p256 = scmp.ne.s32.totalorder %s247, %s248
      %p257 = scmp.eq.s32.totalorder %s27, 0
      %p258 = por %p256, %p257
      %p259 = scmp.ne.s32.totalorder %s247, %s248
      %p260 = scmp.eq.s32.totalorder %s28, 1
      %p261 = por %p259, %p260
      %p263 = scmp.ne.s32.totalorder %s248, %s262
      %p264 = scmp.eq.s32.totalorder %s28, 0
      %p265 = por %p263, %p264
      %s266 = ssub.s32 %s22, %s29
      %p267 = scmp.eq.s32.totalorder %s266, 0
      %s269 = sadd.s32 %s268, 1
      %s270 = scalar_select %p267, %s268, %s269
      %p273 = pneg %p267
      %p274 = scmp.eq.s32.totalorder %s22, 1
      %p275 = por %p273, %p274
      %p276 = scmp.ne.s32.totalorder %s268, %s271
      %p277 = scmp.eq.s32.totalorder %s22, 0
      %p278 = por %p276, %p277
      %p279 = scmp.ne.s32.totalorder %s268, %s271
      %p280 = scmp.eq.s32.totalorder %s27, 1
      %p281 = por %p279, %p280
      %p282 = scmp.ne.s32.totalorder %s271, %s272
      %p283 = scmp.eq.s32.totalorder %s27, 0
      %p284 = por %p282, %p283
      %p285 = scmp.ne.s32.totalorder %s271, %s272
      %p286 = scmp.eq.s32.totalorder %s28, 1
      %p287 = por %p285, %p286
      %p289 = scmp.ne.s32.totalorder %s272, %s288
      %p290 = scmp.eq.s32.totalorder %s28, 0
      %p291 = por %p289, %p290
      %p292 = scmp.le.s32.totalorder 1, %s22
      %p293 = scmp.lt.s32.totalorder %s22, 3
      %p294 = pnand %p292, %p293
      %p295 = pneg %p294
      // Predicated region
      $region9: #{tpu_custom_call.1} parent=5 // pred_check
        _
      $region10: #{tpu_custom_call.1} parent=5 // pred_check_branch
        %297 = sbr.rel (%p294) target = $region12
      $region11: #{tpu_custom_call.1} parent=5 // pred_region
        %s298 = ssub.s32 %s22, 1
        // Predicated region
        $region13: #{tpu_custom_call.1} parent=11 // pred_check
          %p299 = pneg %p69
        $region14: #{tpu_custom_call.1} parent=11 // pred_check_branch
          %301 = sbr.rel (%p299) target = $region16
        $region15: #{tpu_custom_call.1} parent=11 // pred_region
          _
        $region16: #{tpu_custom_call.1} parent=11 // pred_fallthru
          _
        // Predicated region
        $region17: #{tpu_custom_call.1} parent=11 // pred_check
          %p302 = pneg %p90
        $region18: #{tpu_custom_call.1} parent=11 // pred_check_branch
          %304 = sbr.rel (%p302) target = $region20
        $region19: #{tpu_custom_call.1} parent=11 // pred_region
          _
        $region20: #{tpu_custom_call.1} parent=11 // pred_fallthru
          _
        // Predicated region
        $region21: #{tpu_custom_call.1} parent=11 // pred_check
          %p305 = pneg %p111
        $region22: #{tpu_custom_call.1} parent=11 // pred_check_branch
          %307 = sbr.rel (%p305) target = $region24
        $region23: #{tpu_custom_call.1} parent=11 // pred_region
          _
        $region24: #{tpu_custom_call.1} parent=11 // pred_fallthru
          _
        // Predicated region
        $region25: #{tpu_custom_call.1} parent=11 // pred_check
          %p308 = pneg %p132
        $region26: #{tpu_custom_call.1} parent=11 // pred_check_branch
          %310 = sbr.rel (%p308) target = $region28
        $region27: #{tpu_custom_call.1} parent=11 // pred_region
          _
        $region28: #{tpu_custom_call.1} parent=11 // pred_fallthru
          _
        // Predicated region
        $region29: #{tpu_custom_call.1} parent=11 // pred_check
          %p311 = pneg %p153
        $region30: #{tpu_custom_call.1} parent=11 // pred_check_branch
          %313 = sbr.rel (%p311) target = $region32
        $region31: #{tpu_custom_call.1} parent=11 // pred_region
          %s315 = ssub.s32 8192, 8192
          %316 = vsyncadd [#allocation3], %s315
          %s317 = sshll.u32 [#allocation2], 4
          %s318 = int_to_ptr.vmem [resolvable:$true] %s317
          %323 = dma.hbm_to_vmem [thread:$0]  %s5, 8192, %s318, [#allocation3], 256, 256, 16
        $region32: #{tpu_custom_call.1} parent=11 // pred_fallthru
          _
        // Predicated region
        $region33: #{tpu_custom_call.1} parent=11 // pred_check
          %p324 = pneg %p174
        $region34: #{tpu_custom_call.1} parent=11 // pred_check_branch
          %326 = sbr.rel (%p324) target = $region36
        $region35: #{tpu_custom_call.1} parent=11 // pred_region
          _
        $region36: #{tpu_custom_call.1} parent=11 // pred_fallthru
          _
        // Predicated region
        $region37: #{tpu_custom_call.1} parent=11 // pred_check
          %p327 = pneg %p195
        $region38: #{tpu_custom_call.1} parent=11 // pred_check_branch
          %329 = sbr.rel (%p327) target = $region40
        $region39: #{tpu_custom_call.1} parent=11 // pred_region
          %s331 = ssub.s32 8192, 8192
          %332 = vsyncadd [#allocation6], %s331
          %s333 = sshll.u32 [#allocation5], 4
          %s334 = int_to_ptr.vmem [resolvable:$true] %s333
          %339 = dma.hbm_to_vmem [thread:$0]  %s7, 8192, %s334, [#allocation6], 64, 64, 4
        $region40: #{tpu_custom_call.1} parent=11 // pred_fallthru
          _
        // Predicated region
        $region41: #{tpu_custom_call.1} parent=11 // pred_check
          %p340 = pneg %p216
        $region42: #{tpu_custom_call.1} parent=11 // pred_check_branch
          %342 = sbr.rel (%p340) target = $region44
        $region43: #{tpu_custom_call.1} parent=11 // pred_region
          _
        $region44: #{tpu_custom_call.1} parent=11 // pred_fallthru
          _
        // Predicated region
        $region45: #{tpu_custom_call.1} parent=11 // pred_check
          %p343 = pneg %p237
        $region46: #{tpu_custom_call.1} parent=11 // pred_check_branch
          %345 = sbr.rel (%p343) target = $region48
        $region47: #{tpu_custom_call.1} parent=11 // pred_region
          _
        $region48: #{tpu_custom_call.1} parent=11 // pred_fallthru
          _
        // Predicated region
        $region49: #{tpu_custom_call.1} parent=11 // pred_check
          %p346 = pneg %p258
        $region50: #{tpu_custom_call.1} parent=11 // pred_check_branch
          %348 = sbr.rel (%p346) target = $region52
        $region51: #{tpu_custom_call.1} parent=11 // pred_region
          _
        $region52: #{tpu_custom_call.1} parent=11 // pred_fallthru
          _
      $region12: #{tpu_custom_call.1} parent=5 // pred_fallthru
        _
      %p349 = scmp.lt.s32.totalorder %s22, 2
      // Predicated region
      $region53: #{tpu_custom_call.1} parent=5 // pred_check
        %p350 = pneg %p349
      $region54: #{tpu_custom_call.1} parent=5 // pred_check_branch
        %352 = sbr.rel (%p350) target = $region56
      $region55: #{tpu_custom_call.1} parent=5 // pred_region
        // Predicated region
        $region57: #{tpu_custom_call.1} parent=55 // pred_check
          %p353 = pneg %p42
        $region58: #{tpu_custom_call.1} parent=55 // pred_check_branch
          %355 = sbr.rel (%p353) target = $region60
        $region59: #{tpu_custom_call.1} parent=55 // pred_region
          %s356 = smul.u32 16, %s22
          %p357 = scmp.lt.s32.totalorder %s356, 31
          %s358 = scalar_select %p357, %s356, 31
          %s359 = smul.addr %s358, 8
          %s360 = scalar_lea.vmem %s0, %s359
          %s361 = smul.u32 16, %s22
        $region60: #{tpu_custom_call.1} parent=55 // pred_fallthru
          _
      $region56: #{tpu_custom_call.1} parent=5 // pred_fallthru
        _
      %p362 = scmp.le.s32.totalorder 1, %s22
      %p363 = scmp.lt.s32.totalorder %s22, 3
      %p364 = pnand %p362, %p363
      %p365 = pneg %p364
      // Predicated region
      $region61: #{tpu_custom_call.1} parent=5 // pred_check
        _
      $region62: #{tpu_custom_call.1} parent=5 // pred_check_branch
        %367 = sbr.rel (%p364) target = $region64
      $region63: #{tpu_custom_call.1} parent=5 // pred_region
        %s368 = ssub.s32 %s22, 1
        // Predicated region
        $region65: #{tpu_custom_call.1} parent=63 // pred_check
          %p369 = pneg %p153
        $region66: #{tpu_custom_call.1} parent=63 // pred_check_branch
          %371 = sbr.rel (%p369) target = $region68
        $region67: #{tpu_custom_call.1} parent=63 // pred_region
          %372 = dma.done [#allocation3], 8192
        $region68: #{tpu_custom_call.1} parent=63 // pred_fallthru
          _
        // Predicated region
        $region69: #{tpu_custom_call.1} parent=63 // pred_check
          %p373 = pneg %p195
        $region70: #{tpu_custom_call.1} parent=63 // pred_check_branch
          %375 = sbr.rel (%p373) target = $region72
        $region71: #{tpu_custom_call.1} parent=63 // pred_region
          %376 = dma.done [#allocation6], 8192
        $region72: #{tpu_custom_call.1} parent=63 // pred_fallthru
          _
        %s377 = smul.u32 16, %s27
        %p378 = scmp.lt.s32.totalorder %s377, 31
        %s379 = scalar_select %p378, %s377, 31
        %s380 = smul.addr %s379, 8
        %s381 = scalar_lea.vmem %s0, %s380
        %p382 = pneg %p48
        %p383 = pneg %p45
        %p384 = pneg %p69
        %p385 = pneg %p66
        %p386 = pneg %p90
        %p387 = pneg %p87
        %p388 = pneg %p111
        %p389 = pneg %p108
        %p390 = pneg %p132
        %p391 = pneg %p129
        %p392 = pneg %p153
        %p393 = pneg %p150
        %p394 = pneg %p174
        %p395 = pneg %p171
        %p396 = pneg %p195
        %p397 = pneg %p192
        %p398 = pneg %p216
        %p399 = pneg %p213
        %p400 = pneg %p237
        %p401 = pneg %p234
        %p402 = pneg %p258
        %p403 = pneg %p255
        %p404 = pneg %p284
        %p405 = pneg %p281
        %s406 = sand.u32 %s271, 1
        %s407 = scalar_lea.sflag [#allocation4], %s406
        %s408 = sand.u32 %s271, 1
        %s409 = smul.addr %s408, 128
        %s410 = scalar_lea.vmem [#allocation7], %s409
        %s411 = smul.u32 16, %s27
        %p412 = scmp.lt.s32.totalorder %s411, 31
        %s413 = scalar_select %p412, %s411, 31
        %s414 = smul.addr %s413, 8
        %s415 = scalar_lea.vmem %s0, %s414
        %s416 = smul.u32 16, %s27
        %s417 = smul.u32 16, %s27
        %v419 = vld [vmem:[%s415] sm:$0xff]
        %v420 = vld [vmem:[%s415 + $0x8] sm:$0xff]
        %v421 = vld [vmem:[%s415 + $0x10] sm:$0xff]
        %v422 = vld [vmem:[%s415 + $0x18] sm:$0xff]
        %v423 = vld [vmem:[%s415 + $0x20] sm:$0xff]
        %v424 = vld [vmem:[%s415 + $0x28] sm:$0xff]
        %v425 = vld [vmem:[%s415 + $0x30] sm:$0xff]
        %v426 = vld [vmem:[%s415 + $0x38] sm:$0xff]
        %v427 = vld [vmem:[%s415 + $0x40] sm:$0xff]
        %v428 = vld [vmem:[%s415 + $0x48] sm:$0xff]
        %v429 = vld [vmem:[%s415 + $0x50] sm:$0xff]
        %v430 = vld [vmem:[%s415 + $0x58] sm:$0xff]
        %v431 = vld [vmem:[%s415 + $0x60] sm:$0xff]
        %v432 = vld [vmem:[%s415 + $0x68] sm:$0xff]
        %v433 = vld [vmem:[%s415 + $0x70] sm:$0xff]
        %v434 = vld [vmem:[%s415 + $0x78] sm:$0xff]
        %v435 = vpack.c.bf16 %v420, %v419
        %v436 = vpack.c.bf16 %v422, %v421
        %v437 = vpack.c.bf16 %v424, %v423
        %v438 = vpack.c.bf16 %v426, %v425
        %v439 = vpack.c.bf16 %v428, %v427
        %v440 = vpack.c.bf16 %v430, %v429
        %v441 = vpack.c.bf16 %v432, %v431
        %v442 = vpack.c.bf16 %v434, %v433
        %v443 = vld [vmem:[%s1] sm:$0xf]
        %v444 = vld [vmem:[%s1 + $0x4] sm:$0xf]
        %v445 = vld [vmem:[%s2] sm:$0x1]
        %v447 = vlaneseq
        %v448 = vshrl.u32 %v447, 7
        %v449 = vsub.s32 0, %v448
        %v450 = vrot.slane %v445, %v449
        %v454 = vunpack.c.l.b16 %v443
        %v455 = vunpack.c.l.b16 %v444
        %v456 = vpack.c.b16 %v455, %v454
        %vm458 = vcmask 130048
        %v460 = vsel %vm458, %v435, 0
        %v463 = vsel %vm458, %v436, 0
        %v466 = vsel %vm458, %v437, 0
        %v469 = vsel %vm458, %v438, 0
        %v472 = vsel %vm458, %v439, 0
        %v475 = vsel %vm458, %v440, 0
        %v478 = vsel %vm458, %v441, 0
        %v481 = vsel %vm458, %v442, 0
        %483 = vmatprep.subr.bf16.mxu0 0
        %484 = vmatpush1.bf16.msra.mxu0 %v456
        %485 = vmatprep.subr.bf16.mxu0 0
        %486 = vmatpush1.bf16.msra.mxu0 0
        %487 = vmatprep.subr.bf16.mxu0 0
        %488 = vmatpush1.bf16.msra.mxu0 0
        %489 = vmatprep.subr.bf16.mxu0 0
        %490 = vmatpush1.bf16.msra.mxu0 0
        %491 = vmatprep.subr.bf16.mxu0 0
        %492 = vmatpush1.bf16.msra.mxu0 0
        %493 = vmatprep.subr.bf16.mxu0 0
        %494 = vmatpush1.bf16.msra.mxu0 0
        %495 = vmatprep.subr.bf16.mxu0 0
        %496 = vmatpush1.bf16.msra.mxu0 0
        %497 = vmatprep.subr.bf16.mxu0 0
        %498 = vmatpush1.bf16.msra.mxu0 0
        %499 = vmatprep.subr.bf16.mxu0 0
        %500 = vmatpush1.bf16.msra.mxu0 0
        %501 = vmatprep.subr.bf16.mxu0 0
        %502 = vmatpush1.bf16.msra.mxu0 0
        %503 = vmatprep.subr.bf16.mxu0 0
        %504 = vmatpush1.bf16.msra.mxu0 0
        %505 = vmatprep.subr.bf16.mxu0 0
        %506 = vmatpush1.bf16.msra.mxu0 0
        %507 = vmatprep.subr.bf16.mxu0 0
        %508 = vmatpush1.bf16.msra.mxu0 0
        %509 = vmatprep.subr.bf16.mxu0 0
        %510 = vmatpush1.bf16.msra.mxu0 0
        %511 = vmatprep.subr.bf16.mxu0 0
        %512 = vmatpush1.bf16.msra.mxu0 0
        %513 = vmatprep.subr.bf16.mxu0 0
        %514 = vmatpush1.bf16.msra.mxu0 0
        %515 = vmatprep.mubr.bf16.mxu0 0
        %516 = vmatmul.mubr.bf16.gmra.mrb[0].mxu0 %v460
        %v517 = vpop.f32.mrb[0].mxu0
        %v518 = vadd.f32 %v450, %v517
        %v519 = vpop.f32.mrb[0].mxu0
        %v520 = vpop.f32.mrb[0].mxu0
        %v521 = vadd.f32 %v450, %v520
        %v522 = vpop.f32.mrb[0].mxu0
        %523 = vmatprep.mubr.bf16.mxu0 0
        %524 = vmatmul.mubr.bf16.gmra.mrb[0].mxu0 %v463
        %v525 = vpop.f32.mrb[0].mxu0
        %v526 = vadd.f32 %v450, %v525
        %v527 = vpop.f32.mrb[0].mxu0
        %v528 = vpop.f32.mrb[0].mxu0
        %v529 = vadd.f32 %v450, %v528
        %v530 = vpop.f32.mrb[0].mxu0
        %531 = vmatprep.mubr.bf16.mxu0 0
        %532 = vmatmul.mubr.bf16.gmra.mrb[0].mxu0 %v466
        %v533 = vpop.f32.mrb[0].mxu0
        %v534 = vadd.f32 %v450, %v533
        %v535 = vpop.f32.mrb[0].mxu0
        %v536 = vpop.f32.mrb[0].mxu0
        %v537 = vadd.f32 %v450, %v536
        %v538 = vpop.f32.mrb[0].mxu0
        %539 = vmatprep.mubr.bf16.mxu0 0
        %540 = vmatmul.mubr.bf16.gmra.mrb[0].mxu0 %v469
        %v541 = vpop.f32.mrb[0].mxu0
        %v542 = vadd.f32 %v450, %v541
        %v543 = vpop.f32.mrb[0].mxu0
        %v544 = vpop.f32.mrb[0].mxu0
        %v545 = vadd.f32 %v450, %v544
        %v546 = vpop.f32.mrb[0].mxu0
        %547 = vmatprep.mubr.bf16.mxu0 0
        %548 = vmatmul.mubr.bf16.gmra.mrb[0].mxu0 %v472
        %v549 = vpop.f32.mrb[0].mxu0
        %v550 = vadd.f32 %v450, %v549
        %v551 = vpop.f32.mrb[0].mxu0
        %v552 = vpop.f32.mrb[0].mxu0
        %v553 = vadd.f32 %v450, %v552
        %v554 = vpop.f32.mrb[0].mxu0
        %555 = vmatprep.mubr.bf16.mxu0 0
        %556 = vmatmul.mubr.bf16.gmra.mrb[0].mxu0 %v475
        %v557 = vpop.f32.mrb[0].mxu0
        %v558 = vadd.f32 %v450, %v557
        %v559 = vpop.f32.mrb[0].mxu0
        %v560 = vpop.f32.mrb[0].mxu0
        %v561 = vadd.f32 %v450, %v560
        %v562 = vpop.f32.mrb[0].mxu0
        %563 = vmatprep.mubr.bf16.mxu0 0
        %564 = vmatmul.mubr.bf16.gmra.mrb[0].mxu0 %v478
        %v565 = vpop.f32.mrb[0].mxu0
        %v566 = vadd.f32 %v450, %v565
        %v567 = vpop.f32.mrb[0].mxu0
        %v568 = vpop.f32.mrb[0].mxu0
        %v569 = vadd.f32 %v450, %v568
        %v570 = vpop.f32.mrb[0].mxu0
        %571 = vmatprep.mubr.bf16.mxu0 0
        %572 = vmatmul.mubr.bf16.gmra.mrb[0].mxu0 %v481
        %v573 = vpop.f32.mrb[0].mxu0
        %v574 = vadd.f32 %v450, %v573
        %v575 = vpop.f32.mrb[0].mxu0
        %v576 = vpop.f32.mrb[0].mxu0
        %v577 = vadd.f32 %v450, %v576
        %v578 = vpop.f32.mrb[0].mxu0
        %579 = vdwg.mxu0
        %v580 = vld [vmem:[%s3] sm:$0x1]
        %v581 = vld [vmem:[%s4] sm:$0x1]
        %582 = vadd.xlane.f32.xlu0 %v518
        %v583 = vpop.xlane.xlu0 %582
        %584 = vadd.xlane.f32.xlu0 %v521
        %v585 = vpop.xlane.xlu0 %584
        %586 = vadd.xlane.f32.xlu0 %v526
        %v587 = vpop.xlane.xlu0 %586
        %588 = vadd.xlane.f32.xlu0 %v529
        %v589 = vpop.xlane.xlu0 %588
        %590 = vadd.xlane.f32.xlu0 %v534
        %v591 = vpop.xlane.xlu0 %590
        %592 = vadd.xlane.f32.xlu0 %v537
        %v593 = vpop.xlane.xlu0 %592
        %594 = vadd.xlane.f32.xlu0 %v542
        %v595 = vpop.xlane.xlu0 %594
        %596 = vadd.xlane.f32.xlu0 %v545
        %v597 = vpop.xlane.xlu0 %596
        %598 = vadd.xlane.f32.xlu0 %v550
        %v599 = vpop.xlane.xlu0 %598
        %600 = vadd.xlane.f32.xlu0 %v553
        %v601 = vpop.xlane.xlu0 %600
        %602 = vadd.xlane.f32.xlu0 %v558
        %v603 = vpop.xlane.xlu0 %602
        %604 = vadd.xlane.f32.xlu0 %v561
        %v605 = vpop.xlane.xlu0 %604
        %606 = vadd.xlane.f32.xlu0 %v566
        %v607 = vpop.xlane.xlu0 %606
        %608 = vadd.xlane.f32.xlu0 %v569
        %v609 = vpop.xlane.xlu0 %608
        %610 = vadd.xlane.f32.xlu0 %v574
        %v611 = vpop.xlane.xlu0 %610
        %612 = vadd.xlane.f32.xlu0 %v577
        %v613 = vpop.xlane.xlu0 %612
        %v614 = vmul.f32 %v583, 0.0078125
        %v615 = vmul.f32 %v585, 0.0078125
        %v616 = vmul.f32 %v587, 0.0078125
        %v617 = vmul.f32 %v589, 0.0078125
        %v618 = vmul.f32 %v591, 0.0078125
        %v619 = vmul.f32 %v593, 0.0078125
        %v620 = vmul.f32 %v595, 0.0078125
        %v621 = vmul.f32 %v597, 0.0078125
        %v622 = vmul.f32 %v599, 0.0078125
        %v623 = vmul.f32 %v601, 0.0078125
        %v624 = vmul.f32 %v603, 0.0078125
        %v625 = vmul.f32 %v605, 0.0078125
        %v626 = vmul.f32 %v607, 0.0078125
        %v627 = vmul.f32 %v609, 0.0078125
        %v628 = vmul.f32 %v611, 0.0078125
        %v629 = vmul.f32 %v613, 0.0078125
        %v630 = vsub.f32 %v518, %v614
        %v631 = vsub.f32 %v521, %v615
        %v632 = vsub.f32 %v526, %v616
        %v633 = vsub.f32 %v529, %v617
        %v634 = vsub.f32 %v534, %v618
        %v635 = vsub.f32 %v537, %v619
        %v636 = vsub.f32 %v542, %v620
        %v637 = vsub.f32 %v545, %v621
        %v638 = vsub.f32 %v550, %v622
        %v639 = vsub.f32 %v553, %v623
        %v640 = vsub.f32 %v558, %v624
        %v641 = vsub.f32 %v561, %v625
        %v642 = vsub.f32 %v566, %v626
        %v643 = vsub.f32 %v569, %v627
        %v644 = vsub.f32 %v574, %v628
        %v645 = vsub.f32 %v577, %v629
        %v646 = vmul.f32 %v630, %v630
        %v647 = vmul.f32 %v631, %v631
        %v648 = vmul.f32 %v632, %v632
        %v649 = vmul.f32 %v633, %v633
        %v650 = vmul.f32 %v634, %v634
        %v651 = vmul.f32 %v635, %v635
        %v652 = vmul.f32 %v636, %v636
        %v653 = vmul.f32 %v637, %v637
        %v654 = vmul.f32 %v638, %v638
        %v655 = vmul.f32 %v639, %v639
        %v656 = vmul.f32 %v640, %v640
        %v657 = vmul.f32 %v641, %v641
        %v658 = vmul.f32 %v642, %v642
        %v659 = vmul.f32 %v643, %v643
        %v660 = vmul.f32 %v644, %v644
        %v661 = vmul.f32 %v645, %v645
        %662 = vadd.xlane.f32.xlu0 %v646
        %v663 = vpop.xlane.xlu0 %662
        %664 = vadd.xlane.f32.xlu0 %v647
        %v665 = vpop.xlane.xlu0 %664
        %666 = vadd.xlane.f32.xlu0 %v648
        %v667 = vpop.xlane.xlu0 %666
        %668 = vadd.xlane.f32.xlu0 %v649
        %v669 = vpop.xlane.xlu0 %668
        %670 = vadd.xlane.f32.xlu0 %v650
        %v671 = vpop.xlane.xlu0 %670
        %672 = vadd.xlane.f32.xlu0 %v651
        %v673 = vpop.xlane.xlu0 %672
        %674 = vadd.xlane.f32.xlu0 %v652
        %v675 = vpop.xlane.xlu0 %674
        %676 = vadd.xlane.f32.xlu0 %v653
        %v677 = vpop.xlane.xlu0 %676
        %678 = vadd.xlane.f32.xlu0 %v654
        %v679 = vpop.xlane.xlu0 %678
        %680 = vadd.xlane.f32.xlu0 %v655
        %v681 = vpop.xlane.xlu0 %680
        %682 = vadd.xlane.f32.xlu0 %v656
        %v683 = vpop.xlane.xlu0 %682
        %684 = vadd.xlane.f32.xlu0 %v657
        %v685 = vpop.xlane.xlu0 %684
        %686 = vadd.xlane.f32.xlu0 %v658
        %v687 = vpop.xlane.xlu0 %686
        %688 = vadd.xlane.f32.xlu0 %v659
        %v689 = vpop.xlane.xlu0 %688
        %690 = vadd.xlane.f32.xlu0 %v660
        %v691 = vpop.xlane.xlu0 %690
        %692 = vadd.xlane.f32.xlu0 %v661
        %v693 = vpop.xlane.xlu0 %692
        %v694 = vmul.f32 %v663, 0.0078125
        %v695 = vmul.f32 %v665, 0.0078125
        %v696 = vmul.f32 %v667, 0.0078125
        %v697 = vmul.f32 %v669, 0.0078125
        %v698 = vmul.f32 %v671, 0.0078125
        %v699 = vmul.f32 %v673, 0.0078125
        %v700 = vmul.f32 %v675, 0.0078125
        %v701 = vmul.f32 %v677, 0.0078125
        %v702 = vmul.f32 %v679, 0.0078125
        %v703 = vmul.f32 %v681, 0.0078125
        %v704 = vmul.f32 %v683, 0.0078125
        %v705 = vmul.f32 %v685, 0.0078125
        %v706 = vmul.f32 %v687, 0.0078125
        %v707 = vmul.f32 %v689, 0.0078125
        %v708 = vmul.f32 %v691, 0.0078125
        %v709 = vmul.f32 %v693, 0.0078125
        %v710 = vadd.f32 %v694, 1e-05
        %v711 = vadd.f32 %v695, 1e-05
        %v712 = vadd.f32 %v696, 1e-05
        %v713 = vadd.f32 %v697, 1e-05
        %v714 = vadd.f32 %v698, 1e-05
        %v715 = vadd.f32 %v699, 1e-05
        %v716 = vadd.f32 %v700, 1e-05
        %v717 = vadd.f32 %v701, 1e-05
        %v718 = vadd.f32 %v702, 1e-05
        %v719 = vadd.f32 %v703, 1e-05
        %v720 = vadd.f32 %v704, 1e-05
        %v721 = vadd.f32 %v705, 1e-05
        %v722 = vadd.f32 %v706, 1e-05
        %v723 = vadd.f32 %v707, 1e-05
        %v724 = vadd.f32 %v708, 1e-05
        %v725 = vadd.f32 %v709, 1e-05
        %v726 = vrsqrt.pop %v710
        %v727 = vrsqrt.pop %v711
        %v728 = vrsqrt.pop %v712
        %v729 = vrsqrt.pop %v713
        %v730 = vrsqrt.pop %v714
        %v731 = vrsqrt.pop %v715
        %v732 = vrsqrt.pop %v716
        %v733 = vrsqrt.pop %v717
        %v734 = vrsqrt.pop %v718
        %v735 = vrsqrt.pop %v719
        %v736 = vrsqrt.pop %v720
        %v737 = vrsqrt.pop %v721
        %v738 = vrsqrt.pop %v722
        %v739 = vrsqrt.pop %v723
        %v740 = vrsqrt.pop %v724
        %v741 = vrsqrt.pop %v725
        %v742 = vmul.f32 %v630, %v726
        %v743 = vmul.f32 %v631, %v727
        %v744 = vmul.f32 %v632, %v728
        %v745 = vmul.f32 %v633, %v729
        %v746 = vmul.f32 %v634, %v730
        %v747 = vmul.f32 %v635, %v731
        %v748 = vmul.f32 %v636, %v732
        %v749 = vmul.f32 %v637, %v733
        %v750 = vmul.f32 %v638, %v734
        %v751 = vmul.f32 %v639, %v735
        %v752 = vmul.f32 %v640, %v736
        %v753 = vmul.f32 %v641, %v737
        %v754 = vmul.f32 %v642, %v738
        %v755 = vmul.f32 %v643, %v739
        %v756 = vmul.f32 %v644, %v740
        %v757 = vmul.f32 %v645, %v741
        %v759 = vlaneseq
        %v760 = vshrl.u32 %v759, 7
        %v761 = vsub.s32 0, %v760
        %v762 = vrot.slane %v580, %v761
        %v764 = vmul.f32 %v742, %v762
        %v765 = vmul.f32 %v743, %v762
        %v766 = vmul.f32 %v744, %v762
        %v767 = vmul.f32 %v745, %v762
        %v768 = vmul.f32 %v746, %v762
        %v769 = vmul.f32 %v747, %v762
        %v770 = vmul.f32 %v748, %v762
        %v771 = vmul.f32 %v749, %v762
        %v772 = vmul.f32 %v750, %v762
        %v773 = vmul.f32 %v751, %v762
        %v774 = vmul.f32 %v752, %v762
        %v775 = vmul.f32 %v753, %v762
        %v776 = vmul.f32 %v754, %v762
        %v777 = vmul.f32 %v755, %v762
        %v778 = vmul.f32 %v756, %v762
        %v779 = vmul.f32 %v757, %v762
        %v781 = vlaneseq
        %v782 = vshrl.u32 %v781, 7
        %v783 = vsub.s32 0, %v782
        %v784 = vrot.slane %v581, %v783
        %v786 = vadd.f32 %v764, %v784
        %v787 = vadd.f32 %v765, %v784
        %v788 = vadd.f32 %v766, %v784
        %v789 = vadd.f32 %v767, %v784
        %v790 = vadd.f32 %v768, %v784
        %v791 = vadd.f32 %v769, %v784
        %v792 = vadd.f32 %v770, %v784
        %v793 = vadd.f32 %v771, %v784
        %v794 = vadd.f32 %v772, %v784
        %v795 = vadd.f32 %v773, %v784
        %v796 = vadd.f32 %v774, %v784
        %v797 = vadd.f32 %v775, %v784
        %v798 = vadd.f32 %v776, %v784
        %v799 = vadd.f32 %v777, %v784
        %v800 = vadd.f32 %v778, %v784
        %v801 = vadd.f32 %v779, %v784
        %v802 = vpack.c.bf16 %v787, %v786
        %v803 = vpack.c.bf16 %v789, %v788
        %v804 = vpack.c.bf16 %v791, %v790
        %v805 = vpack.c.bf16 %v793, %v792
        %v806 = vpack.c.bf16 %v795, %v794
        %v807 = vpack.c.bf16 %v797, %v796
        %v808 = vpack.c.bf16 %v799, %v798
        %v809 = vpack.c.bf16 %v801, %v800
        %v810 = vld [vmem:[#allocation2] sm:$0xff]
        %v811 = vld [vmem:[#allocation2 + $0x8] sm:$0xff]
        %v812 = vld [vmem:[#allocation2 + $0x10] sm:$0xff]
        %v813 = vld [vmem:[#allocation2 + $0x18] sm:$0xff]
        %v814 = vld [vmem:[#allocation2 + $0x20] sm:$0xff]
        %v815 = vld [vmem:[#allocation2 + $0x28] sm:$0xff]
        %v816 = vld [vmem:[#allocation2 + $0x30] sm:$0xff]
        %v817 = vld [vmem:[#allocation2 + $0x38] sm:$0xff]
        %v818 = vld [vmem:[#allocation2 + $0x40] sm:$0xff]
        %v819 = vld [vmem:[#allocation2 + $0x48] sm:$0xff]
        %v820 = vld [vmem:[#allocation2 + $0x50] sm:$0xff]
        %v821 = vld [vmem:[#allocation2 + $0x58] sm:$0xff]
        %v822 = vld [vmem:[#allocation2 + $0x60] sm:$0xff]
        %v823 = vld [vmem:[#allocation2 + $0x68] sm:$0xff]
        %v824 = vld [vmem:[#allocation2 + $0x70] sm:$0xff]
        %v825 = vld [vmem:[#allocation2 + $0x78] sm:$0xff]
        %v826 = vld [vmem:[#allocation2 + $0x80] sm:$0xff]
        %v827 = vld [vmem:[#allocation2 + $0x88] sm:$0xff]
        %v828 = vld [vmem:[#allocation2 + $0x90] sm:$0xff]
        %v829 = vld [vmem:[#allocation2 + $0x98] sm:$0xff]
        %v830 = vld [vmem:[#allocation2 + $0xa0] sm:$0xff]
        %v831 = vld [vmem:[#allocation2 + $0xa8] sm:$0xff]
        %v832 = vld [vmem:[#allocation2 + $0xb0] sm:$0xff]
        %v833 = vld [vmem:[#allocation2 + $0xb8] sm:$0xff]
        %v834 = vld [vmem:[#allocation2 + $0xc0] sm:$0xff]
        %v835 = vld [vmem:[#allocation2 + $0xc8] sm:$0xff]
        %v836 = vld [vmem:[#allocation2 + $0xd0] sm:$0xff]
        %v837 = vld [vmem:[#allocation2 + $0xd8] sm:$0xff]
        %v838 = vld [vmem:[#allocation2 + $0xe0] sm:$0xff]
        %v839 = vld [vmem:[#allocation2 + $0xe8] sm:$0xff]
        %v840 = vld [vmem:[#allocation2 + $0xf0] sm:$0xff]
        %v841 = vld [vmem:[#allocation2 + $0xf8] sm:$0xff]
        %v842 = vld [vmem:[%s6] sm:$0xf]
        %v843 = vld [vmem:[#allocation5] sm:$0xf]
        %v844 = vld [vmem:[#allocation5 + $0x4] sm:$0xf]
        %v845 = vld [vmem:[#allocation5 + $0x8] sm:$0xf]
        %v846 = vld [vmem:[#allocation5 + $0xc] sm:$0xf]
        %v847 = vld [vmem:[#allocation5 + $0x10] sm:$0xf]
        %v848 = vld [vmem:[#allocation5 + $0x14] sm:$0xf]
        %v849 = vld [vmem:[#allocation5 + $0x18] sm:$0xf]
        %v850 = vld [vmem:[#allocation5 + $0x1c] sm:$0xf]
        %v851 = vld [vmem:[#allocation5 + $0x20] sm:$0xf]
        %v852 = vld [vmem:[#allocation5 + $0x24] sm:$0xf]
        %v853 = vld [vmem:[#allocation5 + $0x28] sm:$0xf]
        %v854 = vld [vmem:[#allocation5 + $0x2c] sm:$0xf]
        %v855 = vld [vmem:[#allocation5 + $0x30] sm:$0xf]
        %v856 = vld [vmem:[#allocation5 + $0x34] sm:$0xf]
        %v857 = vld [vmem:[#allocation5 + $0x38] sm:$0xf]
        %v858 = vld [vmem:[#allocation5 + $0x3c] sm:$0xf]
        %v859 = vld [vmem:[#allocation5 + $0x40] sm:$0xf]
        %v860 = vld [vmem:[#allocation5 + $0x44] sm:$0xf]
        %v861 = vld [vmem:[#allocation5 + $0x48] sm:$0xf]
        %v862 = vld [vmem:[#allocation5 + $0x4c] sm:$0xf]
        %v863 = vld [vmem:[#allocation5 + $0x50] sm:$0xf]
        %v864 = vld [vmem:[#allocation5 + $0x54] sm:$0xf]
        %v865 = vld [vmem:[#allocation5 + $0x58] sm:$0xf]
        %v866 = vld [vmem:[#allocation5 + $0x5c] sm:$0xf]
        %v867 = vld [vmem:[#allocation5 + $0x60] sm:$0xf]
        %v868 = vld [vmem:[#allocation5 + $0x64] sm:$0xf]
        %v869 = vld [vmem:[#allocation5 + $0x68] sm:$0xf]
        %v870 = vld [vmem:[#allocation5 + $0x6c] sm:$0xf]
        %v871 = vld [vmem:[#allocation5 + $0x70] sm:$0xf]
        %v872 = vld [vmem:[#allocation5 + $0x74] sm:$0xf]
        %v873 = vld [vmem:[#allocation5 + $0x78] sm:$0xf]
        %v874 = vld [vmem:[#allocation5 + $0x7c] sm:$0xf]
        %v875 = vld [vmem:[#allocation5 + $0x80] sm:$0xf]
        %v876 = vld [vmem:[#allocation5 + $0x84] sm:$0xf]
        %v877 = vld [vmem:[#allocation5 + $0x88] sm:$0xf]
        %v878 = vld [vmem:[#allocation5 + $0x8c] sm:$0xf]
        %v879 = vld [vmem:[#allocation5 + $0x90] sm:$0xf]
        %v880 = vld [vmem:[#allocation5 + $0x94] sm:$0xf]
        %v881 = vld [vmem:[#allocation5 + $0x98] sm:$0xf]
        %v882 = vld [vmem:[#allocation5 + $0x9c] sm:$0xf]
        %v883 = vld [vmem:[#allocation5 + $0xa0] sm:$0xf]
        %v884 = vld [vmem:[#allocation5 + $0xa4] sm:$0xf]
        %v885 = vld [vmem:[#allocation5 + $0xa8] sm:$0xf]
        %v886 = vld [vmem:[#allocation5 + $0xac] sm:$0xf]
        %v887 = vld [vmem:[#allocation5 + $0xb0] sm:$0xf]
        %v888 = vld [vmem:[#allocation5 + $0xb4] sm:$0xf]
        %v889 = vld [vmem:[#allocation5 + $0xb8] sm:$0xf]
        %v890 = vld [vmem:[#allocation5 + $0xbc] sm:$0xf]
        %v891 = vld [vmem:[#allocation5 + $0xc0] sm:$0xf]
        %v892 = vld [vmem:[#allocation5 + $0xc4] sm:$0xf]
        %v893 = vld [vmem:[#allocation5 + $0xc8] sm:$0xf]
        %v894 = vld [vmem:[#allocation5 + $0xcc] sm:$0xf]
        %v895 = vld [vmem:[#allocation5 + $0xd0] sm:$0xf]
        %v896 = vld [vmem:[#allocation5 + $0xd4] sm:$0xf]
        %v897 = vld [vmem:[#allocation5 + $0xd8] sm:$0xf]
        %v898 = vld [vmem:[#allocation5 + $0xdc] sm:$0xf]
        %v899 = vld [vmem:[#allocation5 + $0xe0] sm:$0xf]
        %v900 = vld [vmem:[#allocation5 + $0xe4] sm:$0xf]
        %v901 = vld [vmem:[#allocation5 + $0xe8] sm:$0xf]
        %v902 = vld [vmem:[#allocation5 + $0xec] sm:$0xf]
        %v903 = vld [vmem:[#allocation5 + $0xf0] sm:$0xf]
        %v904 = vld [vmem:[#allocation5 + $0xf4] sm:$0xf]
        %v905 = vld [vmem:[#allocation5 + $0xf8] sm:$0xf]
        %v906 = vld [vmem:[#allocation5 + $0xfc] sm:$0xf]
        %v908 = vlaneseq
        %v909 = vshrl.u32 %v908, 7
        %v910 = vsub.s32 0, %v909
        %v911 = vrot.slane %v842, %v910
        %v912 = vlaneseq
        %v913 = vshrl.u32 %v912, 7
        %v914 = vsub.s32 1, %v913
        %v915 = vrot.slane %v842, %v914
        %v916 = vlaneseq
        %v917 = vshrl.u32 %v916, 7
        %v918 = vsub.s32 2, %v917
        %v919 = vrot.slane %v842, %v918
        %v920 = vlaneseq
        %v921 = vshrl.u32 %v920, 7
        %v922 = vsub.s32 3, %v921
        %v923 = vrot.slane %v842, %v922
        %v960 = vunpack.c.l.b16 %v810
        %v961 = vunpack.c.h.b16 %v810
        %v962 = vunpack.c.l.b16 %v811
        %v963 = vunpack.c.h.b16 %v811
        %v964 = vunpack.c.l.b16 %v812
        %v965 = vunpack.c.h.b16 %v812
        %v966 = vunpack.c.l.b16 %v813
        %v967 = vunpack.c.h.b16 %v813
        %v968 = vunpack.c.l.b16 %v814
        %v969 = vunpack.c.h.b16 %v814
        %v970 = vunpack.c.l.b16 %v815
        %v971 = vunpack.c.h.b16 %v815
        %v972 = vunpack.c.l.b16 %v816
        %v973 = vunpack.c.h.b16 %v816
        %v974 = vunpack.c.l.b16 %v817
        %v975 = vunpack.c.h.b16 %v817
        %v976 = vunpack.c.l.b16 %v818
        %v977 = vunpack.c.h.b16 %v818
        %v978 = vunpack.c.l.b16 %v819
        %v979 = vunpack.c.h.b16 %v819
        %v980 = vunpack.c.l.b16 %v820
        %v981 = vunpack.c.h.b16 %v820
        %v982 = vunpack.c.l.b16 %v821
        %v983 = vunpack.c.h.b16 %v821
        %v984 = vunpack.c.l.b16 %v822
        %v985 = vunpack.c.h.b16 %v822
        %v986 = vunpack.c.l.b16 %v823
        %v987 = vunpack.c.h.b16 %v823
        %v988 = vunpack.c.l.b16 %v824
        %v989 = vunpack.c.h.b16 %v824
        %v990 = vunpack.c.l.b16 %v825
        %v991 = vunpack.c.h.b16 %v825
        %v992 = vunpack.c.l.b16 %v826
        %v993 = vunpack.c.h.b16 %v826
        %v994 = vunpack.c.l.b16 %v827
        %v995 = vunpack.c.h.b16 %v827
        %v996 = vunpack.c.l.b16 %v828
        %v997 = vunpack.c.h.b16 %v828
        %v998 = vunpack.c.l.b16 %v829
        %v999 = vunpack.c.h.b16 %v829
        %v1000 = vunpack.c.l.b16 %v830
        %v1001 = vunpack.c.h.b16 %v830
        %v1002 = vunpack.c.l.b16 %v831
        %v1003 = vunpack.c.h.b16 %v831
        %v1004 = vunpack.c.l.b16 %v832
        %v1005 = vunpack.c.h.b16 %v832
        %v1006 = vunpack.c.l.b16 %v833
        %v1007 = vunpack.c.h.b16 %v833
        %v1008 = vunpack.c.l.b16 %v834
        %v1009 = vunpack.c.h.b16 %v834
        %v1010 = vunpack.c.l.b16 %v835
        %v1011 = vunpack.c.h.b16 %v835
        %v1012 = vunpack.c.l.b16 %v836
        %v1013 = vunpack.c.h.b16 %v836
        %v1014 = vunpack.c.l.b16 %v837
        %v1015 = vunpack.c.h.b16 %v837
        %v1016 = vunpack.c.l.b16 %v838
        %v1017 = vunpack.c.h.b16 %v838
        %v1018 = vunpack.c.l.b16 %v839
        %v1019 = vunpack.c.h.b16 %v839
        %v1020 = vunpack.c.l.b16 %v840
        %v1021 = vunpack.c.h.b16 %v840
        %v1022 = vunpack.c.l.b16 %v841
        %v1023 = vunpack.c.h.b16 %v841
        %v1024 = vpack.c.b16 %v964, %v960
        %v1025 = vpack.c.b16 %v965, %v961
        %v1026 = vpack.c.b16 %v966, %v962
        %v1027 = vpack.c.b16 %v967, %v963
        %v1028 = vpack.c.b16 %v972, %v968
        %v1029 = vpack.c.b16 %v973, %v969
        %v1030 = vpack.c.b16 %v974, %v970
        %v1031 = vpack.c.b16 %v975, %v971
        %v1032 = vpack.c.b16 %v980, %v976
        %v1033 = vpack.c.b16 %v981, %v977
        %v1034 = vpack.c.b16 %v982, %v978
        %v1035 = vpack.c.b16 %v983, %v979
        %v1036 = vpack.c.b16 %v988, %v984
        %v1037 = vpack.c.b16 %v989, %v985
        %v1038 = vpack.c.b16 %v990, %v986
        %v1039 = vpack.c.b16 %v991, %v987
        %v1040 = vpack.c.b16 %v996, %v992
        %v1041 = vpack.c.b16 %v997, %v993
        %v1042 = vpack.c.b16 %v998, %v994
        %v1043 = vpack.c.b16 %v999, %v995
        %v1044 = vpack.c.b16 %v1004, %v1000
        %v1045 = vpack.c.b16 %v1005, %v1001
        %v1046 = vpack.c.b16 %v1006, %v1002
        %v1047 = vpack.c.b16 %v1007, %v1003
        %v1048 = vpack.c.b16 %v1012, %v1008
        %v1049 = vpack.c.b16 %v1013, %v1009
        %v1050 = vpack.c.b16 %v1014, %v1010
        %v1051 = vpack.c.b16 %v1015, %v1011
        %v1052 = vpack.c.b16 %v1020, %v1016
        %v1053 = vpack.c.b16 %v1021, %v1017
        %v1054 = vpack.c.b16 %v1022, %v1018
        %v1055 = vpack.c.b16 %v1023, %v1019
        %1088 = vmatprep.subr.bf16.mxu0 %v1025
        %1089 = vmatpush1.bf16.msra.mxu0 %v1024
        %1090 = vmatprep.subr.bf16.mxu0 %v1029
        %1091 = vmatpush1.bf16.msra.mxu0 %v1028
        %1092 = vmatprep.subr.bf16.mxu0 %v1033
        %1093 = vmatpush1.bf16.msra.mxu0 %v1032
        %1094 = vmatprep.subr.bf16.mxu0 %v1037
        %1095 = vmatpush1.bf16.msra.mxu0 %v1036
        %1096 = vmatprep.subr.bf16.mxu0 %v1041
        %1097 = vmatpush1.bf16.msra.mxu0 %v1040
        %1098 = vmatprep.subr.bf16.mxu0 %v1045
        %1099 = vmatpush1.bf16.msra.mxu0 %v1044
        %1100 = vmatprep.subr.bf16.mxu0 %v1049
        %1101 = vmatpush1.bf16.msra.mxu0 %v1048
        %1102 = vmatprep.subr.bf16.mxu0 %v1053
        %1103 = vmatpush1.bf16.msra.mxu0 %v1052
        %1104 = vmatprep.subr.bf16.mxu0 0
        %1105 = vmatpush1.bf16.msra.mxu0 0
        %1106 = vmatprep.subr.bf16.mxu0 0
        %1107 = vmatpush1.bf16.msra.mxu0 0
        %1108 = vmatprep.subr.bf16.mxu0 0
        %1109 = vmatpush1.bf16.msra.mxu0 0
        %1110 = vmatprep.subr.bf16.mxu0 0
        %1111 = vmatpush1.bf16.msra.mxu0 0
        %1112 = vmatprep.subr.bf16.mxu0 0
        %1113 = vmatpush1.bf16.msra.mxu0 0
        %1114 = vmatprep.subr.bf16.mxu0 0
        %1115 = vmatpush1.bf16.msra.mxu0 0
        %1116 = vmatprep.subr.bf16.mxu0 0
        %1117 = vmatpush1.bf16.msra.mxu0 0
        %1118 = vmatprep.subr.bf16.mxu0 0
        %1119 = vmatpush1.bf16.msra.mxu0 0
        %1120 = vmatprep.mubr.bf16.mxu0 0
        %1121 = vmatmul.mubr.bf16.gmra.mrb[0].mxu0 %v802
        %v1122 = vpop.f32.mrb[0].mxu0
        %v1123 = vadd.f32 %v911, %v1122
        %v1124 = vpop.f32.mrb[0].mxu0
        %v1125 = vadd.f32 %v915, %v1124
        %v1126 = vpop.f32.mrb[0].mxu0
        %v1127 = vadd.f32 %v911, %v1126
        %v1128 = vpop.f32.mrb[0].mxu0
        %v1129 = vadd.f32 %v915, %v1128
        %1130 = vmatprep.mubr.bf16.mxu0 0
        %1131 = vmatmul.mubr.bf16.gmra.mrb[0].mxu0 %v803
        %v1132 = vpop.f32.mrb[0].mxu0
        %v1133 = vadd.f32 %v911, %v1132
        %v1134 = vpop.f32.mrb[0].mxu0
        %v1135 = vadd.f32 %v915, %v1134
        %v1136 = vpop.f32.mrb[0].mxu0
        %v1137 = vadd.f32 %v911, %v1136
        %v1138 = vpop.f32.mrb[0].mxu0
        %v1139 = vadd.f32 %v915, %v1138
        %1140 = vmatprep.mubr.bf16.mxu0 0
        %1141 = vmatmul.mubr.bf16.gmra.mrb[0].mxu0 %v804
        %v1142 = vpop.f32.mrb[0].mxu0
        %v1143 = vadd.f32 %v911, %v1142
        %v1144 = vpop.f32.mrb[0].mxu0
        %v1145 = vadd.f32 %v915, %v1144
        %v1146 = vpop.f32.mrb[0].mxu0
        %v1147 = vadd.f32 %v911, %v1146
        %v1148 = vpop.f32.mrb[0].mxu0
        %v1149 = vadd.f32 %v915, %v1148
        %1150 = vmatprep.mubr.bf16.mxu0 0
        %1151 = vmatmul.mubr.bf16.gmra.mrb[0].mxu0 %v805
        %v1152 = vpop.f32.mrb[0].mxu0
        %v1153 = vadd.f32 %v911, %v1152
        %v1154 = vpop.f32.mrb[0].mxu0
        %v1155 = vadd.f32 %v915, %v1154
        %v1156 = vpop.f32.mrb[0].mxu0
        %v1157 = vadd.f32 %v911, %v1156
        %v1158 = vpop.f32.mrb[0].mxu0
        %v1159 = vadd.f32 %v915, %v1158
        %1160 = vmatprep.mubr.bf16.mxu0 0
        %1161 = vmatmul.mubr.bf16.gmra.mrb[0].mxu0 %v806
        %v1162 = vpop.f32.mrb[0].mxu0
        %v1163 = vadd.f32 %v911, %v1162
        %v1164 = vpop.f32.mrb[0].mxu0
        %v1165 = vadd.f32 %v915, %v1164
        %v1166 = vpop.f32.mrb[0].mxu0
        %v1167 = vadd.f32 %v911, %v1166
        %v1168 = vpop.f32.mrb[0].mxu0
        %v1169 = vadd.f32 %v915, %v1168
        %1170 = vmatprep.mubr.bf16.mxu0 0
        %1171 = vmatmul.mubr.bf16.gmra.mrb[0].mxu0 %v807
        %v1172 = vpop.f32.mrb[0].mxu0
        %v1173 = vadd.f32 %v911, %v1172
        %v1174 = vpop.f32.mrb[0].mxu0
        %v1175 = vadd.f32 %v915, %v1174
        %v1176 = vpop.f32.mrb[0].mxu0
        %v1177 = vadd.f32 %v911, %v1176
        %v1178 = vpop.f32.mrb[0].mxu0
        %v1179 = vadd.f32 %v915, %v1178
        %1180 = vmatprep.mubr.bf16.mxu0 0
        %1181 = vmatmul.mubr.bf16.gmra.mrb[0].mxu0 %v808
        %v1182 = vpop.f32.mrb[0].mxu0
        %v1183 = vadd.f32 %v911, %v1182
        %v1184 = vpop.f32.mrb[0].mxu0
        %v1185 = vadd.f32 %v915, %v1184
        %v1186 = vpop.f32.mrb[0].mxu0
        %v1187 = vadd.f32 %v911, %v1186
        %v1188 = vpop.f32.mrb[0].mxu0
        %v1189 = vadd.f32 %v915, %v1188
        %1190 = vmatprep.mubr.bf16.mxu0 0
        %1191 = vmatmul.mubr.bf16.gmra.mrb[0].mxu0 %v809
        %v1192 = vpop.f32.mrb[0].mxu0
        %v1193 = vadd.f32 %v911, %v1192
        %v1194 = vpop.f32.mrb[0].mxu0
        %v1195 = vadd.f32 %v915, %v1194
        %v1196 = vpop.f32.mrb[0].mxu0
        %v1197 = vadd.f32 %v911, %v1196
        %v1198 = vpop.f32.mrb[0].mxu0
        %v1199 = vadd.f32 %v915, %v1198
        %1200 = vdwg.mxu0
        %1201 = vmatprep.subr.bf16.mxu0 %v1027
        %1202 = vmatpush1.bf16.msra.mxu0 %v1026
        %1203 = vmatprep.subr.bf16.mxu0 %v1031
        %1204 = vmatpush1.bf16.msra.mxu0 %v1030
        %1205 = vmatprep.subr.bf16.mxu0 %v1035
        %1206 = vmatpush1.bf16.msra.mxu0 %v1034
        %1207 = vmatprep.subr.bf16.mxu0 %v1039
        %1208 = vmatpush1.bf16.msra.mxu0 %v1038
        %1209 = vmatprep.subr.bf16.mxu0 %v1043
        %1210 = vmatpush1.bf16.msra.mxu0 %v1042
        %1211 = vmatprep.subr.bf16.mxu0 %v1047
        %1212 = vmatpush1.bf16.msra.mxu0 %v1046
        %1213 = vmatprep.subr.bf16.mxu0 %v1051
        %1214 = vmatpush1.bf16.msra.mxu0 %v1050
        %1215 = vmatprep.subr.bf16.mxu0 %v1055
        %1216 = vmatpush1.bf16.msra.mxu0 %v1054
        %1217 = vmatprep.subr.bf16.mxu0 0
        %1218 = vmatpush1.bf16.msra.mxu0 0
        %1219 = vmatprep.subr.bf16.mxu0 0
        %1220 = vmatpush1.bf16.msra.mxu0 0
        %1221 = vmatprep.subr.bf16.mxu0 0
        %1222 = vmatpush1.bf16.msra.mxu0 0
        %1223 = vmatprep.subr.bf16.mxu0 0
        %1224 = vmatpush1.bf16.msra.mxu0 0
        %1225 = vmatprep.subr.bf16.mxu0 0
        %1226 = vmatpush1.bf16.msra.mxu0 0
        %1227 = vmatprep.subr.bf16.mxu0 0
        %1228 = vmatpush1.bf16.msra.mxu0 0
        %1229 = vmatprep.subr.bf16.mxu0 0
        %1230 = vmatpush1.bf16.msra.mxu0 0
        %1231 = vmatprep.subr.bf16.mxu0 0
        %1232 = vmatpush1.bf16.msra.mxu0 0
        %1233 = vmatprep.mubr.bf16.mxu0 0
        %1234 = vmatmul.mubr.bf16.gmra.mrb[0].mxu0 %v802
        %v1235 = vpop.f32.mrb[0].mxu0
        %v1236 = vadd.f32 %v919, %v1235
        %v1237 = vpop.f32.mrb[0].mxu0
        %v1238 = vadd.f32 %v923, %v1237
        %v1239 = vpop.f32.mrb[0].mxu0
        %v1240 = vadd.f32 %v919, %v1239
        %v1241 = vpop.f32.mrb[0].mxu0
        %v1242 = vadd.f32 %v923, %v1241
        %1243 = vmatprep.mubr.bf16.mxu0 0
        %1244 = vmatmul.mubr.bf16.gmra.mrb[0].mxu0 %v803
        %v1245 = vpop.f32.mrb[0].mxu0
        %v1246 = vadd.f32 %v919, %v1245
        %v1247 = vpop.f32.mrb[0].mxu0
        %v1248 = vadd.f32 %v923, %v1247
        %v1249 = vpop.f32.mrb[0].mxu0
        %v1250 = vadd.f32 %v919, %v1249
        %v1251 = vpop.f32.mrb[0].mxu0
        %v1252 = vadd.f32 %v923, %v1251
        %1253 = vmatprep.mubr.bf16.mxu0 0
        %1254 = vmatmul.mubr.bf16.gmra.mrb[0].mxu0 %v804
        %v1255 = vpop.f32.mrb[0].mxu0
        %v1256 = vadd.f32 %v919, %v1255
        %v1257 = vpop.f32.mrb[0].mxu0
        %v1258 = vadd.f32 %v923, %v1257
        %v1259 = vpop.f32.mrb[0].mxu0
        %v1260 = vadd.f32 %v919, %v1259
        %v1261 = vpop.f32.mrb[0].mxu0
        %v1262 = vadd.f32 %v923, %v1261
        %1263 = vmatprep.mubr.bf16.mxu0 0
        %1264 = vmatmul.mubr.bf16.gmra.mrb[0].mxu0 %v805
        %v1265 = vpop.f32.mrb[0].mxu0
        %v1266 = vadd.f32 %v919, %v1265
        %v1267 = vpop.f32.mrb[0].mxu0
        %v1268 = vadd.f32 %v923, %v1267
        %v1269 = vpop.f32.mrb[0].mxu0
        %v1270 = vadd.f32 %v919, %v1269
        %v1271 = vpop.f32.mrb[0].mxu0
        %v1272 = vadd.f32 %v923, %v1271
        %1273 = vmatprep.mubr.bf16.mxu0 0
        %1274 = vmatmul.mubr.bf16.gmra.mrb[0].mxu0 %v806
        %v1275 = vpop.f32.mrb[0].mxu0
        %v1276 = vadd.f32 %v919, %v1275
        %v1277 = vpop.f32.mrb[0].mxu0
        %v1278 = vadd.f32 %v923, %v1277
        %v1279 = vpop.f32.mrb[0].mxu0
        %v1280 = vadd.f32 %v919, %v1279
        %v1281 = vpop.f32.mrb[0].mxu0
        %v1282 = vadd.f32 %v923, %v1281
        %1283 = vmatprep.mubr.bf16.mxu0 0
        %1284 = vmatmul.mubr.bf16.gmra.mrb[0].mxu0 %v807
        %v1285 = vpop.f32.mrb[0].mxu0
        %v1286 = vadd.f32 %v919, %v1285
        %v1287 = vpop.f32.mrb[0].mxu0
        %v1288 = vadd.f32 %v923, %v1287
        %v1289 = vpop.f32.mrb[0].mxu0
        %v1290 = vadd.f32 %v919, %v1289
        %v1291 = vpop.f32.mrb[0].mxu0
        %v1292 = vadd.f32 %v923, %v1291
        %1293 = vmatprep.mubr.bf16.mxu0 0
        %1294 = vmatmul.mubr.bf16.gmra.mrb[0].mxu0 %v808
        %v1295 = vpop.f32.mrb[0].mxu0
        %v1296 = vadd.f32 %v919, %v1295
        %v1297 = vpop.f32.mrb[0].mxu0
        %v1298 = vadd.f32 %v923, %v1297
        %v1299 = vpop.f32.mrb[0].mxu0
        %v1300 = vadd.f32 %v919, %v1299
        %v1301 = vpop.f32.mrb[0].mxu0
        %v1302 = vadd.f32 %v923, %v1301
        %1303 = vmatprep.mubr.bf16.mxu0 0
        %1304 = vmatmul.mubr.bf16.gmra.mrb[0].mxu0 %v809
        %v1305 = vpop.f32.mrb[0].mxu0
        %v1306 = vadd.f32 %v919, %v1305
        %v1307 = vpop.f32.mrb[0].mxu0
        %v1308 = vadd.f32 %v923, %v1307
        %v1309 = vpop.f32.mrb[0].mxu0
        %v1310 = vadd.f32 %v919, %v1309
        %v1311 = vpop.f32.mrb[0].mxu0
        %v1312 = vadd.f32 %v923, %v1311
        %1313 = vdwg.mxu0
        %v1314 = vmax.f32 %v1123, 0.0
        %v1315 = vmax.f32 %v1125, 0.0
        %v1316 = vmax.f32 %v1236, 0.0
        %v1317 = vmax.f32 %v1238, 0.0
        %v1318 = vmax.f32 %v1127, 0.0
        %v1319 = vmax.f32 %v1129, 0.0
        %v1320 = vmax.f32 %v1240, 0.0
        %v1321 = vmax.f32 %v1242, 0.0
        %v1322 = vmax.f32 %v1133, 0.0
        %v1323 = vmax.f32 %v1135, 0.0
        %v1324 = vmax.f32 %v1246, 0.0
        %v1325 = vmax.f32 %v1248, 0.0
        %v1326 = vmax.f32 %v1137, 0.0
        %v1327 = vmax.f32 %v1139, 0.0
        %v1328 = vmax.f32 %v1250, 0.0
        %v1329 = vmax.f32 %v1252, 0.0
        %v1330 = vmax.f32 %v1143, 0.0
        %v1331 = vmax.f32 %v1145, 0.0
        %v1332 = vmax.f32 %v1256, 0.0
        %v1333 = vmax.f32 %v1258, 0.0
        %v1334 = vmax.f32 %v1147, 0.0
        %v1335 = vmax.f32 %v1149, 0.0
        %v1336 = vmax.f32 %v1260, 0.0
        %v1337 = vmax.f32 %v1262, 0.0
        %v1338 = vmax.f32 %v1153, 0.0
        %v1339 = vmax.f32 %v1155, 0.0
        %v1340 = vmax.f32 %v1266, 0.0
        %v1341 = vmax.f32 %v1268, 0.0
        %v1342 = vmax.f32 %v1157, 0.0
        %v1343 = vmax.f32 %v1159, 0.0
        %v1344 = vmax.f32 %v1270, 0.0
        %v1345 = vmax.f32 %v1272, 0.0
        %v1346 = vmax.f32 %v1163, 0.0
        %v1347 = vmax.f32 %v1165, 0.0
        %v1348 = vmax.f32 %v1276, 0.0
        %v1349 = vmax.f32 %v1278, 0.0
        %v1350 = vmax.f32 %v1167, 0.0
        %v1351 = vmax.f32 %v1169, 0.0
        %v1352 = vmax.f32 %v1280, 0.0
        %v1353 = vmax.f32 %v1282, 0.0
        %v1354 = vmax.f32 %v1173, 0.0
        %v1355 = vmax.f32 %v1175, 0.0
        %v1356 = vmax.f32 %v1286, 0.0
        %v1357 = vmax.f32 %v1288, 0.0
        %v1358 = vmax.f32 %v1177, 0.0
        %v1359 = vmax.f32 %v1179, 0.0
        %v1360 = vmax.f32 %v1290, 0.0
        %v1361 = vmax.f32 %v1292, 0.0
        %v1362 = vmax.f32 %v1183, 0.0
        %v1363 = vmax.f32 %v1185, 0.0
        %v1364 = vmax.f32 %v1296, 0.0
        %v1365 = vmax.f32 %v1298, 0.0
        %v1366 = vmax.f32 %v1187, 0.0
        %v1367 = vmax.f32 %v1189, 0.0
        %v1368 = vmax.f32 %v1300, 0.0
        %v1369 = vmax.f32 %v1302, 0.0
        %v1370 = vmax.f32 %v1193, 0.0
        %v1371 = vmax.f32 %v1195, 0.0
        %v1372 = vmax.f32 %v1306, 0.0
        %v1373 = vmax.f32 %v1308, 0.0
        %v1374 = vmax.f32 %v1197, 0.0
        %v1375 = vmax.f32 %v1199, 0.0
        %v1376 = vmax.f32 %v1310, 0.0
        %v1377 = vmax.f32 %v1312, 0.0
        %v1378 = vpack.c.bf16 %v1318, %v1314
        %v1379 = vpack.c.bf16 %v1319, %v1315
        %v1380 = vpack.c.bf16 %v1320, %v1316
        %v1381 = vpack.c.bf16 %v1321, %v1317
        %v1382 = vpack.c.bf16 %v1326, %v1322
        %v1383 = vpack.c.bf16 %v1327, %v1323
        %v1384 = vpack.c.bf16 %v1328, %v1324
        %v1385 = vpack.c.bf16 %v1329, %v1325
        %v1386 = vpack.c.bf16 %v1334, %v1330
        %v1387 = vpack.c.bf16 %v1335, %v1331
        %v1388 = vpack.c.bf16 %v1336, %v1332
        %v1389 = vpack.c.bf16 %v1337, %v1333
        %v1390 = vpack.c.bf16 %v1342, %v1338
        %v1391 = vpack.c.bf16 %v1343, %v1339
        %v1392 = vpack.c.bf16 %v1344, %v1340
        %v1393 = vpack.c.bf16 %v1345, %v1341
        %v1394 = vpack.c.bf16 %v1350, %v1346
        %v1395 = vpack.c.bf16 %v1351, %v1347
        %v1396 = vpack.c.bf16 %v1352, %v1348
        %v1397 = vpack.c.bf16 %v1353, %v1349
        %v1398 = vpack.c.bf16 %v1358, %v1354
        %v1399 = vpack.c.bf16 %v1359, %v1355
        %v1400 = vpack.c.bf16 %v1360, %v1356
        %v1401 = vpack.c.bf16 %v1361, %v1357
        %v1402 = vpack.c.bf16 %v1366, %v1362
        %v1403 = vpack.c.bf16 %v1367, %v1363
        %v1404 = vpack.c.bf16 %v1368, %v1364
        %v1405 = vpack.c.bf16 %v1369, %v1365
        %v1406 = vpack.c.bf16 %v1374, %v1370
        %v1407 = vpack.c.bf16 %v1375, %v1371
        %v1408 = vpack.c.bf16 %v1376, %v1372
        %v1409 = vpack.c.bf16 %v1377, %v1373
        %v1474 = vunpack.c.l.b16 %v843
        %v1475 = vunpack.c.l.b16 %v844
        %v1476 = vunpack.c.l.b16 %v845
        %v1477 = vunpack.c.l.b16 %v846
        %v1478 = vunpack.c.l.b16 %v847
        %v1479 = vunpack.c.l.b16 %v848
        %v1480 = vunpack.c.l.b16 %v849
        %v1481 = vunpack.c.l.b16 %v850
        %v1482 = vunpack.c.l.b16 %v851
        %v1483 = vunpack.c.l.b16 %v852
        %v1484 = vunpack.c.l.b16 %v853
        %v1485 = vunpack.c.l.b16 %v854
        %v1486 = vunpack.c.l.b16 %v855
        %v1487 = vunpack.c.l.b16 %v856
        %v1488 = vunpack.c.l.b16 %v857
        %v1489 = vunpack.c.l.b16 %v858
        %v1490 = vunpack.c.l.b16 %v859
        %v1491 = vunpack.c.l.b16 %v860
        %v1492 = vunpack.c.l.b16 %v861
        %v1493 = vunpack.c.l.b16 %v862
        %v1494 = vunpack.c.l.b16 %v863
        %v1495 = vunpack.c.l.b16 %v864
        %v1496 = vunpack.c.l.b16 %v865
        %v1497 = vunpack.c.l.b16 %v866
        %v1498 = vunpack.c.l.b16 %v867
        %v1499 = vunpack.c.l.b16 %v868
        %v1500 = vunpack.c.l.b16 %v869
        %v1501 = vunpack.c.l.b16 %v870
        %v1502 = vunpack.c.l.b16 %v871
        %v1503 = vunpack.c.l.b16 %v872
        %v1504 = vunpack.c.l.b16 %v873
        %v1505 = vunpack.c.l.b16 %v874
        %v1506 = vunpack.c.l.b16 %v875
        %v1507 = vunpack.c.l.b16 %v876
        %v1508 = vunpack.c.l.b16 %v877
        %v1509 = vunpack.c.l.b16 %v878
        %v1510 = vunpack.c.l.b16 %v879
        %v1511 = vunpack.c.l.b16 %v880
        %v1512 = vunpack.c.l.b16 %v881
        %v1513 = vunpack.c.l.b16 %v882
        %v1514 = vunpack.c.l.b16 %v883
        %v1515 = vunpack.c.l.b16 %v884
        %v1516 = vunpack.c.l.b16 %v885
        %v1517 = vunpack.c.l.b16 %v886
        %v1518 = vunpack.c.l.b16 %v887
        %v1519 = vunpack.c.l.b16 %v888
        %v1520 = vunpack.c.l.b16 %v889
        %v1521 = vunpack.c.l.b16 %v890
        %v1522 = vunpack.c.l.b16 %v891
        %v1523 = vunpack.c.l.b16 %v892
        %v1524 = vunpack.c.l.b16 %v893
        %v1525 = vunpack.c.l.b16 %v894
        %v1526 = vunpack.c.l.b16 %v895
        %v1527 = vunpack.c.l.b16 %v896
        %v1528 = vunpack.c.l.b16 %v897
        %v1529 = vunpack.c.l.b16 %v898
        %v1530 = vunpack.c.l.b16 %v899
        %v1531 = vunpack.c.l.b16 %v900
        %v1532 = vunpack.c.l.b16 %v901
        %v1533 = vunpack.c.l.b16 %v902
        %v1534 = vunpack.c.l.b16 %v903
        %v1535 = vunpack.c.l.b16 %v904
        %v1536 = vunpack.c.l.b16 %v905
        %v1537 = vunpack.c.l.b16 %v906
        %v1538 = vpack.c.b16 %v1475, %v1474
        %v1539 = vpack.c.b16 %v1477, %v1476
        %v1540 = vpack.c.b16 %v1479, %v1478
        %v1541 = vpack.c.b16 %v1481, %v1480
        %v1542 = vpack.c.b16 %v1483, %v1482
        %v1543 = vpack.c.b16 %v1485, %v1484
        %v1544 = vpack.c.b16 %v1487, %v1486
        %v1545 = vpack.c.b16 %v1489, %v1488
        %v1546 = vpack.c.b16 %v1491, %v1490
        %v1547 = vpack.c.b16 %v1493, %v1492
        %v1548 = vpack.c.b16 %v1495, %v1494
        %v1549 = vpack.c.b16 %v1497, %v1496
        %v1550 = vpack.c.b16 %v1499, %v1498
        %v1551 = vpack.c.b16 %v1501, %v1500
        %v1552 = vpack.c.b16 %v1503, %v1502
        %v1553 = vpack.c.b16 %v1505, %v1504
        %v1554 = vpack.c.b16 %v1507, %v1506
        %v1555 = vpack.c.b16 %v1509, %v1508
        %v1556 = vpack.c.b16 %v1511, %v1510
        %v1557 = vpack.c.b16 %v1513, %v1512
        %v1558 = vpack.c.b16 %v1515, %v1514
        %v1559 = vpack.c.b16 %v1517, %v1516
        %v1560 = vpack.c.b16 %v1519, %v1518
        %v1561 = vpack.c.b16 %v1521, %v1520
        %v1562 = vpack.c.b16 %v1523, %v1522
        %v1563 = vpack.c.b16 %v1525, %v1524
        %v1564 = vpack.c.b16 %v1527, %v1526
        %v1565 = vpack.c.b16 %v1529, %v1528
        %v1566 = vpack.c.b16 %v1531, %v1530
        %v1567 = vpack.c.b16 %v1533, %v1532
        %v1568 = vpack.c.b16 %v1535, %v1534
        %v1569 = vpack.c.b16 %v1537, %v1536
        %1602 = vmatprep.subr.bf16.mxu0 0
        %1603 = vmatpush1.bf16.msra.mxu0 %v1538
        %1604 = vmatprep.subr.bf16.mxu0 0
        %1605 = vmatpush1.bf16.msra.mxu0 %v1539
        %1606 = vmatprep.subr.bf16.mxu0 0
        %1607 = vmatpush1.bf16.msra.mxu0 %v1540
        %1608 = vmatprep.subr.bf16.mxu0 0
        %1609 = vmatpush1.bf16.msra.mxu0 %v1541
        %1610 = vmatprep.subr.bf16.mxu0 0
        %1611 = vmatpush1.bf16.msra.mxu0 %v1542
        %1612 = vmatprep.subr.bf16.mxu0 0
        %1613 = vmatpush1.bf16.msra.mxu0 %v1543
        %1614 = vmatprep.subr.bf16.mxu0 0
        %1615 = vmatpush1.bf16.msra.mxu0 %v1544
        %1616 = vmatprep.subr.bf16.mxu0 0
        %1617 = vmatpush1.bf16.msra.mxu0 %v1545
        %1618 = vmatprep.subr.bf16.mxu0 0
        %1619 = vmatpush1.bf16.msra.mxu0 %v1546
        %1620 = vmatprep.subr.bf16.mxu0 0
        %1621 = vmatpush1.bf16.msra.mxu0 %v1547
        %1622 = vmatprep.subr.bf16.mxu0 0
        %1623 = vmatpush1.bf16.msra.mxu0 %v1548
        %1624 = vmatprep.subr.bf16.mxu0 0
        %1625 = vmatpush1.bf16.msra.mxu0 %v1549
        %1626 = vmatprep.subr.bf16.mxu0 0
        %1627 = vmatpush1.bf16.msra.mxu0 %v1550
        %1628 = vmatprep.subr.bf16.mxu0 0
        %1629 = vmatpush1.bf16.msra.mxu0 %v1551
        %1630 = vmatprep.subr.bf16.mxu0 0
        %1631 = vmatpush1.bf16.msra.mxu0 %v1552
        %1632 = vmatprep.subr.bf16.mxu0 0
        %1633 = vmatpush1.bf16.msra.mxu0 %v1553
        %1634 = vmatprep.mubr.bf16.mxu0 %v1379
        %1635 = vmatmul.mubr.bf16.gmra.mrb[0].mxu0 %v1378
        %v1636 = vpop.f32.mrb[0].mxu0
        %v1637 = vadd.f32 0.0, %v1636
        %v1638 = vpop.f32.mrb[0].mxu0
        %v1639 = vpop.f32.mrb[0].mxu0
        %v1640 = vadd.f32 0.0, %v1639
        %v1641 = vpop.f32.mrb[0].mxu0
        %1642 = vmatprep.mubr.bf16.mxu0 %v1383
        %1643 = vmatmul.mubr.bf16.gmra.mrb[0].mxu0 %v1382
        %v1644 = vpop.f32.mrb[0].mxu0
        %v1645 = vadd.f32 0.0, %v1644
        %v1646 = vpop.f32.mrb[0].mxu0
        %v1647 = vpop.f32.mrb[0].mxu0
        %v1648 = vadd.f32 0.0, %v1647
        %v1649 = vpop.f32.mrb[0].mxu0
        %1650 = vmatprep.mubr.bf16.mxu0 %v1387
        %1651 = vmatmul.mubr.bf16.gmra.mrb[0].mxu0 %v1386
        %v1652 = vpop.f32.mrb[0].mxu0
        %v1653 = vadd.f32 0.0, %v1652
        %v1654 = vpop.f32.mrb[0].mxu0
        %v1655 = vpop.f32.mrb[0].mxu0
        %v1656 = vadd.f32 0.0, %v1655
        %v1657 = vpop.f32.mrb[0].mxu0
        %1658 = vmatprep.mubr.bf16.mxu0 %v1391
        %1659 = vmatmul.mubr.bf16.gmra.mrb[0].mxu0 %v1390
        %v1660 = vpop.f32.mrb[0].mxu0
        %v1661 = vadd.f32 0.0, %v1660
        %v1662 = vpop.f32.mrb[0].mxu0
        %v1663 = vpop.f32.mrb[0].mxu0
        %v1664 = vadd.f32 0.0, %v1663
        %v1665 = vpop.f32.mrb[0].mxu0
        %1666 = vmatprep.mubr.bf16.mxu0 %v1395
        %1667 = vmatmul.mubr.bf16.gmra.mrb[0].mxu0 %v1394
        %v1668 = vpop.f32.mrb[0].mxu0
        %v1669 = vadd.f32 0.0, %v1668
        %v1670 = vpop.f32.mrb[0].mxu0
        %v1671 = vpop.f32.mrb[0].mxu0
        %v1672 = vadd.f32 0.0, %v1671
        %v1673 = vpop.f32.mrb[0].mxu0
        %1674 = vmatprep.mubr.bf16.mxu0 %v1399
        %1675 = vmatmul.mubr.bf16.gmra.mrb[0].mxu0 %v1398
        %v1676 = vpop.f32.mrb[0].mxu0
        %v1677 = vadd.f32 0.0, %v1676
        %v1678 = vpop.f32.mrb[0].mxu0
        %v1679 = vpop.f32.mrb[0].mxu0
        %v1680 = vadd.f32 0.0, %v1679
        %v1681 = vpop.f32.mrb[0].mxu0
        %1682 = vmatprep.mubr.bf16.mxu0 %v1403
        %1683 = vmatmul.mubr.bf16.gmra.mrb[0].mxu0 %v1402
        %v1684 = vpop.f32.mrb[0].mxu0
        %v1685 = vadd.f32 0.0, %v1684
        %v1686 = vpop.f32.mrb[0].mxu0
        %v1687 = vpop.f32.mrb[0].mxu0
        %v1688 = vadd.f32 0.0, %v1687
        %v1689 = vpop.f32.mrb[0].mxu0
        %1690 = vmatprep.mubr.bf16.mxu0 %v1407
        %1691 = vmatmul.mubr.bf16.gmra.mrb[0].mxu0 %v1406
        %v1692 = vpop.f32.mrb[0].mxu0
        %v1693 = vadd.f32 0.0, %v1692
        %v1694 = vpop.f32.mrb[0].mxu0
        %v1695 = vpop.f32.mrb[0].mxu0
        %v1696 = vadd.f32 0.0, %v1695
        %v1697 = vpop.f32.mrb[0].mxu0
        %1698 = vdwg.mxu0
        %1699 = vmatprep.subr.bf16.mxu0 0
        %1700 = vmatpush1.bf16.msra.mxu0 %v1554
        %1701 = vmatprep.subr.bf16.mxu0 0
        %1702 = vmatpush1.bf16.msra.mxu0 %v1555
        %1703 = vmatprep.subr.bf16.mxu0 0
        %1704 = vmatpush1.bf16.msra.mxu0 %v1556
        %1705 = vmatprep.subr.bf16.mxu0 0
        %1706 = vmatpush1.bf16.msra.mxu0 %v1557
        %1707 = vmatprep.subr.bf16.mxu0 0
        %1708 = vmatpush1.bf16.msra.mxu0 %v1558
        %1709 = vmatprep.subr.bf16.mxu0 0
        %1710 = vmatpush1.bf16.msra.mxu0 %v1559
        %1711 = vmatprep.subr.bf16.mxu0 0
        %1712 = vmatpush1.bf16.msra.mxu0 %v1560
        %1713 = vmatprep.subr.bf16.mxu0 0
        %1714 = vmatpush1.bf16.msra.mxu0 %v1561
        %1715 = vmatprep.subr.bf16.mxu0 0
        %1716 = vmatpush1.bf16.msra.mxu0 %v1562
        %1717 = vmatprep.subr.bf16.mxu0 0
        %1718 = vmatpush1.bf16.msra.mxu0 %v1563
        %1719 = vmatprep.subr.bf16.mxu0 0
        %1720 = vmatpush1.bf16.msra.mxu0 %v1564
        %1721 = vmatprep.subr.bf16.mxu0 0
        %1722 = vmatpush1.bf16.msra.mxu0 %v1565
        %1723 = vmatprep.subr.bf16.mxu0 0
        %1724 = vmatpush1.bf16.msra.mxu0 %v1566
        %1725 = vmatprep.subr.bf16.mxu0 0
        %1726 = vmatpush1.bf16.msra.mxu0 %v1567
        %1727 = vmatprep.subr.bf16.mxu0 0
        %1728 = vmatpush1.bf16.msra.mxu0 %v1568
        %1729 = vmatprep.subr.bf16.mxu0 0
        %1730 = vmatpush1.bf16.msra.mxu0 %v1569
        %1731 = vmatprep.mubr.bf16.mxu0 %v1381
        %1732 = vmatmul.mubr.bf16.gmra.mrb[0].mxu0 %v1380
        %v1733 = vpop.f32.mrb[0].mxu0
        %v1734 = vadd.f32 %v1637, %v1733
        %v1735 = vpop.f32.mrb[0].mxu0
        %v1736 = vpop.f32.mrb[0].mxu0
        %v1737 = vadd.f32 %v1640, %v1736
        %v1738 = vpop.f32.mrb[0].mxu0
        %1739 = vmatprep.mubr.bf16.mxu0 %v1385
        %1740 = vmatmul.mubr.bf16.gmra.mrb[0].mxu0 %v1384
        %v1741 = vpop.f32.mrb[0].mxu0
        %v1742 = vadd.f32 %v1645, %v1741
        %v1743 = vpop.f32.mrb[0].mxu0
        %v1744 = vpop.f32.mrb[0].mxu0
        %v1745 = vadd.f32 %v1648, %v1744
        %v1746 = vpop.f32.mrb[0].mxu0
        %1747 = vmatprep.mubr.bf16.mxu0 %v1389
        %1748 = vmatmul.mubr.bf16.gmra.mrb[0].mxu0 %v1388
        %v1749 = vpop.f32.mrb[0].mxu0
        %v1750 = vadd.f32 %v1653, %v1749
        %v1751 = vpop.f32.mrb[0].mxu0
        %v1752 = vpop.f32.mrb[0].mxu0
        %v1753 = vadd.f32 %v1656, %v1752
        %v1754 = vpop.f32.mrb[0].mxu0
        %1755 = vmatprep.mubr.bf16.mxu0 %v1393
        %1756 = vmatmul.mubr.bf16.gmra.mrb[0].mxu0 %v1392
        %v1757 = vpop.f32.mrb[0].mxu0
        %v1758 = vadd.f32 %v1661, %v1757
        %v1759 = vpop.f32.mrb[0].mxu0
        %v1760 = vpop.f32.mrb[0].mxu0
        %v1761 = vadd.f32 %v1664, %v1760
        %v1762 = vpop.f32.mrb[0].mxu0
        %1763 = vmatprep.mubr.bf16.mxu0 %v1397
        %1764 = vmatmul.mubr.bf16.gmra.mrb[0].mxu0 %v1396
        %v1765 = vpop.f32.mrb[0].mxu0
        %v1766 = vadd.f32 %v1669, %v1765
        %v1767 = vpop.f32.mrb[0].mxu0
        %v1768 = vpop.f32.mrb[0].mxu0
        %v1769 = vadd.f32 %v1672, %v1768
        %v1770 = vpop.f32.mrb[0].mxu0
        %1771 = vmatprep.mubr.bf16.mxu0 %v1401
        %1772 = vmatmul.mubr.bf16.gmra.mrb[0].mxu0 %v1400
        %v1773 = vpop.f32.mrb[0].mxu0
        %v1774 = vadd.f32 %v1677, %v1773
        %v1775 = vpop.f32.mrb[0].mxu0
        %v1776 = vpop.f32.mrb[0].mxu0
        %v1777 = vadd.f32 %v1680, %v1776
        %v1778 = vpop.f32.mrb[0].mxu0
        %1779 = vmatprep.mubr.bf16.mxu0 %v1405
        %1780 = vmatmul.mubr.bf16.gmra.mrb[0].mxu0 %v1404
        %v1781 = vpop.f32.mrb[0].mxu0
        %v1782 = vadd.f32 %v1685, %v1781
        %v1783 = vpop.f32.mrb[0].mxu0
        %v1784 = vpop.f32.mrb[0].mxu0
        %v1785 = vadd.f32 %v1688, %v1784
        %v1786 = vpop.f32.mrb[0].mxu0
        %1787 = vmatprep.mubr.bf16.mxu0 %v1409
        %1788 = vmatmul.mubr.bf16.gmra.mrb[0].mxu0 %v1408
        %v1789 = vpop.f32.mrb[0].mxu0
        %v1790 = vadd.f32 %v1693, %v1789
        %v1791 = vpop.f32.mrb[0].mxu0
        %v1792 = vpop.f32.mrb[0].mxu0
        %v1793 = vadd.f32 %v1696, %v1792
        %v1794 = vpop.f32.mrb[0].mxu0
        %1795 = vdwg.mxu0
        %v1796 = vadd.f32 %v518, %v1734
        %v1797 = vadd.f32 %v521, %v1737
        %v1798 = vadd.f32 %v526, %v1742
        %v1799 = vadd.f32 %v529, %v1745
        %v1800 = vadd.f32 %v534, %v1750
        %v1801 = vadd.f32 %v537, %v1753
        %v1802 = vadd.f32 %v542, %v1758
        %v1803 = vadd.f32 %v545, %v1761
        %v1804 = vadd.f32 %v550, %v1766
        %v1805 = vadd.f32 %v553, %v1769
        %v1806 = vadd.f32 %v558, %v1774
        %v1807 = vadd.f32 %v561, %v1777
        %v1808 = vadd.f32 %v566, %v1782
        %v1809 = vadd.f32 %v569, %v1785
        %v1810 = vadd.f32 %v574, %v1790
        %v1811 = vadd.f32 %v577, %v1793
        %v1812 = vld [vmem:[%s8] sm:$0x1]
        %v1814 = vlaneseq
        %v1815 = vshrl.u32 %v1814, 7
        %v1816 = vsub.s32 0, %v1815
        %v1817 = vrot.slane %v1812, %v1816
        %v1819 = vadd.f32 %v1796, %v1817
        %v1820 = vadd.f32 %v1797, %v1817
        %v1821 = vadd.f32 %v1798, %v1817
        %v1822 = vadd.f32 %v1799, %v1817
        %v1823 = vadd.f32 %v1800, %v1817
        %v1824 = vadd.f32 %v1801, %v1817
        %v1825 = vadd.f32 %v1802, %v1817
        %v1826 = vadd.f32 %v1803, %v1817
        %v1827 = vadd.f32 %v1804, %v1817
        %v1828 = vadd.f32 %v1805, %v1817
        %v1829 = vadd.f32 %v1806, %v1817
        %v1830 = vadd.f32 %v1807, %v1817
        %v1831 = vadd.f32 %v1808, %v1817
        %v1832 = vadd.f32 %v1809, %v1817
        %v1833 = vadd.f32 %v1810, %v1817
        %v1834 = vadd.f32 %v1811, %v1817
        %s1835 = scalar_lea.vmem %s3, 1
        %v1836 = vld [vmem:[%s1835] sm:$0x1]
        %s1837 = scalar_lea.vmem %s4, 1
        %v1838 = vld [vmem:[%s1837] sm:$0x1]
        %1839 = vadd.xlane.f32.xlu0 %v1819
        %v1840 = vpop.xlane.xlu0 %1839
        %1841 = vadd.xlane.f32.xlu0 %v1820
        %v1842 = vpop.xlane.xlu0 %1841
        %1843 = vadd.xlane.f32.xlu0 %v1821
        %v1844 = vpop.xlane.xlu0 %1843
        %1845 = vadd.xlane.f32.xlu0 %v1822
        %v1846 = vpop.xlane.xlu0 %1845
        %1847 = vadd.xlane.f32.xlu0 %v1823
        %v1848 = vpop.xlane.xlu0 %1847
        %1849 = vadd.xlane.f32.xlu0 %v1824
        %v1850 = vpop.xlane.xlu0 %1849
        %1851 = vadd.xlane.f32.xlu0 %v1825
        %v1852 = vpop.xlane.xlu0 %1851
        %1853 = vadd.xlane.f32.xlu0 %v1826
        %v1854 = vpop.xlane.xlu0 %1853
        %1855 = vadd.xlane.f32.xlu0 %v1827
        %v1856 = vpop.xlane.xlu0 %1855
        %1857 = vadd.xlane.f32.xlu0 %v1828
        %v1858 = vpop.xlane.xlu0 %1857
        %1859 = vadd.xlane.f32.xlu0 %v1829
        %v1860 = vpop.xlane.xlu0 %1859
        %1861 = vadd.xlane.f32.xlu0 %v1830
        %v1862 = vpop.xlane.xlu0 %1861
        %1863 = vadd.xlane.f32.xlu0 %v1831
        %v1864 = vpop.xlane.xlu0 %1863
        %1865 = vadd.xlane.f32.xlu0 %v1832
        %v1866 = vpop.xlane.xlu0 %1865
        %1867 = vadd.xlane.f32.xlu0 %v1833
        %v1868 = vpop.xlane.xlu0 %1867
        %1869 = vadd.xlane.f32.xlu0 %v1834
        %v1870 = vpop.xlane.xlu0 %1869
        %v1871 = vmul.f32 %v1840, 0.0078125
        %v1872 = vmul.f32 %v1842, 0.0078125
        %v1873 = vmul.f32 %v1844, 0.0078125
        %v1874 = vmul.f32 %v1846, 0.0078125
        %v1875 = vmul.f32 %v1848, 0.0078125
        %v1876 = vmul.f32 %v1850, 0.0078125
        %v1877 = vmul.f32 %v1852, 0.0078125
        %v1878 = vmul.f32 %v1854, 0.0078125
        %v1879 = vmul.f32 %v1856, 0.0078125
        %v1880 = vmul.f32 %v1858, 0.0078125
        %v1881 = vmul.f32 %v1860, 0.0078125
        %v1882 = vmul.f32 %v1862, 0.0078125
        %v1883 = vmul.f32 %v1864, 0.0078125
        %v1884 = vmul.f32 %v1866, 0.0078125
        %v1885 = vmul.f32 %v1868, 0.0078125
        %v1886 = vmul.f32 %v1870, 0.0078125
        %v1887 = vsub.f32 %v1819, %v1871
        %v1888 = vsub.f32 %v1820, %v1872
        %v1889 = vsub.f32 %v1821, %v1873
        %v1890 = vsub.f32 %v1822, %v1874
        %v1891 = vsub.f32 %v1823, %v1875
        %v1892 = vsub.f32 %v1824, %v1876
        %v1893 = vsub.f32 %v1825, %v1877
        %v1894 = vsub.f32 %v1826, %v1878
        %v1895 = vsub.f32 %v1827, %v1879
        %v1896 = vsub.f32 %v1828, %v1880
        %v1897 = vsub.f32 %v1829, %v1881
        %v1898 = vsub.f32 %v1830, %v1882
        %v1899 = vsub.f32 %v1831, %v1883
        %v1900 = vsub.f32 %v1832, %v1884
        %v1901 = vsub.f32 %v1833, %v1885
        %v1902 = vsub.f32 %v1834, %v1886
        %v1903 = vmul.f32 %v1887, %v1887
        %v1904 = vmul.f32 %v1888, %v1888
        %v1905 = vmul.f32 %v1889, %v1889
        %v1906 = vmul.f32 %v1890, %v1890
        %v1907 = vmul.f32 %v1891, %v1891
        %v1908 = vmul.f32 %v1892, %v1892
        %v1909 = vmul.f32 %v1893, %v1893
        %v1910 = vmul.f32 %v1894, %v1894
        %v1911 = vmul.f32 %v1895, %v1895
        %v1912 = vmul.f32 %v1896, %v1896
        %v1913 = vmul.f32 %v1897, %v1897
        %v1914 = vmul.f32 %v1898, %v1898
        %v1915 = vmul.f32 %v1899, %v1899
        %v1916 = vmul.f32 %v1900, %v1900
        %v1917 = vmul.f32 %v1901, %v1901
        %v1918 = vmul.f32 %v1902, %v1902
        %1919 = vadd.xlane.f32.xlu0 %v1903
        %v1920 = vpop.xlane.xlu0 %1919
        %1921 = vadd.xlane.f32.xlu0 %v1904
        %v1922 = vpop.xlane.xlu0 %1921
        %1923 = vadd.xlane.f32.xlu0 %v1905
        %v1924 = vpop.xlane.xlu0 %1923
        %1925 = vadd.xlane.f32.xlu0 %v1906
        %v1926 = vpop.xlane.xlu0 %1925
        %1927 = vadd.xlane.f32.xlu0 %v1907
        %v1928 = vpop.xlane.xlu0 %1927
        %1929 = vadd.xlane.f32.xlu0 %v1908
        %v1930 = vpop.xlane.xlu0 %1929
        %1931 = vadd.xlane.f32.xlu0 %v1909
        %v1932 = vpop.xlane.xlu0 %1931
        %1933 = vadd.xlane.f32.xlu0 %v1910
        %v1934 = vpop.xlane.xlu0 %1933
        %1935 = vadd.xlane.f32.xlu0 %v1911
        %v1936 = vpop.xlane.xlu0 %1935
        %1937 = vadd.xlane.f32.xlu0 %v1912
        %v1938 = vpop.xlane.xlu0 %1937
        %1939 = vadd.xlane.f32.xlu0 %v1913
        %v1940 = vpop.xlane.xlu0 %1939
        %1941 = vadd.xlane.f32.xlu0 %v1914
        %v1942 = vpop.xlane.xlu0 %1941
        %1943 = vadd.xlane.f32.xlu0 %v1915
        %v1944 = vpop.xlane.xlu0 %1943
        %1945 = vadd.xlane.f32.xlu0 %v1916
        %v1946 = vpop.xlane.xlu0 %1945
        %1947 = vadd.xlane.f32.xlu0 %v1917
        %v1948 = vpop.xlane.xlu0 %1947
        %1949 = vadd.xlane.f32.xlu0 %v1918
        %v1950 = vpop.xlane.xlu0 %1949
        %v1951 = vmul.f32 %v1920, 0.0078125
        %v1952 = vmul.f32 %v1922, 0.0078125
        %v1953 = vmul.f32 %v1924, 0.0078125
        %v1954 = vmul.f32 %v1926, 0.0078125
        %v1955 = vmul.f32 %v1928, 0.0078125
        %v1956 = vmul.f32 %v1930, 0.0078125
        %v1957 = vmul.f32 %v1932, 0.0078125
        %v1958 = vmul.f32 %v1934, 0.0078125
        %v1959 = vmul.f32 %v1936, 0.0078125
        %v1960 = vmul.f32 %v1938, 0.0078125
        %v1961 = vmul.f32 %v1940, 0.0078125
        %v1962 = vmul.f32 %v1942, 0.0078125
        %v1963 = vmul.f32 %v1944, 0.0078125
        %v1964 = vmul.f32 %v1946, 0.0078125
        %v1965 = vmul.f32 %v1948, 0.0078125
        %v1966 = vmul.f32 %v1950, 0.0078125
        %v1967 = vadd.f32 %v1951, 1e-05
        %v1968 = vadd.f32 %v1952, 1e-05
        %v1969 = vadd.f32 %v1953, 1e-05
        %v1970 = vadd.f32 %v1954, 1e-05
        %v1971 = vadd.f32 %v1955, 1e-05
        %v1972 = vadd.f32 %v1956, 1e-05
        %v1973 = vadd.f32 %v1957, 1e-05
        %v1974 = vadd.f32 %v1958, 1e-05
        %v1975 = vadd.f32 %v1959, 1e-05
        %v1976 = vadd.f32 %v1960, 1e-05
        %v1977 = vadd.f32 %v1961, 1e-05
        %v1978 = vadd.f32 %v1962, 1e-05
        %v1979 = vadd.f32 %v1963, 1e-05
        %v1980 = vadd.f32 %v1964, 1e-05
        %v1981 = vadd.f32 %v1965, 1e-05
        %v1982 = vadd.f32 %v1966, 1e-05
        %v1983 = vrsqrt.pop %v1967
        %v1984 = vrsqrt.pop %v1968
        %v1985 = vrsqrt.pop %v1969
        %v1986 = vrsqrt.pop %v1970
        %v1987 = vrsqrt.pop %v1971
        %v1988 = vrsqrt.pop %v1972
        %v1989 = vrsqrt.pop %v1973
        %v1990 = vrsqrt.pop %v1974
        %v1991 = vrsqrt.pop %v1975
        %v1992 = vrsqrt.pop %v1976
        %v1993 = vrsqrt.pop %v1977
        %v1994 = vrsqrt.pop %v1978
        %v1995 = vrsqrt.pop %v1979
        %v1996 = vrsqrt.pop %v1980
        %v1997 = vrsqrt.pop %v1981
        %v1998 = vrsqrt.pop %v1982
        %v1999 = vmul.f32 %v1887, %v1983
        %v2000 = vmul.f32 %v1888, %v1984
        %v2001 = vmul.f32 %v1889, %v1985
        %v2002 = vmul.f32 %v1890, %v1986
        %v2003 = vmul.f32 %v1891, %v1987
        %v2004 = vmul.f32 %v1892, %v1988
        %v2005 = vmul.f32 %v1893, %v1989
        %v2006 = vmul.f32 %v1894, %v1990
        %v2007 = vmul.f32 %v1895, %v1991
        %v2008 = vmul.f32 %v1896, %v1992
        %v2009 = vmul.f32 %v1897, %v1993
        %v2010 = vmul.f32 %v1898, %v1994
        %v2011 = vmul.f32 %v1899, %v1995
        %v2012 = vmul.f32 %v1900, %v1996
        %v2013 = vmul.f32 %v1901, %v1997
        %v2014 = vmul.f32 %v1902, %v1998
        %v2016 = vlaneseq
        %v2017 = vshrl.u32 %v2016, 7
        %v2018 = vsub.s32 0, %v2017
        %v2019 = vrot.slane %v1836, %v2018
        %v2021 = vmul.f32 %v1999, %v2019
        %v2022 = vmul.f32 %v2000, %v2019
        %v2023 = vmul.f32 %v2001, %v2019
        %v2024 = vmul.f32 %v2002, %v2019
        %v2025 = vmul.f32 %v2003, %v2019
        %v2026 = vmul.f32 %v2004, %v2019
        %v2027 = vmul.f32 %v2005, %v2019
        %v2028 = vmul.f32 %v2006, %v2019
        %v2029 = vmul.f32 %v2007, %v2019
        %v2030 = vmul.f32 %v2008, %v2019
        %v2031 = vmul.f32 %v2009, %v2019
        %v2032 = vmul.f32 %v2010, %v2019
        %v2033 = vmul.f32 %v2011, %v2019
        %v2034 = vmul.f32 %v2012, %v2019
        %v2035 = vmul.f32 %v2013, %v2019
        %v2036 = vmul.f32 %v2014, %v2019
        %v2038 = vlaneseq
        %v2039 = vshrl.u32 %v2038, 7
        %v2040 = vsub.s32 0, %v2039
        %v2041 = vrot.slane %v1838, %v2040
        %v2043 = vadd.f32 %v2021, %v2041
        %v2044 = vadd.f32 %v2022, %v2041
        %v2045 = vadd.f32 %v2023, %v2041
        %v2046 = vadd.f32 %v2024, %v2041
        %v2047 = vadd.f32 %v2025, %v2041
        %v2048 = vadd.f32 %v2026, %v2041
        %v2049 = vadd.f32 %v2027, %v2041
        %v2050 = vadd.f32 %v2028, %v2041
        %v2051 = vadd.f32 %v2029, %v2041
        %v2052 = vadd.f32 %v2030, %v2041
        %v2053 = vadd.f32 %v2031, %v2041
        %v2054 = vadd.f32 %v2032, %v2041
        %v2055 = vadd.f32 %v2033, %v2041
        %v2056 = vadd.f32 %v2034, %v2041
        %v2057 = vadd.f32 %v2035, %v2041
        %v2058 = vadd.f32 %v2036, %v2041
        %v2059 = vpack.c.bf16 %v2044, %v2043
        %v2060 = vpack.c.bf16 %v2046, %v2045
        %v2061 = vpack.c.bf16 %v2048, %v2047
        %v2062 = vpack.c.bf16 %v2050, %v2049
        %v2063 = vpack.c.bf16 %v2052, %v2051
        %v2064 = vpack.c.bf16 %v2054, %v2053
        %v2065 = vpack.c.bf16 %v2056, %v2055
        %v2066 = vpack.c.bf16 %v2058, %v2057
        %s2067 = scalar_lea.vmem [#allocation2], 256
        %v2068 = vld [vmem:[%s2067] sm:$0xff]
        %v2069 = vld [vmem:[%s2067 + $0x8] sm:$0xff]
        %v2070 = vld [vmem:[%s2067 + $0x10] sm:$0xff]
        %v2071 = vld [vmem:[%s2067 + $0x18] sm:$0xff]
        %v2072 = vld [vmem:[%s2067 + $0x20] sm:$0xff]
        %v2073 = vld [vmem:[%s2067 + $0x28] sm:$0xff]
        %v2074 = vld [vmem:[%s2067 + $0x30] sm:$0xff]
        %v2075 = vld [vmem:[%s2067 + $0x38] sm:$0xff]
        %v2076 = vld [vmem:[%s2067 + $0x40] sm:$0xff]
        %v2077 = vld [vmem:[%s2067 + $0x48] sm:$0xff]
        %v2078 = vld [vmem:[%s2067 + $0x50] sm:$0xff]
        %v2079 = vld [vmem:[%s2067 + $0x58] sm:$0xff]
        %v2080 = vld [vmem:[%s2067 + $0x60] sm:$0xff]
        %v2081 = vld [vmem:[%s2067 + $0x68] sm:$0xff]
        %v2082 = vld [vmem:[%s2067 + $0x70] sm:$0xff]
        %v2083 = vld [vmem:[%s2067 + $0x78] sm:$0xff]
        %v2084 = vld [vmem:[%s2067 + $0x80] sm:$0xff]
        %v2085 = vld [vmem:[%s2067 + $0x88] sm:$0xff]
        %v2086 = vld [vmem:[%s2067 + $0x90] sm:$0xff]
        %v2087 = vld [vmem:[%s2067 + $0x98] sm:$0xff]
        %v2088 = vld [vmem:[%s2067 + $0xa0] sm:$0xff]
        %v2089 = vld [vmem:[%s2067 + $0xa8] sm:$0xff]
        %v2090 = vld [vmem:[%s2067 + $0xb0] sm:$0xff]
        %v2091 = vld [vmem:[%s2067 + $0xb8] sm:$0xff]
        %v2092 = vld [vmem:[%s2067 + $0xc0] sm:$0xff]
        %v2093 = vld [vmem:[%s2067 + $0xc8] sm:$0xff]
        %v2094 = vld [vmem:[%s2067 + $0xd0] sm:$0xff]
        %v2095 = vld [vmem:[%s2067 + $0xd8] sm:$0xff]
        %v2096 = vld [vmem:[%s2067 + $0xe0] sm:$0xff]
        %v2097 = vld [vmem:[%s2067 + $0xe8] sm:$0xff]
        %v2098 = vld [vmem:[%s2067 + $0xf0] sm:$0xff]
        %v2099 = vld [vmem:[%s2067 + $0xf8] sm:$0xff]
        %s2100 = scalar_lea.vmem %s6, 4
        %v2101 = vld [vmem:[%s2100] sm:$0xf]
        %s2102 = scalar_lea.vmem [#allocation5], 256
        %v2103 = vld [vmem:[%s2102] sm:$0xf]
        %v2104 = vld [vmem:[%s2102 + $0x4] sm:$0xf]
        %v2105 = vld [vmem:[%s2102 + $0x8] sm:$0xf]
        %v2106 = vld [vmem:[%s2102 + $0xc] sm:$0xf]
        %v2107 = vld [vmem:[%s2102 + $0x10] sm:$0xf]
        %v2108 = vld [vmem:[%s2102 + $0x14] sm:$0xf]
        %v2109 = vld [vmem:[%s2102 + $0x18] sm:$0xf]
        %v2110 = vld [vmem:[%s2102 + $0x1c] sm:$0xf]
        %v2111 = vld [vmem:[%s2102 + $0x20] sm:$0xf]
        %v2112 = vld [vmem:[%s2102 + $0x24] sm:$0xf]
        %v2113 = vld [vmem:[%s2102 + $0x28] sm:$0xf]
        %v2114 = vld [vmem:[%s2102 + $0x2c] sm:$0xf]
        %v2115 = vld [vmem:[%s2102 + $0x30] sm:$0xf]
        %v2116 = vld [vmem:[%s2102 + $0x34] sm:$0xf]
        %v2117 = vld [vmem:[%s2102 + $0x38] sm:$0xf]
        %v2118 = vld [vmem:[%s2102 + $0x3c] sm:$0xf]
        %v2119 = vld [vmem:[%s2102 + $0x40] sm:$0xf]
        %v2120 = vld [vmem:[%s2102 + $0x44] sm:$0xf]
        %v2121 = vld [vmem:[%s2102 + $0x48] sm:$0xf]
        %v2122 = vld [vmem:[%s2102 + $0x4c] sm:$0xf]
        %v2123 = vld [vmem:[%s2102 + $0x50] sm:$0xf]
        %v2124 = vld [vmem:[%s2102 + $0x54] sm:$0xf]
        %v2125 = vld [vmem:[%s2102 + $0x58] sm:$0xf]
        %v2126 = vld [vmem:[%s2102 + $0x5c] sm:$0xf]
        %v2127 = vld [vmem:[%s2102 + $0x60] sm:$0xf]
        %v2128 = vld [vmem:[%s2102 + $0x64] sm:$0xf]
        %v2129 = vld [vmem:[%s2102 + $0x68] sm:$0xf]
        %v2130 = vld [vmem:[%s2102 + $0x6c] sm:$0xf]
        %v2131 = vld [vmem:[%s2102 + $0x70] sm:$0xf]
        %v2132 = vld [vmem:[%s2102 + $0x74] sm:$0xf]
        %v2133 = vld [vmem:[%s2102 + $0x78] sm:$0xf]
        %v2134 = vld [vmem:[%s2102 + $0x7c] sm:$0xf]
        %v2135 = vld [vmem:[%s2102 + $0x80] sm:$0xf]
        %v2136 = vld [vmem:[%s2102 + $0x84] sm:$0xf]
        %v2137 = vld [vmem:[%s2102 + $0x88] sm:$0xf]
        %v2138 = vld [vmem:[%s2102 + $0x8c] sm:$0xf]
        %v2139 = vld [vmem:[%s2102 + $0x90] sm:$0xf]
        %v2140 = vld [vmem:[%s2102 + $0x94] sm:$0xf]
        %v2141 = vld [vmem:[%s2102 + $0x98] sm:$0xf]
        %v2142 = vld [vmem:[%s2102 + $0x9c] sm:$0xf]
        %v2143 = vld [vmem:[%s2102 + $0xa0] sm:$0xf]
        %v2144 = vld [vmem:[%s2102 + $0xa4] sm:$0xf]
        %v2145 = vld [vmem:[%s2102 + $0xa8] sm:$0xf]
        %v2146 = vld [vmem:[%s2102 + $0xac] sm:$0xf]
        %v2147 = vld [vmem:[%s2102 + $0xb0] sm:$0xf]
        %v2148 = vld [vmem:[%s2102 + $0xb4] sm:$0xf]
        %v2149 = vld [vmem:[%s2102 + $0xb8] sm:$0xf]
        %v2150 = vld [vmem:[%s2102 + $0xbc] sm:$0xf]
        %v2151 = vld [vmem:[%s2102 + $0xc0] sm:$0xf]
        %v2152 = vld [vmem:[%s2102 + $0xc4] sm:$0xf]
        %v2153 = vld [vmem:[%s2102 + $0xc8] sm:$0xf]
        %v2154 = vld [vmem:[%s2102 + $0xcc] sm:$0xf]
        %v2155 = vld [vmem:[%s2102 + $0xd0] sm:$0xf]
        %v2156 = vld [vmem:[%s2102 + $0xd4] sm:$0xf]
        %v2157 = vld [vmem:[%s2102 + $0xd8] sm:$0xf]
        %v2158 = vld [vmem:[%s2102 + $0xdc] sm:$0xf]
        %v2159 = vld [vmem:[%s2102 + $0xe0] sm:$0xf]
        %v2160 = vld [vmem:[%s2102 + $0xe4] sm:$0xf]
        %v2161 = vld [vmem:[%s2102 + $0xe8] sm:$0xf]
        %v2162 = vld [vmem:[%s2102 + $0xec] sm:$0xf]
        %v2163 = vld [vmem:[%s2102 + $0xf0] sm:$0xf]
        %v2164 = vld [vmem:[%s2102 + $0xf4] sm:$0xf]
        %v2165 = vld [vmem:[%s2102 + $0xf8] sm:$0xf]
        %v2166 = vld [vmem:[%s2102 + $0xfc] sm:$0xf]
        %v2168 = vlaneseq
        %v2169 = vshrl.u32 %v2168, 7
        %v2170 = vsub.s32 0, %v2169
        %v2171 = vrot.slane %v2101, %v2170
        %v2172 = vlaneseq
        %v2173 = vshrl.u32 %v2172, 7
        %v2174 = vsub.s32 1, %v2173
        %v2175 = vrot.slane %v2101, %v2174
        %v2176 = vlaneseq
        %v2177 = vshrl.u32 %v2176, 7
        %v2178 = vsub.s32 2, %v2177
        %v2179 = vrot.slane %v2101, %v2178
        %v2180 = vlaneseq
        %v2181 = vshrl.u32 %v2180, 7
        %v2182 = vsub.s32 3, %v2181
        %v2183 = vrot.slane %v2101, %v2182
        %v2220 = vunpack.c.l.b16 %v2068
        %v2221 = vunpack.c.h.b16 %v2068
        %v2222 = vunpack.c.l.b16 %v2069
        %v2223 = vunpack.c.h.b16 %v2069
        %v2224 = vunpack.c.l.b16 %v2070
        %v2225 = vunpack.c.h.b16 %v2070
        %v2226 = vunpack.c.l.b16 %v2071
        %v2227 = vunpack.c.h.b16 %v2071
        %v2228 = vunpack.c.l.b16 %v2072
        %v2229 = vunpack.c.h.b16 %v2072
        %v2230 = vunpack.c.l.b16 %v2073
        %v2231 = vunpack.c.h.b16 %v2073
        %v2232 = vunpack.c.l.b16 %v2074
        %v2233 = vunpack.c.h.b16 %v2074
        %v2234 = vunpack.c.l.b16 %v2075
        %v2235 = vunpack.c.h.b16 %v2075
        %v2236 = vunpack.c.l.b16 %v2076
        %v2237 = vunpack.c.h.b16 %v2076
        %v2238 = vunpack.c.l.b16 %v2077
        %v2239 = vunpack.c.h.b16 %v2077
        %v2240 = vunpack.c.l.b16 %v2078
        %v2241 = vunpack.c.h.b16 %v2078
        %v2242 = vunpack.c.l.b16 %v2079
        %v2243 = vunpack.c.h.b16 %v2079
        %v2244 = vunpack.c.l.b16 %v2080
        %v2245 = vunpack.c.h.b16 %v2080
        %v2246 = vunpack.c.l.b16 %v2081
        %v2247 = vunpack.c.h.b16 %v2081
        %v2248 = vunpack.c.l.b16 %v2082
        %v2249 = vunpack.c.h.b16 %v2082
        %v2250 = vunpack.c.l.b16 %v2083
        %v2251 = vunpack.c.h.b16 %v2083
        %v2252 = vunpack.c.l.b16 %v2084
        %v2253 = vunpack.c.h.b16 %v2084
        %v2254 = vunpack.c.l.b16 %v2085
        %v2255 = vunpack.c.h.b16 %v2085
        %v2256 = vunpack.c.l.b16 %v2086
        %v2257 = vunpack.c.h.b16 %v2086
        %v2258 = vunpack.c.l.b16 %v2087
        %v2259 = vunpack.c.h.b16 %v2087
        %v2260 = vunpack.c.l.b16 %v2088
        %v2261 = vunpack.c.h.b16 %v2088
        %v2262 = vunpack.c.l.b16 %v2089
        %v2263 = vunpack.c.h.b16 %v2089
        %v2264 = vunpack.c.l.b16 %v2090
        %v2265 = vunpack.c.h.b16 %v2090
        %v2266 = vunpack.c.l.b16 %v2091
        %v2267 = vunpack.c.h.b16 %v2091
        %v2268 = vunpack.c.l.b16 %v2092
        %v2269 = vunpack.c.h.b16 %v2092
        %v2270 = vunpack.c.l.b16 %v2093
        %v2271 = vunpack.c.h.b16 %v2093
        %v2272 = vunpack.c.l.b16 %v2094
        %v2273 = vunpack.c.h.b16 %v2094
        %v2274 = vunpack.c.l.b16 %v2095
        %v2275 = vunpack.c.h.b16 %v2095
        %v2276 = vunpack.c.l.b16 %v2096
        %v2277 = vunpack.c.h.b16 %v2096
        %v2278 = vunpack.c.l.b16 %v2097
        %v2279 = vunpack.c.h.b16 %v2097
        %v2280 = vunpack.c.l.b16 %v2098
        %v2281 = vunpack.c.h.b16 %v2098
        %v2282 = vunpack.c.l.b16 %v2099
        %v2283 = vunpack.c.h.b16 %v2099
        %v2284 = vpack.c.b16 %v2224, %v2220
        %v2285 = vpack.c.b16 %v2225, %v2221
        %v2286 = vpack.c.b16 %v2226, %v2222
        %v2287 = vpack.c.b16 %v2227, %v2223
        %v2288 = vpack.c.b16 %v2232, %v2228
        %v2289 = vpack.c.b16 %v2233, %v2229
        %v2290 = vpack.c.b16 %v2234, %v2230
        %v2291 = vpack.c.b16 %v2235, %v2231
        %v2292 = vpack.c.b16 %v2240, %v2236
        %v2293 = vpack.c.b16 %v2241, %v2237
        %v2294 = vpack.c.b16 %v2242, %v2238
        %v2295 = vpack.c.b16 %v2243, %v2239
        %v2296 = vpack.c.b16 %v2248, %v2244
        %v2297 = vpack.c.b16 %v2249, %v2245
        %v2298 = vpack.c.b16 %v2250, %v2246
        %v2299 = vpack.c.b16 %v2251, %v2247
        %v2300 = vpack.c.b16 %v2256, %v2252
        %v2301 = vpack.c.b16 %v2257, %v2253
        %v2302 = vpack.c.b16 %v2258, %v2254
        %v2303 = vpack.c.b16 %v2259, %v2255
        %v2304 = vpack.c.b16 %v2264, %v2260
        %v2305 = vpack.c.b16 %v2265, %v2261
        %v2306 = vpack.c.b16 %v2266, %v2262
        %v2307 = vpack.c.b16 %v2267, %v2263
        %v2308 = vpack.c.b16 %v2272, %v2268
        %v2309 = vpack.c.b16 %v2273, %v2269
        %v2310 = vpack.c.b16 %v2274, %v2270
        %v2311 = vpack.c.b16 %v2275, %v2271
        %v2312 = vpack.c.b16 %v2280, %v2276
        %v2313 = vpack.c.b16 %v2281, %v2277
        %v2314 = vpack.c.b16 %v2282, %v2278
        %v2315 = vpack.c.b16 %v2283, %v2279
        %2348 = vmatprep.subr.bf16.mxu0 %v2285
        %2349 = vmatpush1.bf16.msra.mxu0 %v2284
        %2350 = vmatprep.subr.bf16.mxu0 %v2289
        %2351 = vmatpush1.bf16.msra.mxu0 %v2288
        %2352 = vmatprep.subr.bf16.mxu0 %v2293
        %2353 = vmatpush1.bf16.msra.mxu0 %v2292
        %2354 = vmatprep.subr.bf16.mxu0 %v2297
        %2355 = vmatpush1.bf16.msra.mxu0 %v2296
        %2356 = vmatprep.subr.bf16.mxu0 %v2301
        %2357 = vmatpush1.bf16.msra.mxu0 %v2300
        %2358 = vmatprep.subr.bf16.mxu0 %v2305
        %2359 = vmatpush1.bf16.msra.mxu0 %v2304
        %2360 = vmatprep.subr.bf16.mxu0 %v2309
        %2361 = vmatpush1.bf16.msra.mxu0 %v2308
        %2362 = vmatprep.subr.bf16.mxu0 %v2313
        %2363 = vmatpush1.bf16.msra.mxu0 %v2312
        %2364 = vmatprep.subr.bf16.mxu0 0
        %2365 = vmatpush1.bf16.msra.mxu0 0
        %2366 = vmatprep.subr.bf16.mxu0 0
        %2367 = vmatpush1.bf16.msra.mxu0 0
        %2368 = vmatprep.subr.bf16.mxu0 0
        %2369 = vmatpush1.bf16.msra.mxu0 0
        %2370 = vmatprep.subr.bf16.mxu0 0
        %2371 = vmatpush1.bf16.msra.mxu0 0
        %2372 = vmatprep.subr.bf16.mxu0 0
        %2373 = vmatpush1.bf16.msra.mxu0 0
        %2374 = vmatprep.subr.bf16.mxu0 0
        %2375 = vmatpush1.bf16.msra.mxu0 0
        %2376 = vmatprep.subr.bf16.mxu0 0
        %2377 = vmatpush1.bf16.msra.mxu0 0
        %2378 = vmatprep.subr.bf16.mxu0 0
        %2379 = vmatpush1.bf16.msra.mxu0 0
        %2380 = vmatprep.mubr.bf16.mxu0 0
        %2381 = vmatmul.mubr.bf16.gmra.mrb[0].mxu0 %v2059
        %v2382 = vpop.f32.mrb[0].mxu0
        %v2383 = vadd.f32 %v2171, %v2382
        %v2384 = vpop.f32.mrb[0].mxu0
        %v2385 = vadd.f32 %v2175, %v2384
        %v2386 = vpop.f32.mrb[0].mxu0
        %v2387 = vadd.f32 %v2171, %v2386
        %v2388 = vpop.f32.mrb[0].mxu0
        %v2389 = vadd.f32 %v2175, %v2388
        %2390 = vmatprep.mubr.bf16.mxu0 0
        %2391 = vmatmul.mubr.bf16.gmra.mrb[0].mxu0 %v2060
        %v2392 = vpop.f32.mrb[0].mxu0
        %v2393 = vadd.f32 %v2171, %v2392
        %v2394 = vpop.f32.mrb[0].mxu0
        %v2395 = vadd.f32 %v2175, %v2394
        %v2396 = vpop.f32.mrb[0].mxu0
        %v2397 = vadd.f32 %v2171, %v2396
        %v2398 = vpop.f32.mrb[0].mxu0
        %v2399 = vadd.f32 %v2175, %v2398
        %2400 = vmatprep.mubr.bf16.mxu0 0
        %2401 = vmatmul.mubr.bf16.gmra.mrb[0].mxu0 %v2061
        %v2402 = vpop.f32.mrb[0].mxu0
        %v2403 = vadd.f32 %v2171, %v2402
        %v2404 = vpop.f32.mrb[0].mxu0
        %v2405 = vadd.f32 %v2175, %v2404
        %v2406 = vpop.f32.mrb[0].mxu0
        %v2407 = vadd.f32 %v2171, %v2406
        %v2408 = vpop.f32.mrb[0].mxu0
        %v2409 = vadd.f32 %v2175, %v2408
        %2410 = vmatprep.mubr.bf16.mxu0 0
        %2411 = vmatmul.mubr.bf16.gmra.mrb[0].mxu0 %v2062
        %v2412 = vpop.f32.mrb[0].mxu0
        %v2413 = vadd.f32 %v2171, %v2412
        %v2414 = vpop.f32.mrb[0].mxu0
        %v2415 = vadd.f32 %v2175, %v2414
        %v2416 = vpop.f32.mrb[0].mxu0
        %v2417 = vadd.f32 %v2171, %v2416
        %v2418 = vpop.f32.mrb[0].mxu0
        %v2419 = vadd.f32 %v2175, %v2418
        %2420 = vmatprep.mubr.bf16.mxu0 0
        %2421 = vmatmul.mubr.bf16.gmra.mrb[0].mxu0 %v2063
        %v2422 = vpop.f32.mrb[0].mxu0
        %v2423 = vadd.f32 %v2171, %v2422
        %v2424 = vpop.f32.mrb[0].mxu0
        %v2425 = vadd.f32 %v2175, %v2424
        %v2426 = vpop.f32.mrb[0].mxu0
        %v2427 = vadd.f32 %v2171, %v2426
        %v2428 = vpop.f32.mrb[0].mxu0
        %v2429 = vadd.f32 %v2175, %v2428
        %2430 = vmatprep.mubr.bf16.mxu0 0
        %2431 = vmatmul.mubr.bf16.gmra.mrb[0].mxu0 %v2064
        %v2432 = vpop.f32.mrb[0].mxu0
        %v2433 = vadd.f32 %v2171, %v2432
        %v2434 = vpop.f32.mrb[0].mxu0
        %v2435 = vadd.f32 %v2175, %v2434
        %v2436 = vpop.f32.mrb[0].mxu0
        %v2437 = vadd.f32 %v2171, %v2436
        %v2438 = vpop.f32.mrb[0].mxu0
        %v2439 = vadd.f32 %v2175, %v2438
        %2440 = vmatprep.mubr.bf16.mxu0 0
        %2441 = vmatmul.mubr.bf16.gmra.mrb[0].mxu0 %v2065
        %v2442 = vpop.f32.mrb[0].mxu0
        %v2443 = vadd.f32 %v2171, %v2442
        %v2444 = vpop.f32.mrb[0].mxu0
        %v2445 = vadd.f32 %v2175, %v2444
        %v2446 = vpop.f32.mrb[0].mxu0
        %v2447 = vadd.f32 %v2171, %v2446
        %v2448 = vpop.f32.mrb[0].mxu0
        %v2449 = vadd.f32 %v2175, %v2448
        %2450 = vmatprep.mubr.bf16.mxu0 0
        %2451 = vmatmul.mubr.bf16.gmra.mrb[0].mxu0 %v2066
        %v2452 = vpop.f32.mrb[0].mxu0
        %v2453 = vadd.f32 %v2171, %v2452
        %v2454 = vpop.f32.mrb[0].mxu0
        %v2455 = vadd.f32 %v2175, %v2454
        %v2456 = vpop.f32.mrb[0].mxu0
        %v2457 = vadd.f32 %v2171, %v2456
        %v2458 = vpop.f32.mrb[0].mxu0
        %v2459 = vadd.f32 %v2175, %v2458
        %2460 = vdwg.mxu0
        %2461 = vmatprep.subr.bf16.mxu0 %v2287
        %2462 = vmatpush1.bf16.msra.mxu0 %v2286
        %2463 = vmatprep.subr.bf16.mxu0 %v2291
        %2464 = vmatpush1.bf16.msra.mxu0 %v2290
        %2465 = vmatprep.subr.bf16.mxu0 %v2295
        %2466 = vmatpush1.bf16.msra.mxu0 %v2294
        %2467 = vmatprep.subr.bf16.mxu0 %v2299
        %2468 = vmatpush1.bf16.msra.mxu0 %v2298
        %2469 = vmatprep.subr.bf16.mxu0 %v2303
        %2470 = vmatpush1.bf16.msra.mxu0 %v2302
        %2471 = vmatprep.subr.bf16.mxu0 %v2307
        %2472 = vmatpush1.bf16.msra.mxu0 %v2306
        %2473 = vmatprep.subr.bf16.mxu0 %v2311
        %2474 = vmatpush1.bf16.msra.mxu0 %v2310
        %2475 = vmatprep.subr.bf16.mxu0 %v2315
        %2476 = vmatpush1.bf16.msra.mxu0 %v2314
        %2477 = vmatprep.subr.bf16.mxu0 0
        %2478 = vmatpush1.bf16.msra.mxu0 0
        %2479 = vmatprep.subr.bf16.mxu0 0
        %2480 = vmatpush1.bf16.msra.mxu0 0
        %2481 = vmatprep.subr.bf16.mxu0 0
        %2482 = vmatpush1.bf16.msra.mxu0 0
        %2483 = vmatprep.subr.bf16.mxu0 0
        %2484 = vmatpush1.bf16.msra.mxu0 0
        %2485 = vmatprep.subr.bf16.mxu0 0
        %2486 = vmatpush1.bf16.msra.mxu0 0
        %2487 = vmatprep.subr.bf16.mxu0 0
        %2488 = vmatpush1.bf16.msra.mxu0 0
        %2489 = vmatprep.subr.bf16.mxu0 0
        %2490 = vmatpush1.bf16.msra.mxu0 0
        %2491 = vmatprep.subr.bf16.mxu0 0
        %2492 = vmatpush1.bf16.msra.mxu0 0
        %2493 = vmatprep.mubr.bf16.mxu0 0
        %2494 = vmatmul.mubr.bf16.gmra.mrb[0].mxu0 %v2059
        %v2495 = vpop.f32.mrb[0].mxu0
        %v2496 = vadd.f32 %v2179, %v2495
        %v2497 = vpop.f32.mrb[0].mxu0
        %v2498 = vadd.f32 %v2183, %v2497
        %v2499 = vpop.f32.mrb[0].mxu0
        %v2500 = vadd.f32 %v2179, %v2499
        %v2501 = vpop.f32.mrb[0].mxu0
        %v2502 = vadd.f32 %v2183, %v2501
        %2503 = vmatprep.mubr.bf16.mxu0 0
        %2504 = vmatmul.mubr.bf16.gmra.mrb[0].mxu0 %v2060
        %v2505 = vpop.f32.mrb[0].mxu0
        %v2506 = vadd.f32 %v2179, %v2505
        %v2507 = vpop.f32.mrb[0].mxu0
        %v2508 = vadd.f32 %v2183, %v2507
        %v2509 = vpop.f32.mrb[0].mxu0
        %v2510 = vadd.f32 %v2179, %v2509
        %v2511 = vpop.f32.mrb[0].mxu0
        %v2512 = vadd.f32 %v2183, %v2511
        %2513 = vmatprep.mubr.bf16.mxu0 0
        %2514 = vmatmul.mubr.bf16.gmra.mrb[0].mxu0 %v2061
        %v2515 = vpop.f32.mrb[0].mxu0
        %v2516 = vadd.f32 %v2179, %v2515
        %v2517 = vpop.f32.mrb[0].mxu0
        %v2518 = vadd.f32 %v2183, %v2517
        %v2519 = vpop.f32.mrb[0].mxu0
        %v2520 = vadd.f32 %v2179, %v2519
        %v2521 = vpop.f32.mrb[0].mxu0
        %v2522 = vadd.f32 %v2183, %v2521
        %2523 = vmatprep.mubr.bf16.mxu0 0
        %2524 = vmatmul.mubr.bf16.gmra.mrb[0].mxu0 %v2062
        %v2525 = vpop.f32.mrb[0].mxu0
        %v2526 = vadd.f32 %v2179, %v2525
        %v2527 = vpop.f32.mrb[0].mxu0
        %v2528 = vadd.f32 %v2183, %v2527
        %v2529 = vpop.f32.mrb[0].mxu0
        %v2530 = vadd.f32 %v2179, %v2529
        %v2531 = vpop.f32.mrb[0].mxu0
        %v2532 = vadd.f32 %v2183, %v2531
        %2533 = vmatprep.mubr.bf16.mxu0 0
        %2534 = vmatmul.mubr.bf16.gmra.mrb[0].mxu0 %v2063
        %v2535 = vpop.f32.mrb[0].mxu0
        %v2536 = vadd.f32 %v2179, %v2535
        %v2537 = vpop.f32.mrb[0].mxu0
        %v2538 = vadd.f32 %v2183, %v2537
        %v2539 = vpop.f32.mrb[0].mxu0
        %v2540 = vadd.f32 %v2179, %v2539
        %v2541 = vpop.f32.mrb[0].mxu0
        %v2542 = vadd.f32 %v2183, %v2541
        %2543 = vmatprep.mubr.bf16.mxu0 0
        %2544 = vmatmul.mubr.bf16.gmra.mrb[0].mxu0 %v2064
        %v2545 = vpop.f32.mrb[0].mxu0
        %v2546 = vadd.f32 %v2179, %v2545
        %v2547 = vpop.f32.mrb[0].mxu0
        %v2548 = vadd.f32 %v2183, %v2547
        %v2549 = vpop.f32.mrb[0].mxu0
        %v2550 = vadd.f32 %v2179, %v2549
        %v2551 = vpop.f32.mrb[0].mxu0
        %v2552 = vadd.f32 %v2183, %v2551
        %2553 = vmatprep.mubr.bf16.mxu0 0
        %2554 = vmatmul.mubr.bf16.gmra.mrb[0].mxu0 %v2065
        %v2555 = vpop.f32.mrb[0].mxu0
        %v2556 = vadd.f32 %v2179, %v2555
        %v2557 = vpop.f32.mrb[0].mxu0
        %v2558 = vadd.f32 %v2183, %v2557
        %v2559 = vpop.f32.mrb[0].mxu0
        %v2560 = vadd.f32 %v2179, %v2559
        %v2561 = vpop.f32.mrb[0].mxu0
        %v2562 = vadd.f32 %v2183, %v2561
        %2563 = vmatprep.mubr.bf16.mxu0 0
        %2564 = vmatmul.mubr.bf16.gmra.mrb[0].mxu0 %v2066
        %v2565 = vpop.f32.mrb[0].mxu0
        %v2566 = vadd.f32 %v2179, %v2565
        %v2567 = vpop.f32.mrb[0].mxu0
        %v2568 = vadd.f32 %v2183, %v2567
        %v2569 = vpop.f32.mrb[0].mxu0
        %v2570 = vadd.f32 %v2179, %v2569
        %v2571 = vpop.f32.mrb[0].mxu0
        %v2572 = vadd.f32 %v2183, %v2571
        %2573 = vdwg.mxu0
        %v2574 = vmax.f32 %v2383, 0.0
        %v2575 = vmax.f32 %v2385, 0.0
        %v2576 = vmax.f32 %v2496, 0.0
        %v2577 = vmax.f32 %v2498, 0.0
        %v2578 = vmax.f32 %v2387, 0.0
        %v2579 = vmax.f32 %v2389, 0.0
        %v2580 = vmax.f32 %v2500, 0.0
        %v2581 = vmax.f32 %v2502, 0.0
        %v2582 = vmax.f32 %v2393, 0.0
        %v2583 = vmax.f32 %v2395, 0.0
        %v2584 = vmax.f32 %v2506, 0.0
        %v2585 = vmax.f32 %v2508, 0.0
        %v2586 = vmax.f32 %v2397, 0.0
        %v2587 = vmax.f32 %v2399, 0.0
        %v2588 = vmax.f32 %v2510, 0.0
        %v2589 = vmax.f32 %v2512, 0.0
        %v2590 = vmax.f32 %v2403, 0.0
        %v2591 = vmax.f32 %v2405, 0.0
        %v2592 = vmax.f32 %v2516, 0.0
        %v2593 = vmax.f32 %v2518, 0.0
        %v2594 = vmax.f32 %v2407, 0.0
        %v2595 = vmax.f32 %v2409, 0.0
        %v2596 = vmax.f32 %v2520, 0.0
        %v2597 = vmax.f32 %v2522, 0.0
        %v2598 = vmax.f32 %v2413, 0.0
        %v2599 = vmax.f32 %v2415, 0.0
        %v2600 = vmax.f32 %v2526, 0.0
        %v2601 = vmax.f32 %v2528, 0.0
        %v2602 = vmax.f32 %v2417, 0.0
        %v2603 = vmax.f32 %v2419, 0.0
        %v2604 = vmax.f32 %v2530, 0.0
        %v2605 = vmax.f32 %v2532, 0.0
        %v2606 = vmax.f32 %v2423, 0.0
        %v2607 = vmax.f32 %v2425, 0.0
        %v2608 = vmax.f32 %v2536, 0.0
        %v2609 = vmax.f32 %v2538, 0.0
        %v2610 = vmax.f32 %v2427, 0.0
        %v2611 = vmax.f32 %v2429, 0.0
        %v2612 = vmax.f32 %v2540, 0.0
        %v2613 = vmax.f32 %v2542, 0.0
        %v2614 = vmax.f32 %v2433, 0.0
        %v2615 = vmax.f32 %v2435, 0.0
        %v2616 = vmax.f32 %v2546, 0.0
        %v2617 = vmax.f32 %v2548, 0.0
        %v2618 = vmax.f32 %v2437, 0.0
        %v2619 = vmax.f32 %v2439, 0.0
        %v2620 = vmax.f32 %v2550, 0.0
        %v2621 = vmax.f32 %v2552, 0.0
        %v2622 = vmax.f32 %v2443, 0.0
        %v2623 = vmax.f32 %v2445, 0.0
        %v2624 = vmax.f32 %v2556, 0.0
        %v2625 = vmax.f32 %v2558, 0.0
        %v2626 = vmax.f32 %v2447, 0.0
        %v2627 = vmax.f32 %v2449, 0.0
        %v2628 = vmax.f32 %v2560, 0.0
        %v2629 = vmax.f32 %v2562, 0.0
        %v2630 = vmax.f32 %v2453, 0.0
        %v2631 = vmax.f32 %v2455, 0.0
        %v2632 = vmax.f32 %v2566, 0.0
        %v2633 = vmax.f32 %v2568, 0.0
        %v2634 = vmax.f32 %v2457, 0.0
        %v2635 = vmax.f32 %v2459, 0.0
        %v2636 = vmax.f32 %v2570, 0.0
        %v2637 = vmax.f32 %v2572, 0.0
        %v2638 = vpack.c.bf16 %v2578, %v2574
        %v2639 = vpack.c.bf16 %v2579, %v2575
        %v2640 = vpack.c.bf16 %v2580, %v2576
        %v2641 = vpack.c.bf16 %v2581, %v2577
        %v2642 = vpack.c.bf16 %v2586, %v2582
        %v2643 = vpack.c.bf16 %v2587, %v2583
        %v2644 = vpack.c.bf16 %v2588, %v2584
        %v2645 = vpack.c.bf16 %v2589, %v2585
        %v2646 = vpack.c.bf16 %v2594, %v2590
        %v2647 = vpack.c.bf16 %v2595, %v2591
        %v2648 = vpack.c.bf16 %v2596, %v2592
        %v2649 = vpack.c.bf16 %v2597, %v2593
        %v2650 = vpack.c.bf16 %v2602, %v2598
        %v2651 = vpack.c.bf16 %v2603, %v2599
        %v2652 = vpack.c.bf16 %v2604, %v2600
        %v2653 = vpack.c.bf16 %v2605, %v2601
        %v2654 = vpack.c.bf16 %v2610, %v2606
        %v2655 = vpack.c.bf16 %v2611, %v2607
        %v2656 = vpack.c.bf16 %v2612, %v2608
        %v2657 = vpack.c.bf16 %v2613, %v2609
        %v2658 = vpack.c.bf16 %v2618, %v2614
        %v2659 = vpack.c.bf16 %v2619, %v2615
        %v2660 = vpack.c.bf16 %v2620, %v2616
        %v2661 = vpack.c.bf16 %v2621, %v2617
        %v2662 = vpack.c.bf16 %v2626, %v2622
        %v2663 = vpack.c.bf16 %v2627, %v2623
        %v2664 = vpack.c.bf16 %v2628, %v2624
        %v2665 = vpack.c.bf16 %v2629, %v2625
        %v2666 = vpack.c.bf16 %v2634, %v2630
        %v2667 = vpack.c.bf16 %v2635, %v2631
        %v2668 = vpack.c.bf16 %v2636, %v2632
        %v2669 = vpack.c.bf16 %v2637, %v2633
        %v2734 = vunpack.c.l.b16 %v2103
        %v2735 = vunpack.c.l.b16 %v2104
        %v2736 = vunpack.c.l.b16 %v2105
        %v2737 = vunpack.c.l.b16 %v2106
        %v2738 = vunpack.c.l.b16 %v2107
        %v2739 = vunpack.c.l.b16 %v2108
        %v2740 = vunpack.c.l.b16 %v2109
        %v2741 = vunpack.c.l.b16 %v2110
        %v2742 = vunpack.c.l.b16 %v2111
        %v2743 = vunpack.c.l.b16 %v2112
        %v2744 = vunpack.c.l.b16 %v2113
        %v2745 = vunpack.c.l.b16 %v2114
        %v2746 = vunpack.c.l.b16 %v2115
        %v2747 = vunpack.c.l.b16 %v2116
        %v2748 = vunpack.c.l.b16 %v2117
        %v2749 = vunpack.c.l.b16 %v2118
        %v2750 = vunpack.c.l.b16 %v2119
        %v2751 = vunpack.c.l.b16 %v2120
        %v2752 = vunpack.c.l.b16 %v2121
        %v2753 = vunpack.c.l.b16 %v2122
        %v2754 = vunpack.c.l.b16 %v2123
        %v2755 = vunpack.c.l.b16 %v2124
        %v2756 = vunpack.c.l.b16 %v2125
        %v2757 = vunpack.c.l.b16 %v2126
        %v2758 = vunpack.c.l.b16 %v2127
        %v2759 = vunpack.c.l.b16 %v2128
        %v2760 = vunpack.c.l.b16 %v2129
        %v2761 = vunpack.c.l.b16 %v2130
        %v2762 = vunpack.c.l.b16 %v2131
        %v2763 = vunpack.c.l.b16 %v2132
        %v2764 = vunpack.c.l.b16 %v2133
        %v2765 = vunpack.c.l.b16 %v2134
        %v2766 = vunpack.c.l.b16 %v2135
        %v2767 = vunpack.c.l.b16 %v2136
        %v2768 = vunpack.c.l.b16 %v2137
        %v2769 = vunpack.c.l.b16 %v2138
        %v2770 = vunpack.c.l.b16 %v2139
        %v2771 = vunpack.c.l.b16 %v2140
        %v2772 = vunpack.c.l.b16 %v2141
        %v2773 = vunpack.c.l.b16 %v2142
        %v2774 = vunpack.c.l.b16 %v2143
        %v2775 = vunpack.c.l.b16 %v2144
        %v2776 = vunpack.c.l.b16 %v2145
        %v2777 = vunpack.c.l.b16 %v2146
        %v2778 = vunpack.c.l.b16 %v2147
        %v2779 = vunpack.c.l.b16 %v2148
        %v2780 = vunpack.c.l.b16 %v2149
        %v2781 = vunpack.c.l.b16 %v2150
        %v2782 = vunpack.c.l.b16 %v2151
        %v2783 = vunpack.c.l.b16 %v2152
        %v2784 = vunpack.c.l.b16 %v2153
        %v2785 = vunpack.c.l.b16 %v2154
        %v2786 = vunpack.c.l.b16 %v2155
        %v2787 = vunpack.c.l.b16 %v2156
        %v2788 = vunpack.c.l.b16 %v2157
        %v2789 = vunpack.c.l.b16 %v2158
        %v2790 = vunpack.c.l.b16 %v2159
        %v2791 = vunpack.c.l.b16 %v2160
        %v2792 = vunpack.c.l.b16 %v2161
        %v2793 = vunpack.c.l.b16 %v2162
        %v2794 = vunpack.c.l.b16 %v2163
        %v2795 = vunpack.c.l.b16 %v2164
        %v2796 = vunpack.c.l.b16 %v2165
        %v2797 = vunpack.c.l.b16 %v2166
        %v2798 = vpack.c.b16 %v2735, %v2734
        %v2799 = vpack.c.b16 %v2737, %v2736
        %v2800 = vpack.c.b16 %v2739, %v2738
        %v2801 = vpack.c.b16 %v2741, %v2740
        %v2802 = vpack.c.b16 %v2743, %v2742
        %v2803 = vpack.c.b16 %v2745, %v2744
        %v2804 = vpack.c.b16 %v2747, %v2746
        %v2805 = vpack.c.b16 %v2749, %v2748
        %v2806 = vpack.c.b16 %v2751, %v2750
        %v2807 = vpack.c.b16 %v2753, %v2752
        %v2808 = vpack.c.b16 %v2755, %v2754
        %v2809 = vpack.c.b16 %v2757, %v2756
        %v2810 = vpack.c.b16 %v2759, %v2758
        %v2811 = vpack.c.b16 %v2761, %v2760
        %v2812 = vpack.c.b16 %v2763, %v2762
        %v2813 = vpack.c.b16 %v2765, %v2764
        %v2814 = vpack.c.b16 %v2767, %v2766
        %v2815 = vpack.c.b16 %v2769, %v2768
        %v2816 = vpack.c.b16 %v2771, %v2770
        %v2817 = vpack.c.b16 %v2773, %v2772
        %v2818 = vpack.c.b16 %v2775, %v2774
        %v2819 = vpack.c.b16 %v2777, %v2776
        %v2820 = vpack.c.b16 %v2779, %v2778
        %v2821 = vpack.c.b16 %v2781, %v2780
        %v2822 = vpack.c.b16 %v2783, %v2782
        %v2823 = vpack.c.b16 %v2785, %v2784
        %v2824 = vpack.c.b16 %v2787, %v2786
        %v2825 = vpack.c.b16 %v2789, %v2788
        %v2826 = vpack.c.b16 %v2791, %v2790
        %v2827 = vpack.c.b16 %v2793, %v2792
        %v2828 = vpack.c.b16 %v2795, %v2794
        %v2829 = vpack.c.b16 %v2797, %v2796
        %2862 = vmatprep.subr.bf16.mxu0 0
        %2863 = vmatpush1.bf16.msra.mxu0 %v2798
        %2864 = vmatprep.subr.bf16.mxu0 0
        %2865 = vmatpush1.bf16.msra.mxu0 %v2799
        %2866 = vmatprep.subr.bf16.mxu0 0
        %2867 = vmatpush1.bf16.msra.mxu0 %v2800
        %2868 = vmatprep.subr.bf16.mxu0 0
        %2869 = vmatpush1.bf16.msra.mxu0 %v2801
        %2870 = vmatprep.subr.bf16.mxu0 0
        %2871 = vmatpush1.bf16.msra.mxu0 %v2802
        %2872 = vmatprep.subr.bf16.mxu0 0
        %2873 = vmatpush1.bf16.msra.mxu0 %v2803
        %2874 = vmatprep.subr.bf16.mxu0 0
        %2875 = vmatpush1.bf16.msra.mxu0 %v2804
        %2876 = vmatprep.subr.bf16.mxu0 0
        %2877 = vmatpush1.bf16.msra.mxu0 %v2805
        %2878 = vmatprep.subr.bf16.mxu0 0
        %2879 = vmatpush1.bf16.msra.mxu0 %v2806
        %2880 = vmatprep.subr.bf16.mxu0 0
        %2881 = vmatpush1.bf16.msra.mxu0 %v2807
        %2882 = vmatprep.subr.bf16.mxu0 0
        %2883 = vmatpush1.bf16.msra.mxu0 %v2808
        %2884 = vmatprep.subr.bf16.mxu0 0
        %2885 = vmatpush1.bf16.msra.mxu0 %v2809
        %2886 = vmatprep.subr.bf16.mxu0 0
        %2887 = vmatpush1.bf16.msra.mxu0 %v2810
        %2888 = vmatprep.subr.bf16.mxu0 0
        %2889 = vmatpush1.bf16.msra.mxu0 %v2811
        %2890 = vmatprep.subr.bf16.mxu0 0
        %2891 = vmatpush1.bf16.msra.mxu0 %v2812
        %2892 = vmatprep.subr.bf16.mxu0 0
        %2893 = vmatpush1.bf16.msra.mxu0 %v2813
        %2894 = vmatprep.mubr.bf16.mxu0 %v2639
        %2895 = vmatmul.mubr.bf16.gmra.mrb[0].mxu0 %v2638
        %v2896 = vpop.f32.mrb[0].mxu0
        %v2897 = vadd.f32 0.0, %v2896
        %v2898 = vpop.f32.mrb[0].mxu0
        %v2899 = vpop.f32.mrb[0].mxu0
        %v2900 = vadd.f32 0.0, %v2899
        %v2901 = vpop.f32.mrb[0].mxu0
        %2902 = vmatprep.mubr.bf16.mxu0 %v2643
        %2903 = vmatmul.mubr.bf16.gmra.mrb[0].mxu0 %v2642
        %v2904 = vpop.f32.mrb[0].mxu0
        %v2905 = vadd.f32 0.0, %v2904
        %v2906 = vpop.f32.mrb[0].mxu0
        %v2907 = vpop.f32.mrb[0].mxu0
        %v2908 = vadd.f32 0.0, %v2907
        %v2909 = vpop.f32.mrb[0].mxu0
        %2910 = vmatprep.mubr.bf16.mxu0 %v2647
        %2911 = vmatmul.mubr.bf16.gmra.mrb[0].mxu0 %v2646
        %v2912 = vpop.f32.mrb[0].mxu0
        %v2913 = vadd.f32 0.0, %v2912
        %v2914 = vpop.f32.mrb[0].mxu0
        %v2915 = vpop.f32.mrb[0].mxu0
        %v2916 = vadd.f32 0.0, %v2915
        %v2917 = vpop.f32.mrb[0].mxu0
        %2918 = vmatprep.mubr.bf16.mxu0 %v2651
        %2919 = vmatmul.mubr.bf16.gmra.mrb[0].mxu0 %v2650
        %v2920 = vpop.f32.mrb[0].mxu0
        %v2921 = vadd.f32 0.0, %v2920
        %v2922 = vpop.f32.mrb[0].mxu0
        %v2923 = vpop.f32.mrb[0].mxu0
        %v2924 = vadd.f32 0.0, %v2923
        %v2925 = vpop.f32.mrb[0].mxu0
        %2926 = vmatprep.mubr.bf16.mxu0 %v2655
        %2927 = vmatmul.mubr.bf16.gmra.mrb[0].mxu0 %v2654
        %v2928 = vpop.f32.mrb[0].mxu0
        %v2929 = vadd.f32 0.0, %v2928
        %v2930 = vpop.f32.mrb[0].mxu0
        %v2931 = vpop.f32.mrb[0].mxu0
        %v2932 = vadd.f32 0.0, %v2931
        %v2933 = vpop.f32.mrb[0].mxu0
        %2934 = vmatprep.mubr.bf16.mxu0 %v2659
        %2935 = vmatmul.mubr.bf16.gmra.mrb[0].mxu0 %v2658
        %v2936 = vpop.f32.mrb[0].mxu0
        %v2937 = vadd.f32 0.0, %v2936
        %v2938 = vpop.f32.mrb[0].mxu0
        %v2939 = vpop.f32.mrb[0].mxu0
        %v2940 = vadd.f32 0.0, %v2939
        %v2941 = vpop.f32.mrb[0].mxu0
        %2942 = vmatprep.mubr.bf16.mxu0 %v2663
        %2943 = vmatmul.mubr.bf16.gmra.mrb[0].mxu0 %v2662
        %v2944 = vpop.f32.mrb[0].mxu0
        %v2945 = vadd.f32 0.0, %v2944
        %v2946 = vpop.f32.mrb[0].mxu0
        %v2947 = vpop.f32.mrb[0].mxu0
        %v2948 = vadd.f32 0.0, %v2947
        %v2949 = vpop.f32.mrb[0].mxu0
        %2950 = vmatprep.mubr.bf16.mxu0 %v2667
        %2951 = vmatmul.mubr.bf16.gmra.mrb[0].mxu0 %v2666
        %v2952 = vpop.f32.mrb[0].mxu0
        %v2953 = vadd.f32 0.0, %v2952
        %v2954 = vpop.f32.mrb[0].mxu0
        %v2955 = vpop.f32.mrb[0].mxu0
        %v2956 = vadd.f32 0.0, %v2955
        %v2957 = vpop.f32.mrb[0].mxu0
        %2958 = vdwg.mxu0
        %2959 = vmatprep.subr.bf16.mxu0 0
        %2960 = vmatpush1.bf16.msra.mxu0 %v2814
        %2961 = vmatprep.subr.bf16.mxu0 0
        %2962 = vmatpush1.bf16.msra.mxu0 %v2815
        %2963 = vmatprep.subr.bf16.mxu0 0
        %2964 = vmatpush1.bf16.msra.mxu0 %v2816
        %2965 = vmatprep.subr.bf16.mxu0 0
        %2966 = vmatpush1.bf16.msra.mxu0 %v2817
        %2967 = vmatprep.subr.bf16.mxu0 0
        %2968 = vmatpush1.bf16.msra.mxu0 %v2818
        %2969 = vmatprep.subr.bf16.mxu0 0
        %2970 = vmatpush1.bf16.msra.mxu0 %v2819
        %2971 = vmatprep.subr.bf16.mxu0 0
        %2972 = vmatpush1.bf16.msra.mxu0 %v2820
        %2973 = vmatprep.subr.bf16.mxu0 0
        %2974 = vmatpush1.bf16.msra.mxu0 %v2821
        %2975 = vmatprep.subr.bf16.mxu0 0
        %2976 = vmatpush1.bf16.msra.mxu0 %v2822
        %2977 = vmatprep.subr.bf16.mxu0 0
        %2978 = vmatpush1.bf16.msra.mxu0 %v2823
        %2979 = vmatprep.subr.bf16.mxu0 0
        %2980 = vmatpush1.bf16.msra.mxu0 %v2824
        %2981 = vmatprep.subr.bf16.mxu0 0
        %2982 = vmatpush1.bf16.msra.mxu0 %v2825
        %2983 = vmatprep.subr.bf16.mxu0 0
        %2984 = vmatpush1.bf16.msra.mxu0 %v2826
        %2985 = vmatprep.subr.bf16.mxu0 0
        %2986 = vmatpush1.bf16.msra.mxu0 %v2827
        %2987 = vmatprep.subr.bf16.mxu0 0
        %2988 = vmatpush1.bf16.msra.mxu0 %v2828
        %2989 = vmatprep.subr.bf16.mxu0 0
        %2990 = vmatpush1.bf16.msra.mxu0 %v2829
        %2991 = vmatprep.mubr.bf16.mxu0 %v2641
        %2992 = vmatmul.mubr.bf16.gmra.mrb[0].mxu0 %v2640
        %v2993 = vpop.f32.mrb[0].mxu0
        %v2994 = vadd.f32 %v2897, %v2993
        %v2995 = vpop.f32.mrb[0].mxu0
        %v2996 = vpop.f32.mrb[0].mxu0
        %v2997 = vadd.f32 %v2900, %v2996
        %v2998 = vpop.f32.mrb[0].mxu0
        %2999 = vmatprep.mubr.bf16.mxu0 %v2645
        %3000 = vmatmul.mubr.bf16.gmra.mrb[0].mxu0 %v2644
        %v3001 = vpop.f32.mrb[0].mxu0
        %v3002 = vadd.f32 %v2905, %v3001
        %v3003 = vpop.f32.mrb[0].mxu0
        %v3004 = vpop.f32.mrb[0].mxu0
        %v3005 = vadd.f32 %v2908, %v3004
        %v3006 = vpop.f32.mrb[0].mxu0
        %3007 = vmatprep.mubr.bf16.mxu0 %v2649
        %3008 = vmatmul.mubr.bf16.gmra.mrb[0].mxu0 %v2648
        %v3009 = vpop.f32.mrb[0].mxu0
        %v3010 = vadd.f32 %v2913, %v3009
        %v3011 = vpop.f32.mrb[0].mxu0
        %v3012 = vpop.f32.mrb[0].mxu0
        %v3013 = vadd.f32 %v2916, %v3012
        %v3014 = vpop.f32.mrb[0].mxu0
        %3015 = vmatprep.mubr.bf16.mxu0 %v2653
        %3016 = vmatmul.mubr.bf16.gmra.mrb[0].mxu0 %v2652
        %v3017 = vpop.f32.mrb[0].mxu0
        %v3018 = vadd.f32 %v2921, %v3017
        %v3019 = vpop.f32.mrb[0].mxu0
        %v3020 = vpop.f32.mrb[0].mxu0
        %v3021 = vadd.f32 %v2924, %v3020
        %v3022 = vpop.f32.mrb[0].mxu0
        %3023 = vmatprep.mubr.bf16.mxu0 %v2657
        %3024 = vmatmul.mubr.bf16.gmra.mrb[0].mxu0 %v2656
        %v3025 = vpop.f32.mrb[0].mxu0
        %v3026 = vadd.f32 %v2929, %v3025
        %v3027 = vpop.f32.mrb[0].mxu0
        %v3028 = vpop.f32.mrb[0].mxu0
        %v3029 = vadd.f32 %v2932, %v3028
        %v3030 = vpop.f32.mrb[0].mxu0
        %3031 = vmatprep.mubr.bf16.mxu0 %v2661
        %3032 = vmatmul.mubr.bf16.gmra.mrb[0].mxu0 %v2660
        %v3033 = vpop.f32.mrb[0].mxu0
        %v3034 = vadd.f32 %v2937, %v3033
        %v3035 = vpop.f32.mrb[0].mxu0
        %v3036 = vpop.f32.mrb[0].mxu0
        %v3037 = vadd.f32 %v2940, %v3036
        %v3038 = vpop.f32.mrb[0].mxu0
        %3039 = vmatprep.mubr.bf16.mxu0 %v2665
        %3040 = vmatmul.mubr.bf16.gmra.mrb[0].mxu0 %v2664
        %v3041 = vpop.f32.mrb[0].mxu0
        %v3042 = vadd.f32 %v2945, %v3041
        %v3043 = vpop.f32.mrb[0].mxu0
        %v3044 = vpop.f32.mrb[0].mxu0
        %v3045 = vadd.f32 %v2948, %v3044
        %v3046 = vpop.f32.mrb[0].mxu0
        %3047 = vmatprep.mubr.bf16.mxu0 %v2669
        %3048 = vmatmul.mubr.bf16.gmra.mrb[0].mxu0 %v2668
        %v3049 = vpop.f32.mrb[0].mxu0
        %v3050 = vadd.f32 %v2953, %v3049
        %v3051 = vpop.f32.mrb[0].mxu0
        %v3052 = vpop.f32.mrb[0].mxu0
        %v3053 = vadd.f32 %v2956, %v3052
        %v3054 = vpop.f32.mrb[0].mxu0
        %3055 = vdwg.mxu0
        %v3056 = vadd.f32 %v1819, %v2994
        %v3057 = vadd.f32 %v1820, %v2997
        %v3058 = vadd.f32 %v1821, %v3002
        %v3059 = vadd.f32 %v1822, %v3005
        %v3060 = vadd.f32 %v1823, %v3010
        %v3061 = vadd.f32 %v1824, %v3013
        %v3062 = vadd.f32 %v1825, %v3018
        %v3063 = vadd.f32 %v1826, %v3021
        %v3064 = vadd.f32 %v1827, %v3026
        %v3065 = vadd.f32 %v1828, %v3029
        %v3066 = vadd.f32 %v1829, %v3034
        %v3067 = vadd.f32 %v1830, %v3037
        %v3068 = vadd.f32 %v1831, %v3042
        %v3069 = vadd.f32 %v1832, %v3045
        %v3070 = vadd.f32 %v1833, %v3050
        %v3071 = vadd.f32 %v1834, %v3053
        %s3072 = scalar_lea.vmem %s8, 1
        %v3073 = vld [vmem:[%s3072] sm:$0x1]
        %v3075 = vlaneseq
        %v3076 = vshrl.u32 %v3075, 7
        %v3077 = vsub.s32 0, %v3076
        %v3078 = vrot.slane %v3073, %v3077
        %v3080 = vadd.f32 %v3056, %v3078
        %v3081 = vadd.f32 %v3057, %v3078
        %v3082 = vadd.f32 %v3058, %v3078
        %v3083 = vadd.f32 %v3059, %v3078
        %v3084 = vadd.f32 %v3060, %v3078
        %v3085 = vadd.f32 %v3061, %v3078
        %v3086 = vadd.f32 %v3062, %v3078
        %v3087 = vadd.f32 %v3063, %v3078
        %v3088 = vadd.f32 %v3064, %v3078
        %v3089 = vadd.f32 %v3065, %v3078
        %v3090 = vadd.f32 %v3066, %v3078
        %v3091 = vadd.f32 %v3067, %v3078
        %v3092 = vadd.f32 %v3068, %v3078
        %v3093 = vadd.f32 %v3069, %v3078
        %v3094 = vadd.f32 %v3070, %v3078
        %v3095 = vadd.f32 %v3071, %v3078
        %v3096 = vld [vmem:[%s9] sm:$0x1]
        %v3097 = vld [vmem:[%s10] sm:$0x1]
        %3098 = vadd.xlane.f32.xlu0 %v3080
        %v3099 = vpop.xlane.xlu0 %3098
        %3100 = vadd.xlane.f32.xlu0 %v3081
        %v3101 = vpop.xlane.xlu0 %3100
        %3102 = vadd.xlane.f32.xlu0 %v3082
        %v3103 = vpop.xlane.xlu0 %3102
        %3104 = vadd.xlane.f32.xlu0 %v3083
        %v3105 = vpop.xlane.xlu0 %3104
        %3106 = vadd.xlane.f32.xlu0 %v3084
        %v3107 = vpop.xlane.xlu0 %3106
        %3108 = vadd.xlane.f32.xlu0 %v3085
        %v3109 = vpop.xlane.xlu0 %3108
        %3110 = vadd.xlane.f32.xlu0 %v3086
        %v3111 = vpop.xlane.xlu0 %3110
        %3112 = vadd.xlane.f32.xlu0 %v3087
        %v3113 = vpop.xlane.xlu0 %3112
        %3114 = vadd.xlane.f32.xlu0 %v3088
        %v3115 = vpop.xlane.xlu0 %3114
        %3116 = vadd.xlane.f32.xlu0 %v3089
        %v3117 = vpop.xlane.xlu0 %3116
        %3118 = vadd.xlane.f32.xlu0 %v3090
        %v3119 = vpop.xlane.xlu0 %3118
        %3120 = vadd.xlane.f32.xlu0 %v3091
        %v3121 = vpop.xlane.xlu0 %3120
        %3122 = vadd.xlane.f32.xlu0 %v3092
        %v3123 = vpop.xlane.xlu0 %3122
        %3124 = vadd.xlane.f32.xlu0 %v3093
        %v3125 = vpop.xlane.xlu0 %3124
        %3126 = vadd.xlane.f32.xlu0 %v3094
        %v3127 = vpop.xlane.xlu0 %3126
        %3128 = vadd.xlane.f32.xlu0 %v3095
        %v3129 = vpop.xlane.xlu0 %3128
        %v3130 = vmul.f32 %v3099, 0.0078125
        %v3131 = vmul.f32 %v3101, 0.0078125
        %v3132 = vmul.f32 %v3103, 0.0078125
        %v3133 = vmul.f32 %v3105, 0.0078125
        %v3134 = vmul.f32 %v3107, 0.0078125
        %v3135 = vmul.f32 %v3109, 0.0078125
        %v3136 = vmul.f32 %v3111, 0.0078125
        %v3137 = vmul.f32 %v3113, 0.0078125
        %v3138 = vmul.f32 %v3115, 0.0078125
        %v3139 = vmul.f32 %v3117, 0.0078125
        %v3140 = vmul.f32 %v3119, 0.0078125
        %v3141 = vmul.f32 %v3121, 0.0078125
        %v3142 = vmul.f32 %v3123, 0.0078125
        %v3143 = vmul.f32 %v3125, 0.0078125
        %v3144 = vmul.f32 %v3127, 0.0078125
        %v3145 = vmul.f32 %v3129, 0.0078125
        %v3146 = vsub.f32 %v3080, %v3130
        %v3147 = vsub.f32 %v3081, %v3131
        %v3148 = vsub.f32 %v3082, %v3132
        %v3149 = vsub.f32 %v3083, %v3133
        %v3150 = vsub.f32 %v3084, %v3134
        %v3151 = vsub.f32 %v3085, %v3135
        %v3152 = vsub.f32 %v3086, %v3136
        %v3153 = vsub.f32 %v3087, %v3137
        %v3154 = vsub.f32 %v3088, %v3138
        %v3155 = vsub.f32 %v3089, %v3139
        %v3156 = vsub.f32 %v3090, %v3140
        %v3157 = vsub.f32 %v3091, %v3141
        %v3158 = vsub.f32 %v3092, %v3142
        %v3159 = vsub.f32 %v3093, %v3143
        %v3160 = vsub.f32 %v3094, %v3144
        %v3161 = vsub.f32 %v3095, %v3145
        %v3162 = vmul.f32 %v3146, %v3146
        %v3163 = vmul.f32 %v3147, %v3147
        %v3164 = vmul.f32 %v3148, %v3148
        %v3165 = vmul.f32 %v3149, %v3149
        %v3166 = vmul.f32 %v3150, %v3150
        %v3167 = vmul.f32 %v3151, %v3151
        %v3168 = vmul.f32 %v3152, %v3152
        %v3169 = vmul.f32 %v3153, %v3153
        %v3170 = vmul.f32 %v3154, %v3154
        %v3171 = vmul.f32 %v3155, %v3155
        %v3172 = vmul.f32 %v3156, %v3156
        %v3173 = vmul.f32 %v3157, %v3157
        %v3174 = vmul.f32 %v3158, %v3158
        %v3175 = vmul.f32 %v3159, %v3159
        %v3176 = vmul.f32 %v3160, %v3160
        %v3177 = vmul.f32 %v3161, %v3161
        %3178 = vadd.xlane.f32.xlu0 %v3162
        %v3179 = vpop.xlane.xlu0 %3178
        %3180 = vadd.xlane.f32.xlu0 %v3163
        %v3181 = vpop.xlane.xlu0 %3180
        %3182 = vadd.xlane.f32.xlu0 %v3164
        %v3183 = vpop.xlane.xlu0 %3182
        %3184 = vadd.xlane.f32.xlu0 %v3165
        %v3185 = vpop.xlane.xlu0 %3184
        %3186 = vadd.xlane.f32.xlu0 %v3166
        %v3187 = vpop.xlane.xlu0 %3186
        %3188 = vadd.xlane.f32.xlu0 %v3167
        %v3189 = vpop.xlane.xlu0 %3188
        %3190 = vadd.xlane.f32.xlu0 %v3168
        %v3191 = vpop.xlane.xlu0 %3190
        %3192 = vadd.xlane.f32.xlu0 %v3169
        %v3193 = vpop.xlane.xlu0 %3192
        %3194 = vadd.xlane.f32.xlu0 %v3170
        %v3195 = vpop.xlane.xlu0 %3194
        %3196 = vadd.xlane.f32.xlu0 %v3171
        %v3197 = vpop.xlane.xlu0 %3196
        %3198 = vadd.xlane.f32.xlu0 %v3172
        %v3199 = vpop.xlane.xlu0 %3198
        %3200 = vadd.xlane.f32.xlu0 %v3173
        %v3201 = vpop.xlane.xlu0 %3200
        %3202 = vadd.xlane.f32.xlu0 %v3174
        %v3203 = vpop.xlane.xlu0 %3202
        %3204 = vadd.xlane.f32.xlu0 %v3175
        %v3205 = vpop.xlane.xlu0 %3204
        %3206 = vadd.xlane.f32.xlu0 %v3176
        %v3207 = vpop.xlane.xlu0 %3206
        %3208 = vadd.xlane.f32.xlu0 %v3177
        %v3209 = vpop.xlane.xlu0 %3208
        %v3210 = vmul.f32 %v3179, 0.0078125
        %v3211 = vmul.f32 %v3181, 0.0078125
        %v3212 = vmul.f32 %v3183, 0.0078125
        %v3213 = vmul.f32 %v3185, 0.0078125
        %v3214 = vmul.f32 %v3187, 0.0078125
        %v3215 = vmul.f32 %v3189, 0.0078125
        %v3216 = vmul.f32 %v3191, 0.0078125
        %v3217 = vmul.f32 %v3193, 0.0078125
        %v3218 = vmul.f32 %v3195, 0.0078125
        %v3219 = vmul.f32 %v3197, 0.0078125
        %v3220 = vmul.f32 %v3199, 0.0078125
        %v3221 = vmul.f32 %v3201, 0.0078125
        %v3222 = vmul.f32 %v3203, 0.0078125
        %v3223 = vmul.f32 %v3205, 0.0078125
        %v3224 = vmul.f32 %v3207, 0.0078125
        %v3225 = vmul.f32 %v3209, 0.0078125
        %v3226 = vadd.f32 %v3210, 1e-05
        %v3227 = vadd.f32 %v3211, 1e-05
        %v3228 = vadd.f32 %v3212, 1e-05
        %v3229 = vadd.f32 %v3213, 1e-05
        %v3230 = vadd.f32 %v3214, 1e-05
        %v3231 = vadd.f32 %v3215, 1e-05
        %v3232 = vadd.f32 %v3216, 1e-05
        %v3233 = vadd.f32 %v3217, 1e-05
        %v3234 = vadd.f32 %v3218, 1e-05
        %v3235 = vadd.f32 %v3219, 1e-05
        %v3236 = vadd.f32 %v3220, 1e-05
        %v3237 = vadd.f32 %v3221, 1e-05
        %v3238 = vadd.f32 %v3222, 1e-05
        %v3239 = vadd.f32 %v3223, 1e-05
        %v3240 = vadd.f32 %v3224, 1e-05
        %v3241 = vadd.f32 %v3225, 1e-05
        %v3242 = vrsqrt.pop %v3226
        %v3243 = vrsqrt.pop %v3227
        %v3244 = vrsqrt.pop %v3228
        %v3245 = vrsqrt.pop %v3229
        %v3246 = vrsqrt.pop %v3230
        %v3247 = vrsqrt.pop %v3231
        %v3248 = vrsqrt.pop %v3232
        %v3249 = vrsqrt.pop %v3233
        %v3250 = vrsqrt.pop %v3234
        %v3251 = vrsqrt.pop %v3235
        %v3252 = vrsqrt.pop %v3236
        %v3253 = vrsqrt.pop %v3237
        %v3254 = vrsqrt.pop %v3238
        %v3255 = vrsqrt.pop %v3239
        %v3256 = vrsqrt.pop %v3240
        %v3257 = vrsqrt.pop %v3241
        %v3258 = vmul.f32 %v3146, %v3242
        %v3259 = vmul.f32 %v3147, %v3243
        %v3260 = vmul.f32 %v3148, %v3244
        %v3261 = vmul.f32 %v3149, %v3245
        %v3262 = vmul.f32 %v3150, %v3246
        %v3263 = vmul.f32 %v3151, %v3247
        %v3264 = vmul.f32 %v3152, %v3248
        %v3265 = vmul.f32 %v3153, %v3249
        %v3266 = vmul.f32 %v3154, %v3250
        %v3267 = vmul.f32 %v3155, %v3251
        %v3268 = vmul.f32 %v3156, %v3252
        %v3269 = vmul.f32 %v3157, %v3253
        %v3270 = vmul.f32 %v3158, %v3254
        %v3271 = vmul.f32 %v3159, %v3255
        %v3272 = vmul.f32 %v3160, %v3256
        %v3273 = vmul.f32 %v3161, %v3257
        %v3275 = vlaneseq
        %v3276 = vshrl.u32 %v3275, 7
        %v3277 = vsub.s32 0, %v3276
        %v3278 = vrot.slane %v3096, %v3277
        %v3280 = vmul.f32 %v3258, %v3278
        %v3281 = vmul.f32 %v3259, %v3278
        %v3282 = vmul.f32 %v3260, %v3278
        %v3283 = vmul.f32 %v3261, %v3278
        %v3284 = vmul.f32 %v3262, %v3278
        %v3285 = vmul.f32 %v3263, %v3278
        %v3286 = vmul.f32 %v3264, %v3278
        %v3287 = vmul.f32 %v3265, %v3278
        %v3288 = vmul.f32 %v3266, %v3278
        %v3289 = vmul.f32 %v3267, %v3278
        %v3290 = vmul.f32 %v3268, %v3278
        %v3291 = vmul.f32 %v3269, %v3278
        %v3292 = vmul.f32 %v3270, %v3278
        %v3293 = vmul.f32 %v3271, %v3278
        %v3294 = vmul.f32 %v3272, %v3278
        %v3295 = vmul.f32 %v3273, %v3278
        %v3297 = vlaneseq
        %v3298 = vshrl.u32 %v3297, 7
        %v3299 = vsub.s32 0, %v3298
        %v3300 = vrot.slane %v3097, %v3299
        %v3302 = vadd.f32 %v3280, %v3300
        %v3303 = vadd.f32 %v3281, %v3300
        %v3304 = vadd.f32 %v3282, %v3300
        %v3305 = vadd.f32 %v3283, %v3300
        %v3306 = vadd.f32 %v3284, %v3300
        %v3307 = vadd.f32 %v3285, %v3300
        %v3308 = vadd.f32 %v3286, %v3300
        %v3309 = vadd.f32 %v3287, %v3300
        %v3310 = vadd.f32 %v3288, %v3300
        %v3311 = vadd.f32 %v3289, %v3300
        %v3312 = vadd.f32 %v3290, %v3300
        %v3313 = vadd.f32 %v3291, %v3300
        %v3314 = vadd.f32 %v3292, %v3300
        %v3315 = vadd.f32 %v3293, %v3300
        %v3316 = vadd.f32 %v3294, %v3300
        %v3317 = vadd.f32 %v3295, %v3300
        %3318 = vst [vmem:[%s410] sm:$0xff] %v3302
        %3319 = vst [vmem:[%s410 + $0x8] sm:$0xff] %v3303
        %3320 = vst [vmem:[%s410 + $0x10] sm:$0xff] %v3304
        %3321 = vst [vmem:[%s410 + $0x18] sm:$0xff] %v3305
        %3322 = vst [vmem:[%s410 + $0x20] sm:$0xff] %v3306
        %3323 = vst [vmem:[%s410 + $0x28] sm:$0xff] %v3307
        %3324 = vst [vmem:[%s410 + $0x30] sm:$0xff] %v3308
        %3325 = vst [vmem:[%s410 + $0x38] sm:$0xff] %v3309
        %3326 = vst [vmem:[%s410 + $0x40] sm:$0xff] %v3310
        %3327 = vst [vmem:[%s410 + $0x48] sm:$0xff] %v3311
        %3328 = vst [vmem:[%s410 + $0x50] sm:$0xff] %v3312
        %3329 = vst [vmem:[%s410 + $0x58] sm:$0xff] %v3313
        %3330 = vst [vmem:[%s410 + $0x60] sm:$0xff] %v3314
        %3331 = vst [vmem:[%s410 + $0x68] sm:$0xff] %v3315
        %3332 = vst [vmem:[%s410 + $0x70] sm:$0xff] %v3316
        %3333 = vst [vmem:[%s410 + $0x78] sm:$0xff] %v3317
        %s3334 = sand.u32 %s271, 1
        %s3335 = scalar_lea.sflag [#allocation4], %s3334
        %s3336 = sand.u32 %s271, 1
        %s3337 = smul.addr %s3336, 128
        %s3338 = scalar_lea.vmem [#allocation7], %s3337
        // Predicated region
        $region73: #{tpu_custom_call.1} parent=63 // pred_check
          %p3339 = pneg %p281
        $region74: #{tpu_custom_call.1} parent=63 // pred_check_branch
          %3341 = sbr.rel (%p3339) target = $region76
        $region75: #{tpu_custom_call.1} parent=63 // pred_region
          %s3342 = smul.u32 16, %s27
          %s3344 = ssub.s32 2048, 2048
          %3345 = vsyncadd %s3335, %s3344
          %s3346 = smul.addr %s3342, 128
          %s3347 = scalar_lea.hbm %s11, %s3346
          %s3348 = sshll.u32 %s3338, 4
          %s3349 = int_to_ptr.vmem [resolvable:$true] %s3348
          %3354 = dma.vmem_to_hbm [thread:$0]  %s3349, 2048, %s3347, %s3335, 128, 128, 8
        $region76: #{tpu_custom_call.1} parent=63 // pred_fallthru
          _
      $region64: #{tpu_custom_call.1} parent=5 // pred_fallthru
        _
      %p3355 = scmp.le.s32.totalorder 2, %s22
      // Predicated region
      $region77: #{tpu_custom_call.1} parent=5 // pred_check
        %p3356 = pneg %p3355
      $region78: #{tpu_custom_call.1} parent=5 // pred_check_branch
        %3358 = sbr.rel (%p3356) target = $region80
      $region79: #{tpu_custom_call.1} parent=5 // pred_region
        %s3359 = ssub.s32 %s22, 2
        // Predicated region
        $region81: #{tpu_custom_call.1} parent=79 // pred_check
          %p3360 = pneg %p287
        $region82: #{tpu_custom_call.1} parent=79 // pred_check_branch
          %3362 = sbr.rel (%p3360) target = $region84
        $region83: #{tpu_custom_call.1} parent=79 // pred_region
          %s3363 = sand.u32 %s272, 1
          %s3364 = scalar_lea.sflag [#allocation4], %s3363
          %s3365 = sand.u32 %s272, 1
          %s3366 = smul.addr %s3365, 128
          %s3367 = scalar_lea.vmem [#allocation7], %s3366
          %3368 = dma.done %s3364, 2048
        $region84: #{tpu_custom_call.1} parent=79 // pred_fallthru
          _
      $region80: #{tpu_custom_call.1} parent=5 // pred_fallthru
        _
    $region6: #{tpu_custom_call.1} parent=1 // loop_footer
      %s26 = sadd.s32 1, %s22
    $region7: #{tpu_custom_call.1} parent=1 // loop_footer_branch
      %21 = sbr.rel target = $region3
    $region8: #{tpu_custom_call.1} parent=1 // loop_exit
      _
    %3369 = vsyncpa [#allocation3], 1
    %s3370 = scalar_lea.sflag [#allocation3], 1
    %3371 = vsyncpa %s3370, 1
    %3372 = vsyncpa [#allocation6], 1
    %3373 = vsyncpa [#allocation4], 1
    %s3374 = scalar_lea.sflag [#allocation4], 1
    %3375 = vsyncpa %s3374, 1

</llo_original>
